<compile_context>
chip_gen: v6e
topology: v6e:2x2x1
jax: 0.10.0
libtpu: 0.0.40
codegen_flags: <defaults>
</compile_context>

<pallas_src>
import functools
import math

import jax
import jax.numpy as jnp
from jax.experimental import pallas as pl
from jax.experimental.pallas import tpu as pltpu

# ----------------------------- config ---------------------------------------
VOCAB = 100
HIDDEN = 32
N_HEADS = 2
HEAD_DIM = HIDDEN // N_HEADS
INTERMEDIATE = 64
N_LAYERS = 2
MAX_POS = 64
NUM_CLASSES = 5
C_PAD = 8                     # lane-friendly padded class count
LN_EPS = 1e-12
NEG_INF = -1e9


# --------------------------- in-kernel helpers -------------------------------
def _layernorm(x, g, b):
    mu = jnp.mean(x, axis=-1, keepdims=True)
    var = jnp.mean((x - mu) ** 2, axis=-1, keepdims=True)
    return (x - mu) * jax.lax.rsqrt(var + LN_EPS) * g + b


def _bf16_dot(x, w):
    # bf16 MXU inputs, f32 accumulation
    return jnp.dot(x.astype(jnp.bfloat16), w.astype(jnp.bfloat16),
                   preferred_element_type=jnp.float32)


# --------------------------- the fused kernel --------------------------------
def _bert_crf_kernel(h0_ref, emb_g_ref, emb_b_ref,
                     qkv_w_ref, qkv_b_ref, ao_w_ref, ao_b_ref,
                     ln1_g_ref, ln1_b_ref, i_w_ref, i_b_ref,
                     o_w_ref, o_b_ref, ln2_g_ref, ln2_b_ref,
                     cls_w_ref, cls_b_ref,
                     trans_ref, start_ref, end_ref,
                     bias_ref, mask_ref, th_ref,
                     loss_ref, *, batch, seq):
    B, S = batch, seq
    scale = 1.0 / math.sqrt(HEAD_DIM)

    # ---------------- BERT encoder (fully fused, resident in VMEM) -----------
    x = _layernorm(h0_ref[...], emb_g_ref[...], emb_b_ref[...])   # (B*S, H) f32
    attn_bias = bias_ref[...]                                     # (B, 1, S)

    for l in range(N_LAYERS):
        # fused QKV projection: one (B*S, H) @ (H, 3H) matmul
        qkv = _bf16_dot(x, qkv_w_ref[l]) + qkv_b_ref[l]            # (B*S, 3H)
        ctx_heads = []
        for h in range(N_HEADS):
            o = h * HEAD_DIM
            q = qkv[:, o:o + HEAD_DIM].reshape(B, S, HEAD_DIM)
            k = qkv[:, HIDDEN + o:HIDDEN + o + HEAD_DIM].reshape(B, S, HEAD_DIM)
            v = qkv[:, 2 * HIDDEN + o:2 * HIDDEN + o + HEAD_DIM].reshape(B, S, HEAD_DIM)
            s = jnp.einsum('bqd,bkd->bqk',
                           q.astype(jnp.bfloat16), k.astype(jnp.bfloat16),
                           preferred_element_type=jnp.float32) * scale + attn_bias
            m = jnp.max(s, axis=-1, keepdims=True)
            p = jnp.exp(s - m)
            p = p / jnp.sum(p, axis=-1, keepdims=True)
            ctx_heads.append(jnp.einsum('bqk,bkd->bqd',
                                        p.astype(jnp.bfloat16),
                                        v.astype(jnp.bfloat16),
                                        preferred_element_type=jnp.float32))
        ctx = jnp.concatenate(ctx_heads, axis=-1).reshape(B * S, HIDDEN)

        attn_out = _bf16_dot(ctx, ao_w_ref[l]) + ao_b_ref[l]
        x = _layernorm(attn_out + x, ln1_g_ref[l], ln1_b_ref[l])

        inter = _bf16_dot(x, i_w_ref[l]) + i_b_ref[l]
        # TODO(synk): HF BERT uses erf-based GELU; tanh-approx GELU used in-kernel.
        inter = jax.nn.gelu(inter, approximate=True)
        ffn = _bf16_dot(inter, o_w_ref[l]) + o_b_ref[l]
        x = _layernorm(ffn + x, ln2_g_ref[l], ln2_b_ref[l])

    # ---------------- classifier -> emissions (padded to C_PAD classes) ------
    em2 = _bf16_dot(x, cls_w_ref[...]) + cls_b_ref[...]            # (B*S, C_PAD)
    em3 = em2.reshape(B, S, C_PAD)                                 # (B, S, C_PAD)

    # ---------------- CRF log-likelihood (torchcrf semantics, batched) -------
    trans = trans_ref[...]        # (C_PAD, C_PAD); padded rows/cols are 0
    start = start_ref[...]        # (1, C_PAD)
    end = end_ref[...]            # (1, C_PAD)
    th3 = th_ref[...]             # (B, S, C_PAD) gold one-hots (padded cols 0)
    m3 = mask_ref[...]            # (B, S, 1) float mask

    # hoisted once per forward: column-max shifted exp(trans) (entries <= 1)
    # makes the matmul-based logsumexp robust to large transition scores.
    t_colmax = jnp.max(trans, axis=0, keepdims=True)               # (1, C_PAD)
    exp_trans = jnp.exp(trans - t_colmax)                          # (C_PAD, C_PAD)

    # --- numerator: score of the gold tag path (mask is a prefix, mask[:,0]=1)
    em_score = jnp.sum(jnp.sum(em3 * th3, axis=-1, keepdims=True) * m3,
                       axis=1)                                      # (B, 1)
    start_score = jnp.sum(th3[:, 0, :] * start, axis=-1, keepdims=True)   # (B, 1)

    th_prev = th3[:, :S - 1, :].reshape(B * (S - 1), C_PAD)
    row = jnp.dot(th_prev, trans,
                  preferred_element_type=jnp.float32).reshape(B, S - 1, C_PAD)
    trans_score = jnp.sum(
        jnp.sum(row * th3[:, 1:, :], axis=-1, keepdims=True) * m3[:, 1:, :],
        axis=1)                                                     # (B, 1)

    t_idx = jax.lax.broadcasted_iota(jnp.int32, (B, S, 1), 1)       # (B, S, 1)
    seq_len = jnp.sum(m3, axis=1, keepdims=True).astype(jnp.int32)  # (B, 1, 1)
    is_last = (t_idx == (seq_len - 1)).astype(jnp.float32)          # (B, S, 1)
    last_oh = jnp.sum(th3 * is_last, axis=1)                        # (B, C_PAD)
    end_score = jnp.sum(last_oh * end, axis=-1, keepdims=True)      # (B, 1)

    num = em_score + start_score + trans_score + end_score          # (B, 1)

    # --- denominator: forward algorithm, batched over B, unrolled over S ----
    alpha = start + em3[:, 0, :]                                    # (B, C_PAD)
    for t in range(1, S):
        m = jnp.max(alpha, axis=-1, keepdims=True)                  # (B, 1)
        lse = m + t_colmax + jnp.log(
            jnp.dot(jnp.exp(alpha - m), exp_trans,
                    preferred_element_type=jnp.float32))            # (B, C_PAD)
        nxt = lse + em3[:, t, :]
        alpha = jnp.where(m3[:, t, :] > 0.5, nxt, alpha)
    alpha = alpha + end
    m2 = jnp.max(alpha, axis=-1, keepdims=True)
    denom = m2 + jnp.log(jnp.sum(jnp.exp(alpha - m2),
                                 axis=-1, keepdims=True))            # (B, 1)

    # loss = sum_b (denom_b - num_b) = -log_likelihood (reduction='sum')
    loss_ref[...] = jnp.sum(denom - num, axis=0, keepdims=True)      # (1, 1)


# ------------------------------- model glue ----------------------------------
def init_params(key):
    def nrm(k, shape, scale=0.02):
        return scale * jax.random.normal(k, shape, dtype=jnp.float32)

    keys = iter(jax.random.split(key, 64))

    qkv_w, qkv_b, ao_w, ao_b = [], [], [], []
    ln1_g, ln1_b, i_w, i_b, o_w, o_b, ln2_g, ln2_b = ([] for _ in range(8))
    for _ in range(N_LAYERS):
        qw = nrm(next(keys), (HIDDEN, HIDDEN))
        kw = nrm(next(keys), (HIDDEN, HIDDEN))
        vw = nrm(next(keys), (HIDDEN, HIDDEN))
        qkv_w.append(jnp.concatenate([qw, kw, vw], axis=1))        # (H, 3H)
        qkv_b.append(jnp.zeros((1, 3 * HIDDEN), jnp.float32))
        ao_w.append(nrm(next(keys), (HIDDEN, HIDDEN)))
        ao_b.append(jnp.zeros((1, HIDDEN), jnp.float32))
        ln1_g.append(jnp.ones((1, HIDDEN), jnp.float32))
        ln1_b.append(jnp.zeros((1, HIDDEN), jnp.float32))
        i_w.append(nrm(next(keys), (HIDDEN, INTERMEDIATE)))
        i_b.append(jnp.zeros((1, INTERMEDIATE), jnp.float32))
        o_w.append(nrm(next(keys), (INTERMEDIATE, HIDDEN)))
        o_b.append(jnp.zeros((1, HIDDEN), jnp.float32))
        ln2_g.append(jnp.ones((1, HIDDEN), jnp.float32))
        ln2_b.append(jnp.zeros((1, HIDDEN), jnp.float32))

    pad_c = C_PAD - NUM_CLASSES
    cls_w = jnp.pad(nrm(next(keys), (HIDDEN, NUM_CLASSES)), ((0, 0), (0, pad_c)))
    cls_b = jnp.concatenate(
        [jnp.zeros((1, NUM_CLASSES), jnp.float32),
         jnp.full((1, pad_c), NEG_INF, jnp.float32)], axis=1)       # pad emissions -> -inf-ish
    trans = jnp.pad(nrm(next(keys), (NUM_CLASSES, NUM_CLASSES), 0.1),
                    ((0, pad_c), (0, pad_c)))
    start = jnp.pad(nrm(next(keys), (1, NUM_CLASSES), 0.1), ((0, 0), (0, pad_c)))
    end = jnp.pad(nrm(next(keys), (1, NUM_CLASSES), 0.1), ((0, 0), (0, pad_c)))

    params = {
        "word_emb": nrm(next(keys), (VOCAB, HIDDEN)),
        "pos_emb": nrm(next(keys), (MAX_POS, HIDDEN)),
        "type_emb": nrm(next(keys), (2, HIDDEN)),
        "emb_ln_g": jnp.ones((1, HIDDEN), jnp.float32),
        "emb_ln_b": jnp.zeros((1, HIDDEN), jnp.float32),
        # MXU weight matrices in bf16 (f32 accumulation inside the kernel)
        "qkv_w": jnp.stack(qkv_w).astype(jnp.bfloat16),
        "qkv_b": jnp.stack(qkv_b),
        "ao_w": jnp.stack(ao_w).astype(jnp.bfloat16),
        "ao_b": jnp.stack(ao_b),
        "ln1_g": jnp.stack(ln1_g), "ln1_b": jnp.stack(ln1_b),
        "i_w": jnp.stack(i_w).astype(jnp.bfloat16), "i_b": jnp.stack(i_b),
        "o_w": jnp.stack(o_w).astype(jnp.bfloat16), "o_b": jnp.stack(o_b),
        "ln2_g": jnp.stack(ln2_g), "ln2_b": jnp.stack(ln2_b),
        "cls_w": cls_w.astype(jnp.bfloat16), "cls_b": cls_b,
        "crf_trans": trans, "crf_start": start, "crf_end": end,
    }
    return params


def bert_crf_forward(params, ids, tags, msk):
    B, S = ids.shape
    tags = jnp.where(tags == -100, 0, tags)
    maskf = (msk == 1).astype(jnp.float32)

    # TODO(synk): embedding-table gather kept as host-side XLA take (tiny tensor;
    # no clean win from a Pallas gather at this scale).
    h0 = (jnp.take(params["word_emb"], ids, axis=0)
          + params["pos_emb"][:S][None, :, :]
          + params["type_emb"][0][None, None, :]).reshape(B * S, HIDDEN)

    attn_bias = ((1.0 - maskf) * NEG_INF)[:, None, :]          # (B, 1, S)
    m3 = maskf[:, :, None]                                      # (B, S, 1)
    th3 = jax.nn.one_hot(tags, C_PAD, dtype=jnp.float32)        # (B, S, C_PAD)

    loss = pl.pallas_call(
        functools.partial(_bert_crf_kernel, batch=B, seq=S),
        out_shape=jax.ShapeDtypeStruct((1, 1), jnp.float32),
        compiler_params=pltpu.CompilerParams(vmem_limit_bytes=16 * 1024 * 1024),
    )(h0, params["emb_ln_g"], params["emb_ln_b"],
      params["qkv_w"], params["qkv_b"], params["ao_w"], params["ao_b"],
      params["ln1_g"], params["ln1_b"], params["i_w"], params["i_b"],
      params["o_w"], params["o_b"], params["ln2_g"], params["ln2_b"],
      params["cls_w"], params["cls_b"],
      params["crf_trans"], params["crf_start"], params["crf_end"],
      attn_bias, m3, th3)

    # torchcrf CRF() default reduction='sum'; the module returns
    # -1 * log_likelihood, which is exactly what the kernel already wrote.
    return loss[0, 0]


# --------------------------------- main --------------------------------------
if __name__ == "__main__":
    key = jax.random.PRNGKey(0)
    pkey, ikey, tkey = jax.random.split(key, 3)
    params = init_params(pkey)

    B, S = 2, 8
    ids = jax.random.randint(ikey, (B, S), 0, VOCAB, dtype=jnp.int32)
    tags = jax.random.randint(tkey, (B, S), 0, NUM_CLASSES, dtype=jnp.int32)
    msk = jnp.array([[1, 1, 1, 1, 1, 1, 1, 1],
                     [1, 1, 1, 1, 1, 0, 0, 0]], dtype=jnp.int32)
    tags = jnp.where(msk == 0, -100, tags)   # padded positions labelled -100 (HF convention)

    out = jax.jit(bert_crf_forward)(params, ids, tags, msk)
    out = jax.block_until_ready(out)
    assert out.shape == () and bool(jnp.isfinite(out))
    print("KERNEL_OK")
</pallas_src>

<mosaic_0001>
module attributes {stable_mosaic.version = 11 : i64} {
  func.func @_bert_crf_kernel(%arg0: memref<16x32xf32, #tpu.memory_space<vmem>>, %arg1: memref<1x32xf32, #tpu.memory_space<vmem>>, %arg2: memref<1x32xf32, #tpu.memory_space<vmem>>, %arg3: memref<2x32x96xbf16, #tpu.memory_space<vmem>>, %arg4: memref<2x1x96xf32, #tpu.memory_space<vmem>>, %arg5: memref<2x32x32xbf16, #tpu.memory_space<vmem>>, %arg6: memref<2x1x32xf32, #tpu.memory_space<vmem>>, %arg7: memref<2x1x32xf32, #tpu.memory_space<vmem>>, %arg8: memref<2x1x32xf32, #tpu.memory_space<vmem>>, %arg9: memref<2x32x64xbf16, #tpu.memory_space<vmem>>, %arg10: memref<2x1x64xf32, #tpu.memory_space<vmem>>, %arg11: memref<2x64x32xbf16, #tpu.memory_space<vmem>>, %arg12: memref<2x1x32xf32, #tpu.memory_space<vmem>>, %arg13: memref<2x1x32xf32, #tpu.memory_space<vmem>>, %arg14: memref<2x1x32xf32, #tpu.memory_space<vmem>>, %arg15: memref<32x8xbf16, #tpu.memory_space<vmem>>, %arg16: memref<1x8xf32, #tpu.memory_space<vmem>>, %arg17: memref<8x8xf32, #tpu.memory_space<vmem>>, %arg18: memref<1x8xf32, #tpu.memory_space<vmem>>, %arg19: memref<1x8xf32, #tpu.memory_space<vmem>>, %arg20: memref<2x1x8xf32, #tpu.memory_space<vmem>>, %arg21: memref<2x8x1xf32, #tpu.memory_space<vmem>>, %arg22: memref<2x8x8xf32, #tpu.memory_space<vmem>>, %arg23: memref<1x1xf32, #tpu.memory_space<vmem>>) attributes {dimension_semantics = [], scalar_prefetch = 0 : i64, scratch_operands = 0 : i64, tpu.core_type = #tpu.core_type<tc>} {
    %c0 = arith.constant 0 : index
    %c0_0 = arith.constant 0 : index
    %0 = vector.load %arg0[%c0, %c0_0] : memref<16x32xf32, #tpu.memory_space<vmem>>, vector<16x32xf32>
    %c0_1 = arith.constant 0 : index
    %c0_2 = arith.constant 0 : index
    %1 = vector.load %arg1[%c0_1, %c0_2] : memref<1x32xf32, #tpu.memory_space<vmem>>, vector<1x32xf32>
    %c0_3 = arith.constant 0 : index
    %c0_4 = arith.constant 0 : index
    %2 = vector.load %arg2[%c0_3, %c0_4] : memref<1x32xf32, #tpu.memory_space<vmem>>, vector<1x32xf32>
    %cst = arith.constant dense<0.000000e+00> : vector<16xf32>
    %3 = vector.multi_reduction <add>, %0, %cst [1] : vector<16x32xf32> to vector<16xf32>
    %4 = vector.shape_cast %3 : vector<16xf32> to vector<16x1xf32>
    %cst_5 = arith.constant 3.200000e+01 : f32
    %5 = vector.broadcast %cst_5 : f32 to vector<16x1xf32>
    %6 = arith.divf %4, %5 : vector<16x1xf32>
    %7 = vector.broadcast %6 : vector<16x1xf32> to vector<16x32xf32>
    %8 = arith.subf %0, %7 : vector<16x32xf32>
    %9 = arith.mulf %8, %8 : vector<16x32xf32>
    %cst_6 = arith.constant dense<0.000000e+00> : vector<16xf32>
    %10 = vector.multi_reduction <add>, %9, %cst_6 [1] : vector<16x32xf32> to vector<16xf32>
    %11 = vector.shape_cast %10 : vector<16xf32> to vector<16x1xf32>
    %cst_7 = arith.constant 3.200000e+01 : f32
    %12 = vector.broadcast %cst_7 : f32 to vector<16x1xf32>
    %13 = arith.divf %11, %12 : vector<16x1xf32>
    %14 = vector.broadcast %6 : vector<16x1xf32> to vector<16x32xf32>
    %15 = arith.subf %0, %14 : vector<16x32xf32>
    %cst_8 = arith.constant 9.99999996E-13 : f32
    %16 = vector.broadcast %cst_8 : f32 to vector<16x1xf32>
    %17 = arith.addf %13, %16 : vector<16x1xf32>
    %18 = math.rsqrt %17 : vector<16x1xf32>
    %19 = vector.broadcast %18 : vector<16x1xf32> to vector<16x32xf32>
    %20 = arith.mulf %15, %19 : vector<16x32xf32>
    %21 = vector.broadcast %1 : vector<1x32xf32> to vector<16x32xf32>
    %22 = arith.mulf %20, %21 : vector<16x32xf32>
    %23 = vector.broadcast %2 : vector<1x32xf32> to vector<16x32xf32>
    %24 = arith.addf %22, %23 : vector<16x32xf32>
    %c0_9 = arith.constant 0 : index
    %c0_10 = arith.constant 0 : index
    %c0_11 = arith.constant 0 : index
    %25 = vector.load %arg20[%c0_9, %c0_10, %c0_11] : memref<2x1x8xf32, #tpu.memory_space<vmem>>, vector<2x1x8xf32>
    %c0_12 = arith.constant 0 : index
    %c0_13 = arith.constant 0 : index
    %c0_14 = arith.constant 0 : index
    %26 = vector.load %arg3[%c0_12, %c0_13, %c0_14] : memref<2x32x96xbf16, #tpu.memory_space<vmem>>, vector<1x32x96xbf16>
    %27 = vector.shape_cast %26 : vector<1x32x96xbf16> to vector<32x96xbf16>
    %28 = arith.truncf %24 : vector<16x32xf32> to vector<16x32xbf16>
    %cst_15 = arith.constant dense<0.000000e+00> : vector<16x96xf32>
    %29 = tpu.matmul %28, %27, %cst_15 {dimension_numbers = #tpu.dot_dimension_numbers<[1], [0], [0], [1], [0, 0, 1, 1], [], []>} : vector<16x32xbf16>, vector<32x96xbf16>, vector<16x96xf32> -> vector<16x96xf32>
    %c0_16 = arith.constant 0 : index
    %c0_17 = arith.constant 0 : index
    %c0_18 = arith.constant 0 : index
    %30 = vector.load %arg4[%c0_16, %c0_17, %c0_18] : memref<2x1x96xf32, #tpu.memory_space<vmem>>, vector<1x1x96xf32>
    %31 = vector.shape_cast %30 : vector<1x1x96xf32> to vector<1x96xf32>
    %32 = vector.broadcast %31 : vector<1x96xf32> to vector<16x96xf32>
    %33 = arith.addf %29, %32 : vector<16x96xf32>
    %34 = vector.extract_strided_slice %33 {offsets = [0, 0], sizes = [16, 16], strides = [1, 1]} : vector<16x96xf32> to vector<16x16xf32>
    %35 = vector.shape_cast %34 : vector<16x16xf32> to vector<2x8x16xf32>
    %36 = vector.extract_strided_slice %33 {offsets = [0, 32], sizes = [16, 16], strides = [1, 1]} : vector<16x96xf32> to vector<16x16xf32>
    %37 = vector.shape_cast %36 : vector<16x16xf32> to vector<2x8x16xf32>
    %38 = vector.extract_strided_slice %33 {offsets = [0, 64], sizes = [16, 16], strides = [1, 1]} : vector<16x96xf32> to vector<16x16xf32>
    %39 = vector.shape_cast %38 : vector<16x16xf32> to vector<2x8x16xf32>
    %40 = arith.truncf %35 : vector<2x8x16xf32> to vector<2x8x16xbf16>
    %41 = arith.truncf %37 : vector<2x8x16xf32> to vector<2x8x16xbf16>
    "tpu.trace_start"() <{level = 10 : i32, message = "bqd,bkd->bqk"}> : () -> ()
    %cst_19 = arith.constant dense<0.000000e+00> : vector<2x8x8xf32>
    %42 = tpu.matmul %40, %41, %cst_19 {dimension_numbers = #tpu.dot_dimension_numbers<[2], [2], [1], [1], [0, 0, 0, 1, 1, 1], [0], [0]>} : vector<2x8x16xbf16>, vector<2x8x16xbf16>, vector<2x8x8xf32> -> vector<2x8x8xf32>
    "tpu.trace_stop"() : () -> ()
    %cst_20 = arith.constant 2.500000e-01 : f32
    %43 = vector.broadcast %cst_20 : f32 to vector<2x8x8xf32>
    %44 = arith.mulf %42, %43 : vector<2x8x8xf32>
    %45 = vector.broadcast %25 : vector<2x1x8xf32> to vector<2x8x8xf32>
    %46 = arith.addf %44, %45 : vector<2x8x8xf32>
    %cst_21 = arith.constant dense<0xFF800000> : vector<2x8xf32>
    %47 = vector.multi_reduction <maximumf>, %46, %cst_21 [2] : vector<2x8x8xf32> to vector<2x8xf32>
    %48 = vector.shape_cast %47 : vector<2x8xf32> to vector<2x8x1xf32>
    %49 = vector.broadcast %48 : vector<2x8x1xf32> to vector<2x8x8xf32>
    %50 = arith.subf %46, %49 : vector<2x8x8xf32>
    %51 = math.exp %50 : vector<2x8x8xf32>
    %cst_22 = arith.constant dense<0.000000e+00> : vector<2x8xf32>
    %52 = vector.multi_reduction <add>, %51, %cst_22 [2] : vector<2x8x8xf32> to vector<2x8xf32>
    %53 = vector.shape_cast %52 : vector<2x8xf32> to vector<2x8x1xf32>
    %54 = vector.broadcast %53 : vector<2x8x1xf32> to vector<2x8x8xf32>
    %55 = arith.divf %51, %54 : vector<2x8x8xf32>
    %56 = arith.truncf %55 : vector<2x8x8xf32> to vector<2x8x8xbf16>
    %57 = arith.truncf %39 : vector<2x8x16xf32> to vector<2x8x16xbf16>
    "tpu.trace_start"() <{level = 10 : i32, message = "bqk,bkd->bqd"}> : () -> ()
    %cst_23 = arith.constant dense<0.000000e+00> : vector<2x8x16xf32>
    %58 = tpu.matmul %56, %57, %cst_23 {dimension_numbers = #tpu.dot_dimension_numbers<[2], [1], [1], [2], [0, 0, 0, 1, 1, 2], [0], [0]>} : vector<2x8x8xbf16>, vector<2x8x16xbf16>, vector<2x8x16xf32> -> vector<2x8x16xf32>
    "tpu.trace_stop"() : () -> ()
    %59 = vector.extract_strided_slice %33 {offsets = [0, 16], sizes = [16, 16], strides = [1, 1]} : vector<16x96xf32> to vector<16x16xf32>
    %60 = vector.shape_cast %59 : vector<16x16xf32> to vector<2x8x16xf32>
    %61 = vector.extract_strided_slice %33 {offsets = [0, 48], sizes = [16, 16], strides = [1, 1]} : vector<16x96xf32> to vector<16x16xf32>
    %62 = vector.shape_cast %61 : vector<16x16xf32> to vector<2x8x16xf32>
    %63 = vector.extract_strided_slice %33 {offsets = [0, 80], sizes = [16, 16], strides = [1, 1]} : vector<16x96xf32> to vector<16x16xf32>
    %64 = vector.shape_cast %63 : vector<16x16xf32> to vector<2x8x16xf32>
    %65 = arith.truncf %60 : vector<2x8x16xf32> to vector<2x8x16xbf16>
    %66 = arith.truncf %62 : vector<2x8x16xf32> to vector<2x8x16xbf16>
    "tpu.trace_start"() <{level = 10 : i32, message = "bqd,bkd->bqk"}> : () -> ()
    %cst_24 = arith.constant dense<0.000000e+00> : vector<2x8x8xf32>
    %67 = tpu.matmul %65, %66, %cst_24 {dimension_numbers = #tpu.dot_dimension_numbers<[2], [2], [1], [1], [0, 0, 0, 1, 1, 1], [0], [0]>} : vector<2x8x16xbf16>, vector<2x8x16xbf16>, vector<2x8x8xf32> -> vector<2x8x8xf32>
    "tpu.trace_stop"() : () -> ()
    %cst_25 = arith.constant 2.500000e-01 : f32
    %68 = vector.broadcast %cst_25 : f32 to vector<2x8x8xf32>
    %69 = arith.mulf %67, %68 : vector<2x8x8xf32>
    %70 = vector.broadcast %25 : vector<2x1x8xf32> to vector<2x8x8xf32>
    %71 = arith.addf %69, %70 : vector<2x8x8xf32>
    %cst_26 = arith.constant dense<0xFF800000> : vector<2x8xf32>
    %72 = vector.multi_reduction <maximumf>, %71, %cst_26 [2] : vector<2x8x8xf32> to vector<2x8xf32>
    %73 = vector.shape_cast %72 : vector<2x8xf32> to vector<2x8x1xf32>
    %74 = vector.broadcast %73 : vector<2x8x1xf32> to vector<2x8x8xf32>
    %75 = arith.subf %71, %74 : vector<2x8x8xf32>
    %76 = math.exp %75 : vector<2x8x8xf32>
    %cst_27 = arith.constant dense<0.000000e+00> : vector<2x8xf32>
    %77 = vector.multi_reduction <add>, %76, %cst_27 [2] : vector<2x8x8xf32> to vector<2x8xf32>
    %78 = vector.shape_cast %77 : vector<2x8xf32> to vector<2x8x1xf32>
    %79 = vector.broadcast %78 : vector<2x8x1xf32> to vector<2x8x8xf32>
    %80 = arith.divf %76, %79 : vector<2x8x8xf32>
    %81 = arith.truncf %80 : vector<2x8x8xf32> to vector<2x8x8xbf16>
    %82 = arith.truncf %64 : vector<2x8x16xf32> to vector<2x8x16xbf16>
    "tpu.trace_start"() <{level = 10 : i32, message = "bqk,bkd->bqd"}> : () -> ()
    %cst_28 = arith.constant dense<0.000000e+00> : vector<2x8x16xf32>
    %83 = tpu.matmul %81, %82, %cst_28 {dimension_numbers = #tpu.dot_dimension_numbers<[2], [1], [1], [2], [0, 0, 0, 1, 1, 2], [0], [0]>} : vector<2x8x8xbf16>, vector<2x8x16xbf16>, vector<2x8x16xf32> -> vector<2x8x16xf32>
    "tpu.trace_stop"() : () -> ()
    %84 = tpu.concatenate %58, %83 in 2 : vector<2x8x16xf32>, vector<2x8x16xf32> -> vector<2x8x32xf32>
    %85 = vector.shape_cast %84 : vector<2x8x32xf32> to vector<16x32xf32>
    %c0_29 = arith.constant 0 : index
    %c0_30 = arith.constant 0 : index
    %c0_31 = arith.constant 0 : index
    %86 = vector.load %arg5[%c0_29, %c0_30, %c0_31] : memref<2x32x32xbf16, #tpu.memory_space<vmem>>, vector<1x32x32xbf16>
    %87 = vector.shape_cast %86 : vector<1x32x32xbf16> to vector<32x32xbf16>
    %88 = arith.truncf %85 : vector<16x32xf32> to vector<16x32xbf16>
    %cst_32 = arith.constant dense<0.000000e+00> : vector<16x32xf32>
    %89 = tpu.matmul %88, %87, %cst_32 {dimension_numbers = #tpu.dot_dimension_numbers<[1], [0], [0], [1], [0, 0, 1, 1], [], []>} : vector<16x32xbf16>, vector<32x32xbf16>, vector<16x32xf32> -> vector<16x32xf32>
    %c0_33 = arith.constant 0 : index
    %c0_34 = arith.constant 0 : index
    %c0_35 = arith.constant 0 : index
    %90 = vector.load %arg6[%c0_33, %c0_34, %c0_35] : memref<2x1x32xf32, #tpu.memory_space<vmem>>, vector<1x1x32xf32>
    %91 = vector.shape_cast %90 : vector<1x1x32xf32> to vector<1x32xf32>
    %92 = vector.broadcast %91 : vector<1x32xf32> to vector<16x32xf32>
    %93 = arith.addf %89, %92 : vector<16x32xf32>
    %94 = arith.addf %93, %24 : vector<16x32xf32>
    %c0_36 = arith.constant 0 : index
    %c0_37 = arith.constant 0 : index
    %c0_38 = arith.constant 0 : index
    %95 = vector.load %arg7[%c0_36, %c0_37, %c0_38] : memref<2x1x32xf32, #tpu.memory_space<vmem>>, vector<1x1x32xf32>
    %96 = vector.shape_cast %95 : vector<1x1x32xf32> to vector<1x32xf32>
    %c0_39 = arith.constant 0 : index
    %c0_40 = arith.constant 0 : index
    %c0_41 = arith.constant 0 : index
    %97 = vector.load %arg8[%c0_39, %c0_40, %c0_41] : memref<2x1x32xf32, #tpu.memory_space<vmem>>, vector<1x1x32xf32>
    %98 = vector.shape_cast %97 : vector<1x1x32xf32> to vector<1x32xf32>
    %cst_42 = arith.constant dense<0.000000e+00> : vector<16xf32>
    %99 = vector.multi_reduction <add>, %94, %cst_42 [1] : vector<16x32xf32> to vector<16xf32>
    %100 = vector.shape_cast %99 : vector<16xf32> to vector<16x1xf32>
    %cst_43 = arith.constant 3.200000e+01 : f32
    %101 = vector.broadcast %cst_43 : f32 to vector<16x1xf32>
    %102 = arith.divf %100, %101 : vector<16x1xf32>
    %103 = vector.broadcast %102 : vector<16x1xf32> to vector<16x32xf32>
    %104 = arith.subf %94, %103 : vector<16x32xf32>
    %105 = arith.mulf %104, %104 : vector<16x32xf32>
    %cst_44 = arith.constant dense<0.000000e+00> : vector<16xf32>
    %106 = vector.multi_reduction <add>, %105, %cst_44 [1] : vector<16x32xf32> to vector<16xf32>
    %107 = vector.shape_cast %106 : vector<16xf32> to vector<16x1xf32>
    %cst_45 = arith.constant 3.200000e+01 : f32
    %108 = vector.broadcast %cst_45 : f32 to vector<16x1xf32>
    %109 = arith.divf %107, %108 : vector<16x1xf32>
    %110 = vector.broadcast %102 : vector<16x1xf32> to vector<16x32xf32>
    %111 = arith.subf %94, %110 : vector<16x32xf32>
    %cst_46 = arith.constant 9.99999996E-13 : f32
    %112 = vector.broadcast %cst_46 : f32 to vector<16x1xf32>
    %113 = arith.addf %109, %112 : vector<16x1xf32>
    %114 = math.rsqrt %113 : vector<16x1xf32>
    %115 = vector.broadcast %114 : vector<16x1xf32> to vector<16x32xf32>
    %116 = arith.mulf %111, %115 : vector<16x32xf32>
    %117 = vector.broadcast %96 : vector<1x32xf32> to vector<16x32xf32>
    %118 = arith.mulf %116, %117 : vector<16x32xf32>
    %119 = vector.broadcast %98 : vector<1x32xf32> to vector<16x32xf32>
    %120 = arith.addf %118, %119 : vector<16x32xf32>
    %c0_47 = arith.constant 0 : index
    %c0_48 = arith.constant 0 : index
    %c0_49 = arith.constant 0 : index
    %121 = vector.load %arg9[%c0_47, %c0_48, %c0_49] : memref<2x32x64xbf16, #tpu.memory_space<vmem>>, vector<1x32x64xbf16>
    %122 = vector.shape_cast %121 : vector<1x32x64xbf16> to vector<32x64xbf16>
    %123 = arith.truncf %120 : vector<16x32xf32> to vector<16x32xbf16>
    %cst_50 = arith.constant dense<0.000000e+00> : vector<16x64xf32>
    %124 = tpu.matmul %123, %122, %cst_50 {dimension_numbers = #tpu.dot_dimension_numbers<[1], [0], [0], [1], [0, 0, 1, 1], [], []>} : vector<16x32xbf16>, vector<32x64xbf16>, vector<16x64xf32> -> vector<16x64xf32>
    %c0_51 = arith.constant 0 : index
    %c0_52 = arith.constant 0 : index
    %c0_53 = arith.constant 0 : index
    %125 = vector.load %arg10[%c0_51, %c0_52, %c0_53] : memref<2x1x64xf32, #tpu.memory_space<vmem>>, vector<1x1x64xf32>
    %126 = vector.shape_cast %125 : vector<1x1x64xf32> to vector<1x64xf32>
    %127 = vector.broadcast %126 : vector<1x64xf32> to vector<16x64xf32>
    %128 = arith.addf %124, %127 : vector<16x64xf32>
    %129 = arith.mulf %128, %128 : vector<16x64xf32>
    %130 = arith.mulf %128, %129 : vector<16x64xf32>
    %cst_54 = arith.constant 4.471500e-02 : f32
    %131 = vector.broadcast %cst_54 : f32 to vector<16x64xf32>
    %132 = arith.mulf %131, %130 : vector<16x64xf32>
    %133 = arith.addf %128, %132 : vector<16x64xf32>
    %cst_55 = arith.constant 0.797884583 : f32
    %134 = vector.broadcast %cst_55 : f32 to vector<16x64xf32>
    %135 = arith.mulf %134, %133 : vector<16x64xf32>
    %136 = math.tanh %135 : vector<16x64xf32>
    %cst_56 = arith.constant 1.000000e+00 : f32
    %137 = vector.broadcast %cst_56 : f32 to vector<16x64xf32>
    %138 = arith.addf %137, %136 : vector<16x64xf32>
    %cst_57 = arith.constant 5.000000e-01 : f32
    %139 = vector.broadcast %cst_57 : f32 to vector<16x64xf32>
    %140 = arith.mulf %139, %138 : vector<16x64xf32>
    %141 = arith.mulf %128, %140 : vector<16x64xf32>
    %c0_58 = arith.constant 0 : index
    %c0_59 = arith.constant 0 : index
    %c0_60 = arith.constant 0 : index
    %142 = vector.load %arg11[%c0_58, %c0_59, %c0_60] : memref<2x64x32xbf16, #tpu.memory_space<vmem>>, vector<1x64x32xbf16>
    %143 = vector.shape_cast %142 : vector<1x64x32xbf16> to vector<64x32xbf16>
    %144 = arith.truncf %141 : vector<16x64xf32> to vector<16x64xbf16>
    %cst_61 = arith.constant dense<0.000000e+00> : vector<16x32xf32>
    %145 = tpu.matmul %144, %143, %cst_61 {dimension_numbers = #tpu.dot_dimension_numbers<[1], [0], [0], [1], [0, 0, 1, 1], [], []>} : vector<16x64xbf16>, vector<64x32xbf16>, vector<16x32xf32> -> vector<16x32xf32>
    %c0_62 = arith.constant 0 : index
    %c0_63 = arith.constant 0 : index
    %c0_64 = arith.constant 0 : index
    %146 = vector.load %arg12[%c0_62, %c0_63, %c0_64] : memref<2x1x32xf32, #tpu.memory_space<vmem>>, vector<1x1x32xf32>
    %147 = vector.shape_cast %146 : vector<1x1x32xf32> to vector<1x32xf32>
    %148 = vector.broadcast %147 : vector<1x32xf32> to vector<16x32xf32>
    %149 = arith.addf %145, %148 : vector<16x32xf32>
    %150 = arith.addf %149, %120 : vector<16x32xf32>
    %c0_65 = arith.constant 0 : index
    %c0_66 = arith.constant 0 : index
    %c0_67 = arith.constant 0 : index
    %151 = vector.load %arg13[%c0_65, %c0_66, %c0_67] : memref<2x1x32xf32, #tpu.memory_space<vmem>>, vector<1x1x32xf32>
    %152 = vector.shape_cast %151 : vector<1x1x32xf32> to vector<1x32xf32>
    %c0_68 = arith.constant 0 : index
    %c0_69 = arith.constant 0 : index
    %c0_70 = arith.constant 0 : index
    %153 = vector.load %arg14[%c0_68, %c0_69, %c0_70] : memref<2x1x32xf32, #tpu.memory_space<vmem>>, vector<1x1x32xf32>
    %154 = vector.shape_cast %153 : vector<1x1x32xf32> to vector<1x32xf32>
    %cst_71 = arith.constant dense<0.000000e+00> : vector<16xf32>
    %155 = vector.multi_reduction <add>, %150, %cst_71 [1] : vector<16x32xf32> to vector<16xf32>
    %156 = vector.shape_cast %155 : vector<16xf32> to vector<16x1xf32>
    %cst_72 = arith.constant 3.200000e+01 : f32
    %157 = vector.broadcast %cst_72 : f32 to vector<16x1xf32>
    %158 = arith.divf %156, %157 : vector<16x1xf32>
    %159 = vector.broadcast %158 : vector<16x1xf32> to vector<16x32xf32>
    %160 = arith.subf %150, %159 : vector<16x32xf32>
    %161 = arith.mulf %160, %160 : vector<16x32xf32>
    %cst_73 = arith.constant dense<0.000000e+00> : vector<16xf32>
    %162 = vector.multi_reduction <add>, %161, %cst_73 [1] : vector<16x32xf32> to vector<16xf32>
    %163 = vector.shape_cast %162 : vector<16xf32> to vector<16x1xf32>
    %cst_74 = arith.constant 3.200000e+01 : f32
    %164 = vector.broadcast %cst_74 : f32 to vector<16x1xf32>
    %165 = arith.divf %163, %164 : vector<16x1xf32>
    %166 = vector.broadcast %158 : vector<16x1xf32> to vector<16x32xf32>
    %167 = arith.subf %150, %166 : vector<16x32xf32>
    %cst_75 = arith.constant 9.99999996E-13 : f32
    %168 = vector.broadcast %cst_75 : f32 to vector<16x1xf32>
    %169 = arith.addf %165, %168 : vector<16x1xf32>
    %170 = math.rsqrt %169 : vector<16x1xf32>
    %171 = vector.broadcast %170 : vector<16x1xf32> to vector<16x32xf32>
    %172 = arith.mulf %167, %171 : vector<16x32xf32>
    %173 = vector.broadcast %152 : vector<1x32xf32> to vector<16x32xf32>
    %174 = arith.mulf %172, %173 : vector<16x32xf32>
    %175 = vector.broadcast %154 : vector<1x32xf32> to vector<16x32xf32>
    %176 = arith.addf %174, %175 : vector<16x32xf32>
    %c1 = arith.constant 1 : index
    %c0_76 = arith.constant 0 : index
    %c0_77 = arith.constant 0 : index
    %177 = vector.load %arg3[%c1, %c0_76, %c0_77] : memref<2x32x96xbf16, #tpu.memory_space<vmem>>, vector<1x32x96xbf16>
    %178 = vector.shape_cast %177 : vector<1x32x96xbf16> to vector<32x96xbf16>
    %179 = arith.truncf %176 : vector<16x32xf32> to vector<16x32xbf16>
    %cst_78 = arith.constant dense<0.000000e+00> : vector<16x96xf32>
    %180 = tpu.matmul %179, %178, %cst_78 {dimension_numbers = #tpu.dot_dimension_numbers<[1], [0], [0], [1], [0, 0, 1, 1], [], []>} : vector<16x32xbf16>, vector<32x96xbf16>, vector<16x96xf32> -> vector<16x96xf32>
    %c1_79 = arith.constant 1 : index
    %c0_80 = arith.constant 0 : index
    %c0_81 = arith.constant 0 : index
    %181 = vector.load %arg4[%c1_79, %c0_80, %c0_81] : memref<2x1x96xf32, #tpu.memory_space<vmem>>, vector<1x1x96xf32>
    %182 = vector.shape_cast %181 : vector<1x1x96xf32> to vector<1x96xf32>
    %183 = vector.broadcast %182 : vector<1x96xf32> to vector<16x96xf32>
    %184 = arith.addf %180, %183 : vector<16x96xf32>
    %185 = vector.extract_strided_slice %184 {offsets = [0, 0], sizes = [16, 16], strides = [1, 1]} : vector<16x96xf32> to vector<16x16xf32>
    %186 = vector.shape_cast %185 : vector<16x16xf32> to vector<2x8x16xf32>
    %187 = vector.extract_strided_slice %184 {offsets = [0, 32], sizes = [16, 16], strides = [1, 1]} : vector<16x96xf32> to vector<16x16xf32>
    %188 = vector.shape_cast %187 : vector<16x16xf32> to vector<2x8x16xf32>
    %189 = vector.extract_strided_slice %184 {offsets = [0, 64], sizes = [16, 16], strides = [1, 1]} : vector<16x96xf32> to vector<16x16xf32>
    %190 = vector.shape_cast %189 : vector<16x16xf32> to vector<2x8x16xf32>
    %191 = arith.truncf %186 : vector<2x8x16xf32> to vector<2x8x16xbf16>
    %192 = arith.truncf %188 : vector<2x8x16xf32> to vector<2x8x16xbf16>
    "tpu.trace_start"() <{level = 10 : i32, message = "bqd,bkd->bqk"}> : () -> ()
    %cst_82 = arith.constant dense<0.000000e+00> : vector<2x8x8xf32>
    %193 = tpu.matmul %191, %192, %cst_82 {dimension_numbers = #tpu.dot_dimension_numbers<[2], [2], [1], [1], [0, 0, 0, 1, 1, 1], [0], [0]>} : vector<2x8x16xbf16>, vector<2x8x16xbf16>, vector<2x8x8xf32> -> vector<2x8x8xf32>
    "tpu.trace_stop"() : () -> ()
    %cst_83 = arith.constant 2.500000e-01 : f32
    %194 = vector.broadcast %cst_83 : f32 to vector<2x8x8xf32>
    %195 = arith.mulf %193, %194 : vector<2x8x8xf32>
    %196 = vector.broadcast %25 : vector<2x1x8xf32> to vector<2x8x8xf32>
    %197 = arith.addf %195, %196 : vector<2x8x8xf32>
    %cst_84 = arith.constant dense<0xFF800000> : vector<2x8xf32>
    %198 = vector.multi_reduction <maximumf>, %197, %cst_84 [2] : vector<2x8x8xf32> to vector<2x8xf32>
    %199 = vector.shape_cast %198 : vector<2x8xf32> to vector<2x8x1xf32>
    %200 = vector.broadcast %199 : vector<2x8x1xf32> to vector<2x8x8xf32>
    %201 = arith.subf %197, %200 : vector<2x8x8xf32>
    %202 = math.exp %201 : vector<2x8x8xf32>
    %cst_85 = arith.constant dense<0.000000e+00> : vector<2x8xf32>
    %203 = vector.multi_reduction <add>, %202, %cst_85 [2] : vector<2x8x8xf32> to vector<2x8xf32>
    %204 = vector.shape_cast %203 : vector<2x8xf32> to vector<2x8x1xf32>
    %205 = vector.broadcast %204 : vector<2x8x1xf32> to vector<2x8x8xf32>
    %206 = arith.divf %202, %205 : vector<2x8x8xf32>
    %207 = arith.truncf %206 : vector<2x8x8xf32> to vector<2x8x8xbf16>
    %208 = arith.truncf %190 : vector<2x8x16xf32> to vector<2x8x16xbf16>
    "tpu.trace_start"() <{level = 10 : i32, message = "bqk,bkd->bqd"}> : () -> ()
    %cst_86 = arith.constant dense<0.000000e+00> : vector<2x8x16xf32>
    %209 = tpu.matmul %207, %208, %cst_86 {dimension_numbers = #tpu.dot_dimension_numbers<[2], [1], [1], [2], [0, 0, 0, 1, 1, 2], [0], [0]>} : vector<2x8x8xbf16>, vector<2x8x16xbf16>, vector<2x8x16xf32> -> vector<2x8x16xf32>
    "tpu.trace_stop"() : () -> ()
    %210 = vector.extract_strided_slice %184 {offsets = [0, 16], sizes = [16, 16], strides = [1, 1]} : vector<16x96xf32> to vector<16x16xf32>
    %211 = vector.shape_cast %210 : vector<16x16xf32> to vector<2x8x16xf32>
    %212 = vector.extract_strided_slice %184 {offsets = [0, 48], sizes = [16, 16], strides = [1, 1]} : vector<16x96xf32> to vector<16x16xf32>
    %213 = vector.shape_cast %212 : vector<16x16xf32> to vector<2x8x16xf32>
    %214 = vector.extract_strided_slice %184 {offsets = [0, 80], sizes = [16, 16], strides = [1, 1]} : vector<16x96xf32> to vector<16x16xf32>
    %215 = vector.shape_cast %214 : vector<16x16xf32> to vector<2x8x16xf32>
    %216 = arith.truncf %211 : vector<2x8x16xf32> to vector<2x8x16xbf16>
    %217 = arith.truncf %213 : vector<2x8x16xf32> to vector<2x8x16xbf16>
    "tpu.trace_start"() <{level = 10 : i32, message = "bqd,bkd->bqk"}> : () -> ()
    %cst_87 = arith.constant dense<0.000000e+00> : vector<2x8x8xf32>
    %218 = tpu.matmul %216, %217, %cst_87 {dimension_numbers = #tpu.dot_dimension_numbers<[2], [2], [1], [1], [0, 0, 0, 1, 1, 1], [0], [0]>} : vector<2x8x16xbf16>, vector<2x8x16xbf16>, vector<2x8x8xf32> -> vector<2x8x8xf32>
    "tpu.trace_stop"() : () -> ()
    %cst_88 = arith.constant 2.500000e-01 : f32
    %219 = vector.broadcast %cst_88 : f32 to vector<2x8x8xf32>
    %220 = arith.mulf %218, %219 : vector<2x8x8xf32>
    %221 = vector.broadcast %25 : vector<2x1x8xf32> to vector<2x8x8xf32>
    %222 = arith.addf %220, %221 : vector<2x8x8xf32>
    %cst_89 = arith.constant dense<0xFF800000> : vector<2x8xf32>
    %223 = vector.multi_reduction <maximumf>, %222, %cst_89 [2] : vector<2x8x8xf32> to vector<2x8xf32>
    %224 = vector.shape_cast %223 : vector<2x8xf32> to vector<2x8x1xf32>
    %225 = vector.broadcast %224 : vector<2x8x1xf32> to vector<2x8x8xf32>
    %226 = arith.subf %222, %225 : vector<2x8x8xf32>
    %227 = math.exp %226 : vector<2x8x8xf32>
    %cst_90 = arith.constant dense<0.000000e+00> : vector<2x8xf32>
    %228 = vector.multi_reduction <add>, %227, %cst_90 [2] : vector<2x8x8xf32> to vector<2x8xf32>
    %229 = vector.shape_cast %228 : vector<2x8xf32> to vector<2x8x1xf32>
    %230 = vector.broadcast %229 : vector<2x8x1xf32> to vector<2x8x8xf32>
    %231 = arith.divf %227, %230 : vector<2x8x8xf32>
    %232 = arith.truncf %231 : vector<2x8x8xf32> to vector<2x8x8xbf16>
    %233 = arith.truncf %215 : vector<2x8x16xf32> to vector<2x8x16xbf16>
    "tpu.trace_start"() <{level = 10 : i32, message = "bqk,bkd->bqd"}> : () -> ()
    %cst_91 = arith.constant dense<0.000000e+00> : vector<2x8x16xf32>
    %234 = tpu.matmul %232, %233, %cst_91 {dimension_numbers = #tpu.dot_dimension_numbers<[2], [1], [1], [2], [0, 0, 0, 1, 1, 2], [0], [0]>} : vector<2x8x8xbf16>, vector<2x8x16xbf16>, vector<2x8x16xf32> -> vector<2x8x16xf32>
    "tpu.trace_stop"() : () -> ()
    %235 = tpu.concatenate %209, %234 in 2 : vector<2x8x16xf32>, vector<2x8x16xf32> -> vector<2x8x32xf32>
    %236 = vector.shape_cast %235 : vector<2x8x32xf32> to vector<16x32xf32>
    %c1_92 = arith.constant 1 : index
    %c0_93 = arith.constant 0 : index
    %c0_94 = arith.constant 0 : index
    %237 = vector.load %arg5[%c1_92, %c0_93, %c0_94] : memref<2x32x32xbf16, #tpu.memory_space<vmem>>, vector<1x32x32xbf16>
    %238 = vector.shape_cast %237 : vector<1x32x32xbf16> to vector<32x32xbf16>
    %239 = arith.truncf %236 : vector<16x32xf32> to vector<16x32xbf16>
    %cst_95 = arith.constant dense<0.000000e+00> : vector<16x32xf32>
    %240 = tpu.matmul %239, %238, %cst_95 {dimension_numbers = #tpu.dot_dimension_numbers<[1], [0], [0], [1], [0, 0, 1, 1], [], []>} : vector<16x32xbf16>, vector<32x32xbf16>, vector<16x32xf32> -> vector<16x32xf32>
    %c1_96 = arith.constant 1 : index
    %c0_97 = arith.constant 0 : index
    %c0_98 = arith.constant 0 : index
    %241 = vector.load %arg6[%c1_96, %c0_97, %c0_98] : memref<2x1x32xf32, #tpu.memory_space<vmem>>, vector<1x1x32xf32>
    %242 = vector.shape_cast %241 : vector<1x1x32xf32> to vector<1x32xf32>
    %243 = vector.broadcast %242 : vector<1x32xf32> to vector<16x32xf32>
    %244 = arith.addf %240, %243 : vector<16x32xf32>
    %245 = arith.addf %244, %176 : vector<16x32xf32>
    %c1_99 = arith.constant 1 : index
    %c0_100 = arith.constant 0 : index
    %c0_101 = arith.constant 0 : index
    %246 = vector.load %arg7[%c1_99, %c0_100, %c0_101] : memref<2x1x32xf32, #tpu.memory_space<vmem>>, vector<1x1x32xf32>
    %247 = vector.shape_cast %246 : vector<1x1x32xf32> to vector<1x32xf32>
    %c1_102 = arith.constant 1 : index
    %c0_103 = arith.constant 0 : index
    %c0_104 = arith.constant 0 : index
    %248 = vector.load %arg8[%c1_102, %c0_103, %c0_104] : memref<2x1x32xf32, #tpu.memory_space<vmem>>, vector<1x1x32xf32>
    %249 = vector.shape_cast %248 : vector<1x1x32xf32> to vector<1x32xf32>
    %cst_105 = arith.constant dense<0.000000e+00> : vector<16xf32>
    %250 = vector.multi_reduction <add>, %245, %cst_105 [1] : vector<16x32xf32> to vector<16xf32>
    %251 = vector.shape_cast %250 : vector<16xf32> to vector<16x1xf32>
    %cst_106 = arith.constant 3.200000e+01 : f32
    %252 = vector.broadcast %cst_106 : f32 to vector<16x1xf32>
    %253 = arith.divf %251, %252 : vector<16x1xf32>
    %254 = vector.broadcast %253 : vector<16x1xf32> to vector<16x32xf32>
    %255 = arith.subf %245, %254 : vector<16x32xf32>
    %256 = arith.mulf %255, %255 : vector<16x32xf32>
    %cst_107 = arith.constant dense<0.000000e+00> : vector<16xf32>
    %257 = vector.multi_reduction <add>, %256, %cst_107 [1] : vector<16x32xf32> to vector<16xf32>
    %258 = vector.shape_cast %257 : vector<16xf32> to vector<16x1xf32>
    %cst_108 = arith.constant 3.200000e+01 : f32
    %259 = vector.broadcast %cst_108 : f32 to vector<16x1xf32>
    %260 = arith.divf %258, %259 : vector<16x1xf32>
    %261 = vector.broadcast %253 : vector<16x1xf32> to vector<16x32xf32>
    %262 = arith.subf %245, %261 : vector<16x32xf32>
    %cst_109 = arith.constant 9.99999996E-13 : f32
    %263 = vector.broadcast %cst_109 : f32 to vector<16x1xf32>
    %264 = arith.addf %260, %263 : vector<16x1xf32>
    %265 = math.rsqrt %264 : vector<16x1xf32>
    %266 = vector.broadcast %265 : vector<16x1xf32> to vector<16x32xf32>
    %267 = arith.mulf %262, %266 : vector<16x32xf32>
    %268 = vector.broadcast %247 : vector<1x32xf32> to vector<16x32xf32>
    %269 = arith.mulf %267, %268 : vector<16x32xf32>
    %270 = vector.broadcast %249 : vector<1x32xf32> to vector<16x32xf32>
    %271 = arith.addf %269, %270 : vector<16x32xf32>
    %c1_110 = arith.constant 1 : index
    %c0_111 = arith.constant 0 : index
    %c0_112 = arith.constant 0 : index
    %272 = vector.load %arg9[%c1_110, %c0_111, %c0_112] : memref<2x32x64xbf16, #tpu.memory_space<vmem>>, vector<1x32x64xbf16>
    %273 = vector.shape_cast %272 : vector<1x32x64xbf16> to vector<32x64xbf16>
    %274 = arith.truncf %271 : vector<16x32xf32> to vector<16x32xbf16>
    %cst_113 = arith.constant dense<0.000000e+00> : vector<16x64xf32>
    %275 = tpu.matmul %274, %273, %cst_113 {dimension_numbers = #tpu.dot_dimension_numbers<[1], [0], [0], [1], [0, 0, 1, 1], [], []>} : vector<16x32xbf16>, vector<32x64xbf16>, vector<16x64xf32> -> vector<16x64xf32>
    %c1_114 = arith.constant 1 : index
    %c0_115 = arith.constant 0 : index
    %c0_116 = arith.constant 0 : index
    %276 = vector.load %arg10[%c1_114, %c0_115, %c0_116] : memref<2x1x64xf32, #tpu.memory_space<vmem>>, vector<1x1x64xf32>
    %277 = vector.shape_cast %276 : vector<1x1x64xf32> to vector<1x64xf32>
    %278 = vector.broadcast %277 : vector<1x64xf32> to vector<16x64xf32>
    %279 = arith.addf %275, %278 : vector<16x64xf32>
    %280 = arith.mulf %279, %279 : vector<16x64xf32>
    %281 = arith.mulf %279, %280 : vector<16x64xf32>
    %cst_117 = arith.constant 4.471500e-02 : f32
    %282 = vector.broadcast %cst_117 : f32 to vector<16x64xf32>
    %283 = arith.mulf %282, %281 : vector<16x64xf32>
    %284 = arith.addf %279, %283 : vector<16x64xf32>
    %cst_118 = arith.constant 0.797884583 : f32
    %285 = vector.broadcast %cst_118 : f32 to vector<16x64xf32>
    %286 = arith.mulf %285, %284 : vector<16x64xf32>
    %287 = math.tanh %286 : vector<16x64xf32>
    %cst_119 = arith.constant 1.000000e+00 : f32
    %288 = vector.broadcast %cst_119 : f32 to vector<16x64xf32>
    %289 = arith.addf %288, %287 : vector<16x64xf32>
    %cst_120 = arith.constant 5.000000e-01 : f32
    %290 = vector.broadcast %cst_120 : f32 to vector<16x64xf32>
    %291 = arith.mulf %290, %289 : vector<16x64xf32>
    %292 = arith.mulf %279, %291 : vector<16x64xf32>
    %c1_121 = arith.constant 1 : index
    %c0_122 = arith.constant 0 : index
    %c0_123 = arith.constant 0 : index
    %293 = vector.load %arg11[%c1_121, %c0_122, %c0_123] : memref<2x64x32xbf16, #tpu.memory_space<vmem>>, vector<1x64x32xbf16>
    %294 = vector.shape_cast %293 : vector<1x64x32xbf16> to vector<64x32xbf16>
    %295 = arith.truncf %292 : vector<16x64xf32> to vector<16x64xbf16>
    %cst_124 = arith.constant dense<0.000000e+00> : vector<16x32xf32>
    %296 = tpu.matmul %295, %294, %cst_124 {dimension_numbers = #tpu.dot_dimension_numbers<[1], [0], [0], [1], [0, 0, 1, 1], [], []>} : vector<16x64xbf16>, vector<64x32xbf16>, vector<16x32xf32> -> vector<16x32xf32>
    %c1_125 = arith.constant 1 : index
    %c0_126 = arith.constant 0 : index
    %c0_127 = arith.constant 0 : index
    %297 = vector.load %arg12[%c1_125, %c0_126, %c0_127] : memref<2x1x32xf32, #tpu.memory_space<vmem>>, vector<1x1x32xf32>
    %298 = vector.shape_cast %297 : vector<1x1x32xf32> to vector<1x32xf32>
    %299 = vector.broadcast %298 : vector<1x32xf32> to vector<16x32xf32>
    %300 = arith.addf %296, %299 : vector<16x32xf32>
    %301 = arith.addf %300, %271 : vector<16x32xf32>
    %c1_128 = arith.constant 1 : index
    %c0_129 = arith.constant 0 : index
    %c0_130 = arith.constant 0 : index
    %302 = vector.load %arg13[%c1_128, %c0_129, %c0_130] : memref<2x1x32xf32, #tpu.memory_space<vmem>>, vector<1x1x32xf32>
    %303 = vector.shape_cast %302 : vector<1x1x32xf32> to vector<1x32xf32>
    %c1_131 = arith.constant 1 : index
    %c0_132 = arith.constant 0 : index
    %c0_133 = arith.constant 0 : index
    %304 = vector.load %arg14[%c1_131, %c0_132, %c0_133] : memref<2x1x32xf32, #tpu.memory_space<vmem>>, vector<1x1x32xf32>
    %305 = vector.shape_cast %304 : vector<1x1x32xf32> to vector<1x32xf32>
    %cst_134 = arith.constant dense<0.000000e+00> : vector<16xf32>
    %306 = vector.multi_reduction <add>, %301, %cst_134 [1] : vector<16x32xf32> to vector<16xf32>
    %307 = vector.shape_cast %306 : vector<16xf32> to vector<16x1xf32>
    %cst_135 = arith.constant 3.200000e+01 : f32
    %308 = vector.broadcast %cst_135 : f32 to vector<16x1xf32>
    %309 = arith.divf %307, %308 : vector<16x1xf32>
    %310 = vector.broadcast %309 : vector<16x1xf32> to vector<16x32xf32>
    %311 = arith.subf %301, %310 : vector<16x32xf32>
    %312 = arith.mulf %311, %311 : vector<16x32xf32>
    %cst_136 = arith.constant dense<0.000000e+00> : vector<16xf32>
    %313 = vector.multi_reduction <add>, %312, %cst_136 [1] : vector<16x32xf32> to vector<16xf32>
    %314 = vector.shape_cast %313 : vector<16xf32> to vector<16x1xf32>
    %cst_137 = arith.constant 3.200000e+01 : f32
    %315 = vector.broadcast %cst_137 : f32 to vector<16x1xf32>
    %316 = arith.divf %314, %315 : vector<16x1xf32>
    %317 = vector.broadcast %309 : vector<16x1xf32> to vector<16x32xf32>
    %318 = arith.subf %301, %317 : vector<16x32xf32>
    %cst_138 = arith.constant 9.99999996E-13 : f32
    %319 = vector.broadcast %cst_138 : f32 to vector<16x1xf32>
    %320 = arith.addf %316, %319 : vector<16x1xf32>
    %321 = math.rsqrt %320 : vector<16x1xf32>
    %322 = vector.broadcast %321 : vector<16x1xf32> to vector<16x32xf32>
    %323 = arith.mulf %318, %322 : vector<16x32xf32>
    %324 = vector.broadcast %303 : vector<1x32xf32> to vector<16x32xf32>
    %325 = arith.mulf %323, %324 : vector<16x32xf32>
    %326 = vector.broadcast %305 : vector<1x32xf32> to vector<16x32xf32>
    %327 = arith.addf %325, %326 : vector<16x32xf32>
    %c0_139 = arith.constant 0 : index
    %c0_140 = arith.constant 0 : index
    %328 = vector.load %arg15[%c0_139, %c0_140] : memref<32x8xbf16, #tpu.memory_space<vmem>>, vector<32x8xbf16>
    %329 = arith.truncf %327 : vector<16x32xf32> to vector<16x32xbf16>
    %cst_141 = arith.constant dense<0.000000e+00> : vector<16x8xf32>
    %330 = tpu.matmul %329, %328, %cst_141 {dimension_numbers = #tpu.dot_dimension_numbers<[1], [0], [0], [1], [0, 0, 1, 1], [], []>} : vector<16x32xbf16>, vector<32x8xbf16>, vector<16x8xf32> -> vector<16x8xf32>
    %c0_142 = arith.constant 0 : index
    %c0_143 = arith.constant 0 : index
    %331 = vector.load %arg16[%c0_142, %c0_143] : memref<1x8xf32, #tpu.memory_space<vmem>>, vector<1x8xf32>
    %332 = vector.broadcast %331 : vector<1x8xf32> to vector<16x8xf32>
    %333 = arith.addf %330, %332 : vector<16x8xf32>
    %334 = vector.shape_cast %333 : vector<16x8xf32> to vector<2x8x8xf32>
    %c0_144 = arith.constant 0 : index
    %c0_145 = arith.constant 0 : index
    %335 = vector.load %arg17[%c0_144, %c0_145] : memref<8x8xf32, #tpu.memory_space<vmem>>, vector<8x8xf32>
    %c0_146 = arith.constant 0 : index
    %c0_147 = arith.constant 0 : index
    %336 = vector.load %arg18[%c0_146, %c0_147] : memref<1x8xf32, #tpu.memory_space<vmem>>, vector<1x8xf32>
    %c0_148 = arith.constant 0 : index
    %c0_149 = arith.constant 0 : index
    %337 = vector.load %arg19[%c0_148, %c0_149] : memref<1x8xf32, #tpu.memory_space<vmem>>, vector<1x8xf32>
    %c0_150 = arith.constant 0 : index
    %c0_151 = arith.constant 0 : index
    %c0_152 = arith.constant 0 : index
    %338 = vector.load %arg22[%c0_150, %c0_151, %c0_152] : memref<2x8x8xf32, #tpu.memory_space<vmem>>, vector<2x8x8xf32>
    %c0_153 = arith.constant 0 : index
    %c0_154 = arith.constant 0 : index
    %c0_155 = arith.constant 0 : index
    %339 = vector.load %arg21[%c0_153, %c0_154, %c0_155] : memref<2x8x1xf32, #tpu.memory_space<vmem>>, vector<2x8x1xf32>
    %cst_156 = arith.constant dense<0xFF800000> : vector<8xf32>
    %340 = vector.multi_reduction <maximumf>, %335, %cst_156 [0] : vector<8x8xf32> to vector<8xf32>
    %341 = vector.shape_cast %340 : vector<8xf32> to vector<1x8xf32>
    %342 = vector.broadcast %341 : vector<1x8xf32> to vector<8x8xf32>
    %343 = arith.subf %335, %342 : vector<8x8xf32>
    %344 = math.exp %343 : vector<8x8xf32>
    %345 = arith.mulf %334, %338 : vector<2x8x8xf32>
    %cst_157 = arith.constant dense<0.000000e+00> : vector<2x8xf32>
    %346 = vector.multi_reduction <add>, %345, %cst_157 [2] : vector<2x8x8xf32> to vector<2x8xf32>
    %347 = vector.shape_cast %346 : vector<2x8xf32> to vector<2x8x1xf32>
    %348 = arith.mulf %347, %339 : vector<2x8x1xf32>
    %cst_158 = arith.constant dense<0.000000e+00> : vector<2x1xf32>
    %349 = vector.multi_reduction <add>, %348, %cst_158 [1] : vector<2x8x1xf32> to vector<2x1xf32>
    %350 = vector.extract_strided_slice %338 {offsets = [0, 0, 0], sizes = [2, 1, 8], strides = [1, 1, 1]} : vector<2x8x8xf32> to vector<2x1x8xf32>
    %351 = vector.shape_cast %350 : vector<2x1x8xf32> to vector<2x8xf32>
    %352 = vector.broadcast %336 : vector<1x8xf32> to vector<2x8xf32>
    %353 = arith.mulf %351, %352 : vector<2x8xf32>
    %cst_159 = arith.constant dense<0.000000e+00> : vector<2xf32>
    %354 = vector.multi_reduction <add>, %353, %cst_159 [1] : vector<2x8xf32> to vector<2xf32>
    %355 = vector.shape_cast %354 : vector<2xf32> to vector<2x1xf32>
    %356 = vector.extract_strided_slice %338 {offsets = [0, 0, 0], sizes = [2, 7, 8], strides = [1, 1, 1]} : vector<2x8x8xf32> to vector<2x7x8xf32>
    %357 = vector.shape_cast %356 : vector<2x7x8xf32> to vector<14x8xf32>
    %cst_160 = arith.constant dense<0.000000e+00> : vector<14x8xf32>
    %358 = tpu.matmul %357, %335, %cst_160 {dimension_numbers = #tpu.dot_dimension_numbers<[1], [0], [0], [1], [0, 0, 1, 1], [], []>} : vector<14x8xf32>, vector<8x8xf32>, vector<14x8xf32> -> vector<14x8xf32>
    %359 = vector.shape_cast %358 : vector<14x8xf32> to vector<2x7x8xf32>
    %360 = vector.extract_strided_slice %338 {offsets = [0, 1, 0], sizes = [2, 7, 8], strides = [1, 1, 1]} : vector<2x8x8xf32> to vector<2x7x8xf32>
    %361 = arith.mulf %359, %360 : vector<2x7x8xf32>
    %cst_161 = arith.constant dense<0.000000e+00> : vector<2x7xf32>
    %362 = vector.multi_reduction <add>, %361, %cst_161 [2] : vector<2x7x8xf32> to vector<2x7xf32>
    %363 = vector.shape_cast %362 : vector<2x7xf32> to vector<2x7x1xf32>
    %364 = vector.extract_strided_slice %339 {offsets = [0, 1, 0], sizes = [2, 7, 1], strides = [1, 1, 1]} : vector<2x8x1xf32> to vector<2x7x1xf32>
    %365 = arith.mulf %363, %364 : vector<2x7x1xf32>
    %cst_162 = arith.constant dense<0.000000e+00> : vector<2x1xf32>
    %366 = vector.multi_reduction <add>, %365, %cst_162 [1] : vector<2x7x1xf32> to vector<2x1xf32>
    %367 = tpu.iota {dimensions = array<i32: 1>} : vector<2x8x1xi32>
    %cst_163 = arith.constant dense<0.000000e+00> : vector<2x1xf32>
    %368 = vector.multi_reduction <add>, %339, %cst_163 [1] : vector<2x8x1xf32> to vector<2x1xf32>
    %369 = vector.shape_cast %368 : vector<2x1xf32> to vector<2x1x1xf32>
    %370 = arith.fptosi %369 : vector<2x1x1xf32> to vector<2x1x1xi32>
    %c1_i32 = arith.constant 1 : i32
    %371 = vector.broadcast %c1_i32 : i32 to vector<2x1x1xi32>
    %372 = arith.subi %370, %371 : vector<2x1x1xi32>
    %373 = vector.broadcast %372 : vector<2x1x1xi32> to vector<2x8x1xi32>
    %374 = arith.cmpi eq, %367, %373 : vector<2x8x1xi32>
    %375 = arith.extui %374 : vector<2x8x1xi1> to vector<2x8x1xi32>
    %376 = arith.sitofp %375 : vector<2x8x1xi32> to vector<2x8x1xf32>
    %377 = vector.broadcast %376 : vector<2x8x1xf32> to vector<2x8x8xf32>
    %378 = arith.mulf %338, %377 : vector<2x8x8xf32>
    %cst_164 = arith.constant dense<0.000000e+00> : vector<2x8xf32>
    %379 = vector.multi_reduction <add>, %378, %cst_164 [1] : vector<2x8x8xf32> to vector<2x8xf32>
    %380 = vector.broadcast %337 : vector<1x8xf32> to vector<2x8xf32>
    %381 = arith.mulf %379, %380 : vector<2x8xf32>
    %cst_165 = arith.constant dense<0.000000e+00> : vector<2xf32>
    %382 = vector.multi_reduction <add>, %381, %cst_165 [1] : vector<2x8xf32> to vector<2xf32>
    %383 = vector.shape_cast %382 : vector<2xf32> to vector<2x1xf32>
    %384 = arith.addf %349, %355 : vector<2x1xf32>
    %385 = arith.addf %384, %366 : vector<2x1xf32>
    %386 = arith.addf %385, %383 : vector<2x1xf32>
    %387 = vector.extract_strided_slice %334 {offsets = [0, 0, 0], sizes = [2, 1, 8], strides = [1, 1, 1]} : vector<2x8x8xf32> to vector<2x1x8xf32>
    %388 = vector.shape_cast %387 : vector<2x1x8xf32> to vector<2x8xf32>
    %389 = vector.broadcast %336 : vector<1x8xf32> to vector<2x8xf32>
    %390 = arith.addf %389, %388 : vector<2x8xf32>
    %cst_166 = arith.constant dense<0xFF800000> : vector<2xf32>
    %391 = vector.multi_reduction <maximumf>, %390, %cst_166 [1] : vector<2x8xf32> to vector<2xf32>
    %392 = vector.shape_cast %391 : vector<2xf32> to vector<2x1xf32>
    %393 = vector.broadcast %392 : vector<2x1xf32> to vector<2x8xf32>
    %394 = vector.broadcast %341 : vector<1x8xf32> to vector<2x8xf32>
    %395 = arith.addf %393, %394 : vector<2x8xf32>
    %396 = vector.broadcast %392 : vector<2x1xf32> to vector<2x8xf32>
    %397 = arith.subf %390, %396 : vector<2x8xf32>
    %398 = math.exp %397 : vector<2x8xf32>
    %cst_167 = arith.constant dense<0.000000e+00> : vector<2x8xf32>
    %399 = tpu.matmul %398, %344, %cst_167 {dimension_numbers = #tpu.dot_dimension_numbers<[1], [0], [0], [1], [0, 0, 1, 1], [], []>} : vector<2x8xf32>, vector<8x8xf32>, vector<2x8xf32> -> vector<2x8xf32>
    %400 = math.log %399 : vector<2x8xf32>
    %401 = arith.addf %395, %400 : vector<2x8xf32>
    %402 = vector.extract_strided_slice %334 {offsets = [0, 1, 0], sizes = [2, 1, 8], strides = [1, 1, 1]} : vector<2x8x8xf32> to vector<2x1x8xf32>
    %403 = vector.shape_cast %402 : vector<2x1x8xf32> to vector<2x8xf32>
    %404 = arith.addf %401, %403 : vector<2x8xf32>
    %405 = vector.extract_strided_slice %339 {offsets = [0, 1, 0], sizes = [2, 1, 1], strides = [1, 1, 1]} : vector<2x8x1xf32> to vector<2x1x1xf32>
    %406 = vector.shape_cast %405 : vector<2x1x1xf32> to vector<2x1xf32>
    %cst_168 = arith.constant 5.000000e-01 : f32
    %407 = vector.broadcast %cst_168 : f32 to vector<2x1xf32>
    %408 = arith.cmpf ogt, %406, %407 : vector<2x1xf32>
    %409 = vector.shape_cast %408 : vector<2x1xi1> to vector<2x1xi1>
    %410 = vector.broadcast %409 : vector<2x1xi1> to vector<2x8xi1>
    %411 = arith.select %410, %404, %390 : vector<2x8xi1>, vector<2x8xf32>
    %cst_169 = arith.constant dense<0xFF800000> : vector<2xf32>
    %412 = vector.multi_reduction <maximumf>, %411, %cst_169 [1] : vector<2x8xf32> to vector<2xf32>
    %413 = vector.shape_cast %412 : vector<2xf32> to vector<2x1xf32>
    %414 = vector.broadcast %413 : vector<2x1xf32> to vector<2x8xf32>
    %415 = vector.broadcast %341 : vector<1x8xf32> to vector<2x8xf32>
    %416 = arith.addf %414, %415 : vector<2x8xf32>
    %417 = vector.broadcast %413 : vector<2x1xf32> to vector<2x8xf32>
    %418 = arith.subf %411, %417 : vector<2x8xf32>
    %419 = math.exp %418 : vector<2x8xf32>
    %cst_170 = arith.constant dense<0.000000e+00> : vector<2x8xf32>
    %420 = tpu.matmul %419, %344, %cst_170 {dimension_numbers = #tpu.dot_dimension_numbers<[1], [0], [0], [1], [0, 0, 1, 1], [], []>} : vector<2x8xf32>, vector<8x8xf32>, vector<2x8xf32> -> vector<2x8xf32>
    %421 = math.log %420 : vector<2x8xf32>
    %422 = arith.addf %416, %421 : vector<2x8xf32>
    %423 = vector.extract_strided_slice %334 {offsets = [0, 2, 0], sizes = [2, 1, 8], strides = [1, 1, 1]} : vector<2x8x8xf32> to vector<2x1x8xf32>
    %424 = vector.shape_cast %423 : vector<2x1x8xf32> to vector<2x8xf32>
    %425 = arith.addf %422, %424 : vector<2x8xf32>
    %426 = vector.extract_strided_slice %339 {offsets = [0, 2, 0], sizes = [2, 1, 1], strides = [1, 1, 1]} : vector<2x8x1xf32> to vector<2x1x1xf32>
    %427 = vector.shape_cast %426 : vector<2x1x1xf32> to vector<2x1xf32>
    %cst_171 = arith.constant 5.000000e-01 : f32
    %428 = vector.broadcast %cst_171 : f32 to vector<2x1xf32>
    %429 = arith.cmpf ogt, %427, %428 : vector<2x1xf32>
    %430 = vector.shape_cast %429 : vector<2x1xi1> to vector<2x1xi1>
    %431 = vector.broadcast %430 : vector<2x1xi1> to vector<2x8xi1>
    %432 = arith.select %431, %425, %411 : vector<2x8xi1>, vector<2x8xf32>
    %cst_172 = arith.constant dense<0xFF800000> : vector<2xf32>
    %433 = vector.multi_reduction <maximumf>, %432, %cst_172 [1] : vector<2x8xf32> to vector<2xf32>
    %434 = vector.shape_cast %433 : vector<2xf32> to vector<2x1xf32>
    %435 = vector.broadcast %434 : vector<2x1xf32> to vector<2x8xf32>
    %436 = vector.broadcast %341 : vector<1x8xf32> to vector<2x8xf32>
    %437 = arith.addf %435, %436 : vector<2x8xf32>
    %438 = vector.broadcast %434 : vector<2x1xf32> to vector<2x8xf32>
    %439 = arith.subf %432, %438 : vector<2x8xf32>
    %440 = math.exp %439 : vector<2x8xf32>
    %cst_173 = arith.constant dense<0.000000e+00> : vector<2x8xf32>
    %441 = tpu.matmul %440, %344, %cst_173 {dimension_numbers = #tpu.dot_dimension_numbers<[1], [0], [0], [1], [0, 0, 1, 1], [], []>} : vector<2x8xf32>, vector<8x8xf32>, vector<2x8xf32> -> vector<2x8xf32>
    %442 = math.log %441 : vector<2x8xf32>
    %443 = arith.addf %437, %442 : vector<2x8xf32>
    %444 = vector.extract_strided_slice %334 {offsets = [0, 3, 0], sizes = [2, 1, 8], strides = [1, 1, 1]} : vector<2x8x8xf32> to vector<2x1x8xf32>
    %445 = vector.shape_cast %444 : vector<2x1x8xf32> to vector<2x8xf32>
    %446 = arith.addf %443, %445 : vector<2x8xf32>
    %447 = vector.extract_strided_slice %339 {offsets = [0, 3, 0], sizes = [2, 1, 1], strides = [1, 1, 1]} : vector<2x8x1xf32> to vector<2x1x1xf32>
    %448 = vector.shape_cast %447 : vector<2x1x1xf32> to vector<2x1xf32>
    %cst_174 = arith.constant 5.000000e-01 : f32
    %449 = vector.broadcast %cst_174 : f32 to vector<2x1xf32>
    %450 = arith.cmpf ogt, %448, %449 : vector<2x1xf32>
    %451 = vector.shape_cast %450 : vector<2x1xi1> to vector<2x1xi1>
    %452 = vector.broadcast %451 : vector<2x1xi1> to vector<2x8xi1>
    %453 = arith.select %452, %446, %432 : vector<2x8xi1>, vector<2x8xf32>
    %cst_175 = arith.constant dense<0xFF800000> : vector<2xf32>
    %454 = vector.multi_reduction <maximumf>, %453, %cst_175 [1] : vector<2x8xf32> to vector<2xf32>
    %455 = vector.shape_cast %454 : vector<2xf32> to vector<2x1xf32>
    %456 = vector.broadcast %455 : vector<2x1xf32> to vector<2x8xf32>
    %457 = vector.broadcast %341 : vector<1x8xf32> to vector<2x8xf32>
    %458 = arith.addf %456, %457 : vector<2x8xf32>
    %459 = vector.broadcast %455 : vector<2x1xf32> to vector<2x8xf32>
    %460 = arith.subf %453, %459 : vector<2x8xf32>
    %461 = math.exp %460 : vector<2x8xf32>
    %cst_176 = arith.constant dense<0.000000e+00> : vector<2x8xf32>
    %462 = tpu.matmul %461, %344, %cst_176 {dimension_numbers = #tpu.dot_dimension_numbers<[1], [0], [0], [1], [0, 0, 1, 1], [], []>} : vector<2x8xf32>, vector<8x8xf32>, vector<2x8xf32> -> vector<2x8xf32>
    %463 = math.log %462 : vector<2x8xf32>
    %464 = arith.addf %458, %463 : vector<2x8xf32>
    %465 = vector.extract_strided_slice %334 {offsets = [0, 4, 0], sizes = [2, 1, 8], strides = [1, 1, 1]} : vector<2x8x8xf32> to vector<2x1x8xf32>
    %466 = vector.shape_cast %465 : vector<2x1x8xf32> to vector<2x8xf32>
    %467 = arith.addf %464, %466 : vector<2x8xf32>
    %468 = vector.extract_strided_slice %339 {offsets = [0, 4, 0], sizes = [2, 1, 1], strides = [1, 1, 1]} : vector<2x8x1xf32> to vector<2x1x1xf32>
    %469 = vector.shape_cast %468 : vector<2x1x1xf32> to vector<2x1xf32>
    %cst_177 = arith.constant 5.000000e-01 : f32
    %470 = vector.broadcast %cst_177 : f32 to vector<2x1xf32>
    %471 = arith.cmpf ogt, %469, %470 : vector<2x1xf32>
    %472 = vector.shape_cast %471 : vector<2x1xi1> to vector<2x1xi1>
    %473 = vector.broadcast %472 : vector<2x1xi1> to vector<2x8xi1>
    %474 = arith.select %473, %467, %453 : vector<2x8xi1>, vector<2x8xf32>
    %cst_178 = arith.constant dense<0xFF800000> : vector<2xf32>
    %475 = vector.multi_reduction <maximumf>, %474, %cst_178 [1] : vector<2x8xf32> to vector<2xf32>
    %476 = vector.shape_cast %475 : vector<2xf32> to vector<2x1xf32>
    %477 = vector.broadcast %476 : vector<2x1xf32> to vector<2x8xf32>
    %478 = vector.broadcast %341 : vector<1x8xf32> to vector<2x8xf32>
    %479 = arith.addf %477, %478 : vector<2x8xf32>
    %480 = vector.broadcast %476 : vector<2x1xf32> to vector<2x8xf32>
    %481 = arith.subf %474, %480 : vector<2x8xf32>
    %482 = math.exp %481 : vector<2x8xf32>
    %cst_179 = arith.constant dense<0.000000e+00> : vector<2x8xf32>
    %483 = tpu.matmul %482, %344, %cst_179 {dimension_numbers = #tpu.dot_dimension_numbers<[1], [0], [0], [1], [0, 0, 1, 1], [], []>} : vector<2x8xf32>, vector<8x8xf32>, vector<2x8xf32> -> vector<2x8xf32>
    %484 = math.log %483 : vector<2x8xf32>
    %485 = arith.addf %479, %484 : vector<2x8xf32>
    %486 = vector.extract_strided_slice %334 {offsets = [0, 5, 0], sizes = [2, 1, 8], strides = [1, 1, 1]} : vector<2x8x8xf32> to vector<2x1x8xf32>
    %487 = vector.shape_cast %486 : vector<2x1x8xf32> to vector<2x8xf32>
    %488 = arith.addf %485, %487 : vector<2x8xf32>
    %489 = vector.extract_strided_slice %339 {offsets = [0, 5, 0], sizes = [2, 1, 1], strides = [1, 1, 1]} : vector<2x8x1xf32> to vector<2x1x1xf32>
    %490 = vector.shape_cast %489 : vector<2x1x1xf32> to vector<2x1xf32>
    %cst_180 = arith.constant 5.000000e-01 : f32
    %491 = vector.broadcast %cst_180 : f32 to vector<2x1xf32>
    %492 = arith.cmpf ogt, %490, %491 : vector<2x1xf32>
    %493 = vector.shape_cast %492 : vector<2x1xi1> to vector<2x1xi1>
    %494 = vector.broadcast %493 : vector<2x1xi1> to vector<2x8xi1>
    %495 = arith.select %494, %488, %474 : vector<2x8xi1>, vector<2x8xf32>
    %cst_181 = arith.constant dense<0xFF800000> : vector<2xf32>
    %496 = vector.multi_reduction <maximumf>, %495, %cst_181 [1] : vector<2x8xf32> to vector<2xf32>
    %497 = vector.shape_cast %496 : vector<2xf32> to vector<2x1xf32>
    %498 = vector.broadcast %497 : vector<2x1xf32> to vector<2x8xf32>
    %499 = vector.broadcast %341 : vector<1x8xf32> to vector<2x8xf32>
    %500 = arith.addf %498, %499 : vector<2x8xf32>
    %501 = vector.broadcast %497 : vector<2x1xf32> to vector<2x8xf32>
    %502 = arith.subf %495, %501 : vector<2x8xf32>
    %503 = math.exp %502 : vector<2x8xf32>
    %cst_182 = arith.constant dense<0.000000e+00> : vector<2x8xf32>
    %504 = tpu.matmul %503, %344, %cst_182 {dimension_numbers = #tpu.dot_dimension_numbers<[1], [0], [0], [1], [0, 0, 1, 1], [], []>} : vector<2x8xf32>, vector<8x8xf32>, vector<2x8xf32> -> vector<2x8xf32>
    %505 = math.log %504 : vector<2x8xf32>
    %506 = arith.addf %500, %505 : vector<2x8xf32>
    %507 = vector.extract_strided_slice %334 {offsets = [0, 6, 0], sizes = [2, 1, 8], strides = [1, 1, 1]} : vector<2x8x8xf32> to vector<2x1x8xf32>
    %508 = vector.shape_cast %507 : vector<2x1x8xf32> to vector<2x8xf32>
    %509 = arith.addf %506, %508 : vector<2x8xf32>
    %510 = vector.extract_strided_slice %339 {offsets = [0, 6, 0], sizes = [2, 1, 1], strides = [1, 1, 1]} : vector<2x8x1xf32> to vector<2x1x1xf32>
    %511 = vector.shape_cast %510 : vector<2x1x1xf32> to vector<2x1xf32>
    %cst_183 = arith.constant 5.000000e-01 : f32
    %512 = vector.broadcast %cst_183 : f32 to vector<2x1xf32>
    %513 = arith.cmpf ogt, %511, %512 : vector<2x1xf32>
    %514 = vector.shape_cast %513 : vector<2x1xi1> to vector<2x1xi1>
    %515 = vector.broadcast %514 : vector<2x1xi1> to vector<2x8xi1>
    %516 = arith.select %515, %509, %495 : vector<2x8xi1>, vector<2x8xf32>
    %cst_184 = arith.constant dense<0xFF800000> : vector<2xf32>
    %517 = vector.multi_reduction <maximumf>, %516, %cst_184 [1] : vector<2x8xf32> to vector<2xf32>
    %518 = vector.shape_cast %517 : vector<2xf32> to vector<2x1xf32>
    %519 = vector.broadcast %518 : vector<2x1xf32> to vector<2x8xf32>
    %520 = vector.broadcast %341 : vector<1x8xf32> to vector<2x8xf32>
    %521 = arith.addf %519, %520 : vector<2x8xf32>
    %522 = vector.broadcast %518 : vector<2x1xf32> to vector<2x8xf32>
    %523 = arith.subf %516, %522 : vector<2x8xf32>
    %524 = math.exp %523 : vector<2x8xf32>
    %cst_185 = arith.constant dense<0.000000e+00> : vector<2x8xf32>
    %525 = tpu.matmul %524, %344, %cst_185 {dimension_numbers = #tpu.dot_dimension_numbers<[1], [0], [0], [1], [0, 0, 1, 1], [], []>} : vector<2x8xf32>, vector<8x8xf32>, vector<2x8xf32> -> vector<2x8xf32>
    %526 = math.log %525 : vector<2x8xf32>
    %527 = arith.addf %521, %526 : vector<2x8xf32>
    %528 = vector.extract_strided_slice %334 {offsets = [0, 7, 0], sizes = [2, 1, 8], strides = [1, 1, 1]} : vector<2x8x8xf32> to vector<2x1x8xf32>
    %529 = vector.shape_cast %528 : vector<2x1x8xf32> to vector<2x8xf32>
    %530 = arith.addf %527, %529 : vector<2x8xf32>
    %531 = vector.extract_strided_slice %339 {offsets = [0, 7, 0], sizes = [2, 1, 1], strides = [1, 1, 1]} : vector<2x8x1xf32> to vector<2x1x1xf32>
    %532 = vector.shape_cast %531 : vector<2x1x1xf32> to vector<2x1xf32>
    %cst_186 = arith.constant 5.000000e-01 : f32
    %533 = vector.broadcast %cst_186 : f32 to vector<2x1xf32>
    %534 = arith.cmpf ogt, %532, %533 : vector<2x1xf32>
    %535 = vector.shape_cast %534 : vector<2x1xi1> to vector<2x1xi1>
    %536 = vector.broadcast %535 : vector<2x1xi1> to vector<2x8xi1>
    %537 = arith.select %536, %530, %516 : vector<2x8xi1>, vector<2x8xf32>
    %538 = vector.broadcast %337 : vector<1x8xf32> to vector<2x8xf32>
    %539 = arith.addf %537, %538 : vector<2x8xf32>
    %cst_187 = arith.constant dense<0xFF800000> : vector<2xf32>
    %540 = vector.multi_reduction <maximumf>, %539, %cst_187 [1] : vector<2x8xf32> to vector<2xf32>
    %541 = vector.shape_cast %540 : vector<2xf32> to vector<2x1xf32>
    %542 = vector.broadcast %541 : vector<2x1xf32> to vector<2x8xf32>
    %543 = arith.subf %539, %542 : vector<2x8xf32>
    %544 = math.exp %543 : vector<2x8xf32>
    %cst_188 = arith.constant dense<0.000000e+00> : vector<2xf32>
    %545 = vector.multi_reduction <add>, %544, %cst_188 [1] : vector<2x8xf32> to vector<2xf32>
    %546 = vector.shape_cast %545 : vector<2xf32> to vector<2x1xf32>
    %547 = math.log %546 : vector<2x1xf32>
    %548 = arith.addf %541, %547 : vector<2x1xf32>
    %549 = arith.subf %548, %386 : vector<2x1xf32>
    %cst_189 = arith.constant dense<0.000000e+00> : vector<1xf32>
    %550 = vector.multi_reduction <add>, %549, %cst_189 [0] : vector<2x1xf32> to vector<1xf32>
    %551 = vector.shape_cast %550 : vector<1xf32> to vector<1x1xf32>
    %c0_190 = arith.constant 0 : index
    %c0_191 = arith.constant 0 : index
    %552 = vector.load %arg23[%c0_190, %c0_191] : memref<1x1xf32, #tpu.memory_space<vmem>>, vector<1x1xf32>
    tpu.vector_store %arg23[%c0_190, %c0_191], %551 {strides = array<i32>} : memref<1x1xf32, #tpu.memory_space<vmem>>, vector<1x1xf32>,
    return
  }
}

</mosaic_0001>

<llo_original>
// kernel: bert_crf_forward.1
$region0: #{bert_crf_forward.1}
  #allocation0 [shape = 'u32[]', space=smem, size = 0x4, offset = 0x4, fixed_abs, tag = 'smem constant byte address 0x4 - core index']
  #allocation1 [shape = 'u32[144,128]{1,0:T(1,128)}', space=vmem, size = 0x12000, scoped, tag = 'internal scratch']
  %s0 = inlined_call_operand.vmem [shape: f32[16,32], index: 0, kind: input, shape index: {}]
  %s1 = inlined_call_operand.vmem [shape: f32[1,32], index: 1, kind: input, shape index: {}]
  %s2 = inlined_call_operand.vmem [shape: f32[1,32], index: 2, kind: input, shape index: {}]
  %s3 = inlined_call_operand.vmem [shape: bf16[2,32,96], index: 3, kind: input, shape index: {}]
  %s4 = inlined_call_operand.vmem [shape: f32[2,1,96], index: 4, kind: input, shape index: {}]
  %s5 = inlined_call_operand.vmem [shape: bf16[2,32,32], index: 5, kind: input, shape index: {}]
  %s6 = inlined_call_operand.vmem [shape: f32[2,1,32], index: 6, kind: input, shape index: {}]
  %s7 = inlined_call_operand.vmem [shape: f32[2,1,32], index: 7, kind: input, shape index: {}]
  %s8 = inlined_call_operand.vmem [shape: f32[2,1,32], index: 8, kind: input, shape index: {}]
  %s9 = inlined_call_operand.vmem [shape: bf16[2,32,64], index: 9, kind: input, shape index: {}]
  %s10 = inlined_call_operand.vmem [shape: f32[2,1,64], index: 10, kind: input, shape index: {}]
  %s11 = inlined_call_operand.vmem [shape: bf16[2,64,32], index: 11, kind: input, shape index: {}]
  %s12 = inlined_call_operand.vmem [shape: f32[2,1,32], index: 12, kind: input, shape index: {}]
  %s13 = inlined_call_operand.vmem [shape: f32[2,1,32], index: 13, kind: input, shape index: {}]
  %s14 = inlined_call_operand.vmem [shape: f32[2,1,32], index: 14, kind: input, shape index: {}]
  %s15 = inlined_call_operand.vmem [shape: bf16[32,8], index: 15, kind: input, shape index: {}]
  %s16 = inlined_call_operand.vmem [shape: f32[1,8], index: 16, kind: input, shape index: {}]
  %s17 = inlined_call_operand.vmem [shape: f32[8,8], index: 17, kind: input, shape index: {}]
  %s18 = inlined_call_operand.vmem [shape: f32[1,8], index: 18, kind: input, shape index: {}]
  %s19 = inlined_call_operand.vmem [shape: f32[1,8], index: 19, kind: input, shape index: {}]
  %s20 = inlined_call_operand.vmem [shape: f32[2,1,8], index: 20, kind: input, shape index: {}]
  %s21 = inlined_call_operand.vmem [shape: f32[2,8,1], index: 21, kind: input, shape index: {}]
  %s22 = inlined_call_operand.vmem [shape: f32[2,8,8], index: 22, kind: input, shape index: {}]
  %s23 = inlined_call_operand.hbm [shape: f32[1,1], index: 23, kind: output, shape index: {}]
  %s24 = sld [smem:[#allocation0]]
  $region102: #{bert_crf_forward.1} parent=0
    _
  %s26 = ssub.s32 1, %s24
  %s27 = scalar_select 0, %s26, %s24
  $region1: #{bert_crf_forward.1} parent=0
    #allocation2 [shape = 'u8[512]{0}', space=vmem, size = 0x400, scoped, tag = 'output window, operand 0, single buffered']
    #allocation3 [shape = 's32[1]{0}', space=sflag, size = 0x4, scoped, tag = 'scoped memory for bert_crf_forward.1']
    %28 = vsyncpa [#allocation3], 0
    // Predicated region
    $region2: #{bert_crf_forward.1} parent=1 // pred_check
      _
    $region3: #{bert_crf_forward.1} parent=1 // pred_check_branch
      %30 = sbr.rel (0) target = $region5
    $region4: #{bert_crf_forward.1} parent=1 // pred_region
      _
    $region5: #{bert_crf_forward.1} parent=1 // pred_fallthru
      _
    // Predicated region
    $region6: #{bert_crf_forward.1} parent=1 // pred_check
      _
    $region7: #{bert_crf_forward.1} parent=1 // pred_check_branch
      %32 = sbr.rel (0) target = $region9
    $region8: #{bert_crf_forward.1} parent=1 // pred_region
      _
    $region9: #{bert_crf_forward.1} parent=1 // pred_fallthru
      _
    // Predicated region
    $region10: #{bert_crf_forward.1} parent=1 // pred_check
      _
    $region11: #{bert_crf_forward.1} parent=1 // pred_check_branch
      %34 = sbr.rel (0) target = $region13
    $region12: #{bert_crf_forward.1} parent=1 // pred_region
      _
    $region13: #{bert_crf_forward.1} parent=1 // pred_fallthru
      _
    // Predicated region
    $region14: #{bert_crf_forward.1} parent=1 // pred_check
      _
    $region15: #{bert_crf_forward.1} parent=1 // pred_check_branch
      %36 = sbr.rel (0) target = $region17
    $region16: #{bert_crf_forward.1} parent=1 // pred_region
      _
    $region17: #{bert_crf_forward.1} parent=1 // pred_fallthru
      _
    // Predicated region
    $region18: #{bert_crf_forward.1} parent=1 // pred_check
      _
    $region19: #{bert_crf_forward.1} parent=1 // pred_check_branch
      %38 = sbr.rel (0) target = $region21
    $region20: #{bert_crf_forward.1} parent=1 // pred_region
      _
    $region21: #{bert_crf_forward.1} parent=1 // pred_fallthru
      _
    // Predicated region
    $region22: #{bert_crf_forward.1} parent=1 // pred_check
      _
    $region23: #{bert_crf_forward.1} parent=1 // pred_check_branch
      %40 = sbr.rel (0) target = $region25
    $region24: #{bert_crf_forward.1} parent=1 // pred_region
      _
    $region25: #{bert_crf_forward.1} parent=1 // pred_fallthru
      _
    // Predicated region
    $region26: #{bert_crf_forward.1} parent=1 // pred_check
      _
    $region27: #{bert_crf_forward.1} parent=1 // pred_check_branch
      %42 = sbr.rel (0) target = $region29
    $region28: #{bert_crf_forward.1} parent=1 // pred_region
      _
    $region29: #{bert_crf_forward.1} parent=1 // pred_fallthru
      _
    // Predicated region
    $region30: #{bert_crf_forward.1} parent=1 // pred_check
      _
    $region31: #{bert_crf_forward.1} parent=1 // pred_check_branch
      %44 = sbr.rel (0) target = $region33
    $region32: #{bert_crf_forward.1} parent=1 // pred_region
      _
    $region33: #{bert_crf_forward.1} parent=1 // pred_fallthru
      _
    // Predicated region
    $region34: #{bert_crf_forward.1} parent=1 // pred_check
      _
    $region35: #{bert_crf_forward.1} parent=1 // pred_check_branch
      %46 = sbr.rel (0) target = $region37
    $region36: #{bert_crf_forward.1} parent=1 // pred_region
      _
    $region37: #{bert_crf_forward.1} parent=1 // pred_fallthru
      _
    // Predicated region
    $region38: #{bert_crf_forward.1} parent=1 // pred_check
      _
    $region39: #{bert_crf_forward.1} parent=1 // pred_check_branch
      %48 = sbr.rel (0) target = $region41
    $region40: #{bert_crf_forward.1} parent=1 // pred_region
      _
    $region41: #{bert_crf_forward.1} parent=1 // pred_fallthru
      _
    // Predicated region
    $region42: #{bert_crf_forward.1} parent=1 // pred_check
      _
    $region43: #{bert_crf_forward.1} parent=1 // pred_check_branch
      %50 = sbr.rel (0) target = $region45
    $region44: #{bert_crf_forward.1} parent=1 // pred_region
      _
    $region45: #{bert_crf_forward.1} parent=1 // pred_fallthru
      _
    // Predicated region
    $region46: #{bert_crf_forward.1} parent=1 // pred_check
      _
    $region47: #{bert_crf_forward.1} parent=1 // pred_check_branch
      %52 = sbr.rel (0) target = $region49
    $region48: #{bert_crf_forward.1} parent=1 // pred_region
      _
    $region49: #{bert_crf_forward.1} parent=1 // pred_fallthru
      _
    // Predicated region
    $region50: #{bert_crf_forward.1} parent=1 // pred_check
      _
    $region51: #{bert_crf_forward.1} parent=1 // pred_check_branch
      %54 = sbr.rel (0) target = $region53
    $region52: #{bert_crf_forward.1} parent=1 // pred_region
      _
    $region53: #{bert_crf_forward.1} parent=1 // pred_fallthru
      _
    // Predicated region
    $region54: #{bert_crf_forward.1} parent=1 // pred_check
      _
    $region55: #{bert_crf_forward.1} parent=1 // pred_check_branch
      %56 = sbr.rel (0) target = $region57
    $region56: #{bert_crf_forward.1} parent=1 // pred_region
      _
    $region57: #{bert_crf_forward.1} parent=1 // pred_fallthru
      _
    // Predicated region
    $region58: #{bert_crf_forward.1} parent=1 // pred_check
      _
    $region59: #{bert_crf_forward.1} parent=1 // pred_check_branch
      %58 = sbr.rel (0) target = $region61
    $region60: #{bert_crf_forward.1} parent=1 // pred_region
      _
    $region61: #{bert_crf_forward.1} parent=1 // pred_fallthru
      _
    // Predicated region
    $region62: #{bert_crf_forward.1} parent=1 // pred_check
      _
    $region63: #{bert_crf_forward.1} parent=1 // pred_check_branch
      %60 = sbr.rel (0) target = $region65
    $region64: #{bert_crf_forward.1} parent=1 // pred_region
      _
    $region65: #{bert_crf_forward.1} parent=1 // pred_fallthru
      _
    // Predicated region
    $region66: #{bert_crf_forward.1} parent=1 // pred_check
      _
    $region67: #{bert_crf_forward.1} parent=1 // pred_check_branch
      %62 = sbr.rel (0) target = $region69
    $region68: #{bert_crf_forward.1} parent=1 // pred_region
      _
    $region69: #{bert_crf_forward.1} parent=1 // pred_fallthru
      _
    // Predicated region
    $region70: #{bert_crf_forward.1} parent=1 // pred_check
      _
    $region71: #{bert_crf_forward.1} parent=1 // pred_check_branch
      %64 = sbr.rel (0) target = $region73
    $region72: #{bert_crf_forward.1} parent=1 // pred_region
      _
    $region73: #{bert_crf_forward.1} parent=1 // pred_fallthru
      _
    // Predicated region
    $region74: #{bert_crf_forward.1} parent=1 // pred_check
      _
    $region75: #{bert_crf_forward.1} parent=1 // pred_check_branch
      %66 = sbr.rel (0) target = $region77
    $region76: #{bert_crf_forward.1} parent=1 // pred_region
      _
    $region77: #{bert_crf_forward.1} parent=1 // pred_fallthru
      _
    // Predicated region
    $region78: #{bert_crf_forward.1} parent=1 // pred_check
      _
    $region79: #{bert_crf_forward.1} parent=1 // pred_check_branch
      %68 = sbr.rel (0) target = $region81
    $region80: #{bert_crf_forward.1} parent=1 // pred_region
      _
    $region81: #{bert_crf_forward.1} parent=1 // pred_fallthru
      _
    // Predicated region
    $region82: #{bert_crf_forward.1} parent=1 // pred_check
      _
    $region83: #{bert_crf_forward.1} parent=1 // pred_check_branch
      %70 = sbr.rel (0) target = $region85
    $region84: #{bert_crf_forward.1} parent=1 // pred_region
      _
    $region85: #{bert_crf_forward.1} parent=1 // pred_fallthru
      _
    // Predicated region
    $region86: #{bert_crf_forward.1} parent=1 // pred_check
      _
    $region87: #{bert_crf_forward.1} parent=1 // pred_check_branch
      %72 = sbr.rel (0) target = $region89
    $region88: #{bert_crf_forward.1} parent=1 // pred_region
      _
    $region89: #{bert_crf_forward.1} parent=1 // pred_fallthru
      _
    // Predicated region
    $region90: #{bert_crf_forward.1} parent=1 // pred_check
      _
    $region91: #{bert_crf_forward.1} parent=1 // pred_check_branch
      %74 = sbr.rel (0) target = $region93
    $region92: #{bert_crf_forward.1} parent=1 // pred_region
      _
    $region93: #{bert_crf_forward.1} parent=1 // pred_fallthru
      _
    %v76 = vld [vmem:[%s0] sm:$0xff]
    %v77 = vld [vmem:[%s0 + $0x8] sm:$0xff]
    %v78 = vld [vmem:[%s1] sm:$0x1]
    %v79 = vld [vmem:[%s2] sm:$0x1]
    %vm80 = vcmask 261120
    %v81 = vsel %vm80, %v76, 0.0
    %82 = vadd.xlane.f32.xlu0 %v81
    %v83 = vpop.xlane.xlu0 %82
    %v84 = vsel %vm80, %v77, 0.0
    %85 = vadd.xlane.f32.xlu0 %v84
    %v86 = vpop.xlane.xlu0 %85
    %v87 = vrcp.pop 32.0
    %v88 = vmul.f32 %v83, %v87
    %v89 = vmul.f32 %v86, %v87
    %v90 = vsub.f32 %v76, %v88
    %v91 = vsub.f32 %v77, %v89
    %v92 = vmul.f32 %v90, %v90
    %v93 = vmul.f32 %v91, %v91
    %v94 = vsel %vm80, %v92, 0.0
    %95 = vadd.xlane.f32.xlu0 %v94
    %v96 = vpop.xlane.xlu0 %95
    %v97 = vsel %vm80, %v93, 0.0
    %98 = vadd.xlane.f32.xlu0 %v97
    %v99 = vpop.xlane.xlu0 %98
    %v100 = vmul.f32 %v96, %v87
    %v101 = vmul.f32 %v99, %v87
    %v102 = vadd.f32 %v100, 1e-12
    %v103 = vadd.f32 %v101, 1e-12
    %v104 = vrsqrt.pop %v102
    %v105 = vrsqrt.pop %v103
    %v106 = vmul.f32 %v90, %v104
    %v107 = vmul.f32 %v91, %v105
    %v109 = vlaneseq
    %v110 = vshrl.u32 %v109, 7
    %v111 = vsub.s32 0, %v110
    %v112 = vrot.slane %v78, %v111
    %v114 = vmul.f32 %v106, %v112
    %v115 = vmul.f32 %v107, %v112
    %v117 = vlaneseq
    %v118 = vshrl.u32 %v117, 7
    %v119 = vsub.s32 0, %v118
    %v120 = vrot.slane %v79, %v119
    %v122 = vadd.f32 %v114, %v120
    %v123 = vadd.f32 %v115, %v120
    %v124 = vld [vmem:[%s20] sm:$0x1]
    %v125 = vld [vmem:[%s20 + $0x1] sm:$0x1]
    %v126 = vld [vmem:[%s3] sm:$0xf]
    %v127 = vld [vmem:[%s3 + $0x4] sm:$0xf]
    %v128 = vld [vmem:[%s3 + $0x8] sm:$0xf]
    %v129 = vld [vmem:[%s3 + $0xc] sm:$0xf]
    %v130 = vpack.c.bf16 %v123, %v122
    %v131 = vld [vmem:[%s4] sm:$0x1]
    %v133 = vlaneseq
    %v134 = vshrl.u32 %v133, 7
    %v135 = vsub.s32 0, %v134
    %v136 = vrot.slane %v131, %v135
    %v142 = vunpack.c.l.b16 %v126
    %v143 = vunpack.c.l.b16 %v127
    %v144 = vunpack.c.l.b16 %v128
    %v145 = vunpack.c.l.b16 %v129
    %v146 = vpack.c.b16 %v143, %v142
    %v147 = vpack.c.b16 %v145, %v144
    %v151 = vsel %vm80, %v130, 0
    %153 = vmatprep.subr.bf16.mxu0 0
    %154 = vmatpush1.bf16.msra.mxu0 0
    %155 = vmatprep.subr.bf16.mxu0 0
    %156 = vmatpush1.bf16.msra.mxu0 0
    %157 = vmatprep.subr.bf16.mxu0 0
    %158 = vmatpush1.bf16.msra.mxu0 0
    %159 = vmatprep.subr.bf16.mxu0 0
    %160 = vmatpush1.bf16.msra.mxu0 0
    %161 = vmatprep.subr.bf16.mxu0 0
    %162 = vmatpush1.bf16.msra.mxu0 0
    %163 = vmatprep.subr.bf16.mxu0 0
    %164 = vmatpush1.bf16.msra.mxu0 0
    %165 = vmatprep.subr.bf16.mxu0 0
    %166 = vmatpush1.bf16.msra.mxu0 %v147
    %167 = vmatprep.subr.bf16.mxu0 0
    %168 = vmatpush1.bf16.msra.mxu0 %v146
    %169 = vmatprep.subr.bf16.mxu0 0
    %170 = vmatpush2.bf16.msra.mxu0 0
    %171 = vmatprep.subr.bf16.mxu0 0
    %172 = vmatpush2.bf16.msra.mxu0 0
    %173 = vmatprep.subr.bf16.mxu0 0
    %174 = vmatpush2.bf16.msra.mxu0 0
    %175 = vmatprep.subr.bf16.mxu0 0
    %176 = vmatpush2.bf16.msra.mxu0 0
    %177 = vmatprep.subr.bf16.mxu0 0
    %178 = vmatpush2.bf16.msra.mxu0 0
    %179 = vmatprep.subr.bf16.mxu0 0
    %180 = vmatpush2.bf16.msra.mxu0 0
    %181 = vmatprep.subr.bf16.mxu0 0
    %182 = vmatpush2.bf16.msra.mxu0 0
    %183 = vmatprep.subr.bf16.mxu0 0
    %184 = vmatpush2.bf16.msra.mxu0 0
    %185 = vmatprep.mubr.bf16.mxu0 0
    %186 = vmatmul.mubr.bf16.gmra.mxu0 %v151
    %v187 = vpop.f32.mrf.mxu0
    %v188 = vadd.f32 %v136, %v187
    %v189 = vpop.f32.mrf.mxu0
    %v190 = vpop.f32.mrf.mxu0
    %v191 = vadd.f32 %v136, %v190
    %v192 = vpop.f32.mrf.mxu0
    %193 = vdwg.mxu0
    %v194 = vpack.c.bf16 %v188, %v188
    %v195 = vpack.c.bf16 %v191, %v191
    %197 = vrot.lane.b32.xlu0 %v194, 96
    %v198 = vpop.permute.xlu0 %197
    %vm199 = vcmask 130048
    %v201 = vsel %vm199, %v194, 0
    %v204 = vsel %vm199, %v198, 0
    %206 = vmatprep.subr.bf16.mxu0 0
    %207 = vmatpush1.bf16.xpose.msra.mxu0 0
    %208 = vmatprep.subr.bf16.mxu0 0
    %209 = vmatpush1.bf16.xpose.msra.mxu0 0
    %210 = vmatprep.subr.bf16.mxu0 0
    %211 = vmatpush1.bf16.xpose.msra.mxu0 0
    %212 = vmatprep.subr.bf16.mxu0 0
    %213 = vmatpush1.bf16.xpose.msra.mxu0 0
    %214 = vmatprep.subr.bf16.mxu0 0
    %215 = vmatpush1.bf16.xpose.msra.mxu0 0
    %216 = vmatprep.subr.bf16.mxu0 0
    %217 = vmatpush1.bf16.xpose.msra.mxu0 0
    %218 = vmatprep.subr.bf16.mxu0 0
    %219 = vmatpush1.bf16.xpose.msra.mxu0 0
    %220 = vmatprep.subr.bf16.mxu0 0
    %221 = vmatpush1.bf16.xpose.msra.mxu0 %v204
    %222 = vmatprep.subr.bf16.mxu0 0
    %223 = vmatpush2.bf16.xpose.msra.mxu0 0
    %224 = vmatprep.subr.bf16.mxu0 0
    %225 = vmatpush2.bf16.xpose.msra.mxu0 0
    %226 = vmatprep.subr.bf16.mxu0 0
    %227 = vmatpush2.bf16.xpose.msra.mxu0 0
    %228 = vmatprep.subr.bf16.mxu0 0
    %229 = vmatpush2.bf16.xpose.msra.mxu0 0
    %230 = vmatprep.subr.bf16.mxu0 0
    %231 = vmatpush2.bf16.xpose.msra.mxu0 0
    %232 = vmatprep.subr.bf16.mxu0 0
    %233 = vmatpush2.bf16.xpose.msra.mxu0 0
    %234 = vmatprep.subr.bf16.mxu0 0
    %235 = vmatpush2.bf16.xpose.msra.mxu0 0
    %236 = vmatprep.subr.bf16.mxu0 0
    %237 = vmatpush2.bf16.xpose.msra.mxu0 0
    %238 = vmatprep.mubr.bf16.mxu0 0
    %239 = vmatmul.mubr.bf16.gmra.mxu0 %v201
    %v240 = vpop.f32.mrf.mxu0
    %v241 = vadd.f32 0.0, %v240
    %v242 = vpop.f32.mrf.mxu0
    %v243 = vpop.f32.mrf.mxu0
    %v244 = vpop.f32.mrf.mxu0
    %245 = vdwg.mxu0
    %247 = vrot.lane.b32.xlu0 %v195, 96
    %v248 = vpop.permute.xlu0 %247
    %v250 = vsel %vm199, %v195, 0
    %v253 = vsel %vm199, %v248, 0
    %255 = vmatprep.subr.bf16.mxu0 0
    %256 = vmatpush1.bf16.xpose.msra.mxu0 0
    %257 = vmatprep.subr.bf16.mxu0 0
    %258 = vmatpush1.bf16.xpose.msra.mxu0 0
    %259 = vmatprep.subr.bf16.mxu0 0
    %260 = vmatpush1.bf16.xpose.msra.mxu0 0
    %261 = vmatprep.subr.bf16.mxu0 0
    %262 = vmatpush1.bf16.xpose.msra.mxu0 0
    %263 = vmatprep.subr.bf16.mxu0 0
    %264 = vmatpush1.bf16.xpose.msra.mxu0 0
    %265 = vmatprep.subr.bf16.mxu0 0
    %266 = vmatpush1.bf16.xpose.msra.mxu0 0
    %267 = vmatprep.subr.bf16.mxu0 0
    %268 = vmatpush1.bf16.xpose.msra.mxu0 0
    %269 = vmatprep.subr.bf16.mxu0 0
    %270 = vmatpush1.bf16.xpose.msra.mxu0 %v253
    %271 = vmatprep.subr.bf16.mxu0 0
    %272 = vmatpush2.bf16.xpose.msra.mxu0 0
    %273 = vmatprep.subr.bf16.mxu0 0
    %274 = vmatpush2.bf16.xpose.msra.mxu0 0
    %275 = vmatprep.subr.bf16.mxu0 0
    %276 = vmatpush2.bf16.xpose.msra.mxu0 0
    %277 = vmatprep.subr.bf16.mxu0 0
    %278 = vmatpush2.bf16.xpose.msra.mxu0 0
    %279 = vmatprep.subr.bf16.mxu0 0
    %280 = vmatpush2.bf16.xpose.msra.mxu0 0
    %281 = vmatprep.subr.bf16.mxu0 0
    %282 = vmatpush2.bf16.xpose.msra.mxu0 0
    %283 = vmatprep.subr.bf16.mxu0 0
    %284 = vmatpush2.bf16.xpose.msra.mxu0 0
    %285 = vmatprep.subr.bf16.mxu0 0
    %286 = vmatpush2.bf16.xpose.msra.mxu0 0
    %287 = vmatprep.mubr.bf16.mxu0 0
    %288 = vmatmul.mubr.bf16.gmra.mxu0 %v250
    %v289 = vpop.f32.mrf.mxu0
    %v290 = vadd.f32 0.0, %v289
    %v291 = vpop.f32.mrf.mxu0
    %v292 = vpop.f32.mrf.mxu0
    %v293 = vpop.f32.mrf.mxu0
    %294 = vdwg.mxu0
    %v295 = vmul.f32 %v241, 0.25
    %v296 = vmul.f32 %v290, 0.25
    %v299 = vlaneseq
    %v300 = vshrl.u32 %v299, 7
    %v301 = vsub.s32 0, %v300
    %v302 = vrot.slane %v124, %v301
    %v303 = vlaneseq
    %v304 = vshrl.u32 %v303, 7
    %v305 = vsub.s32 0, %v304
    %v306 = vrot.slane %v125, %v305
    %v309 = vadd.f32 %v295, %v302
    %v310 = vadd.f32 %v296, %v306
    %vm311 = vcmask 64512
    %v312 = vsel %vm311, %v309, -inf
    %313 = vmax.xlane.f32.xlu0 %v312
    %v314 = vpop.xlane.xlu0 %313
    %v315 = vsel %vm311, %v310, -inf
    %316 = vmax.xlane.f32.xlu0 %v315
    %v317 = vpop.xlane.xlu0 %316
    %v318 = vsub.f32 %v309, %v314
    %v319 = vsub.f32 %v310, %v317
    %v320 = vmul.f32 %v318, 1.442695
    %v321 = vpow.pop %v320
    %v322 = vmul.f32 %v319, 1.442695
    %v323 = vpow.pop %v322
    %v324 = vsel %vm311, %v321, 0.0
    %325 = vadd.xlane.f32.xlu0 %v324
    %v326 = vpop.xlane.xlu0 %325
    %v327 = vsel %vm311, %v323, 0.0
    %328 = vadd.xlane.f32.xlu0 %v327
    %v329 = vpop.xlane.xlu0 %328
    %v330 = vrcp.pop %v326
    %v331 = vmul.f32 %v321, %v330
    %v332 = vrcp.pop %v329
    %v333 = vmul.f32 %v323, %v332
    %v334 = vpack.c.bf16 %v331, %v331
    %v335 = vpack.c.bf16 %v333, %v333
    %336 = vrot.lane.b32.xlu0 %v194, 64
    %v337 = vpop.permute.xlu0 %336
    %v339 = vsel %vm311, %v334, 0
    %vm341 = vcmask 1043456
    %v343 = vsel %vm341, %v337, 0
    %345 = vmatprep.subr.bf16.mxu0 0
    %346 = vmatpush1.bf16.msra.mxu0 0
    %347 = vmatprep.subr.bf16.mxu0 0
    %348 = vmatpush1.bf16.msra.mxu0 0
    %349 = vmatprep.subr.bf16.mxu0 0
    %350 = vmatpush1.bf16.msra.mxu0 0
    %351 = vmatprep.subr.bf16.mxu0 0
    %352 = vmatpush1.bf16.msra.mxu0 0
    %353 = vmatprep.subr.bf16.mxu0 0
    %354 = vmatpush1.bf16.msra.mxu0 0
    %355 = vmatprep.subr.bf16.mxu0 0
    %356 = vmatpush1.bf16.msra.mxu0 0
    %357 = vmatprep.subr.bf16.mxu0 0
    %358 = vmatpush1.bf16.msra.mxu0 0
    %359 = vmatprep.subr.bf16.mxu0 0
    %360 = vmatpush1.bf16.msra.mxu0 %v343
    %361 = vmatprep.subr.bf16.mxu0 0
    %362 = vmatpush2.bf16.msra.mxu0 0
    %363 = vmatprep.subr.bf16.mxu0 0
    %364 = vmatpush2.bf16.msra.mxu0 0
    %365 = vmatprep.subr.bf16.mxu0 0
    %366 = vmatpush2.bf16.msra.mxu0 0
    %367 = vmatprep.subr.bf16.mxu0 0
    %368 = vmatpush2.bf16.msra.mxu0 0
    %369 = vmatprep.subr.bf16.mxu0 0
    %370 = vmatpush2.bf16.msra.mxu0 0
    %371 = vmatprep.subr.bf16.mxu0 0
    %372 = vmatpush2.bf16.msra.mxu0 0
    %373 = vmatprep.subr.bf16.mxu0 0
    %374 = vmatpush2.bf16.msra.mxu0 0
    %375 = vmatprep.subr.bf16.mxu0 0
    %376 = vmatpush2.bf16.msra.mxu0 0
    %377 = vmatprep.mubr.bf16.mxu0 0
    %378 = vmatmul.mubr.bf16.gmra.mxu0 %v339
    %v379 = vpop.f32.mrf.mxu0
    %v380 = vadd.f32 0.0, %v379
    %v381 = vpop.f32.mrf.mxu0
    %v382 = vpop.f32.mrf.mxu0
    %v383 = vpop.f32.mrf.mxu0
    %384 = vdwg.mxu0
    %385 = vrot.lane.b32.xlu0 %v195, 64
    %v386 = vpop.permute.xlu0 %385
    %v388 = vsel %vm311, %v335, 0
    %v391 = vsel %vm341, %v386, 0
    %393 = vmatprep.subr.bf16.mxu0 0
    %394 = vmatpush1.bf16.msra.mxu0 0
    %395 = vmatprep.subr.bf16.mxu0 0
    %396 = vmatpush1.bf16.msra.mxu0 0
    %397 = vmatprep.subr.bf16.mxu0 0
    %398 = vmatpush1.bf16.msra.mxu0 0
    %399 = vmatprep.subr.bf16.mxu0 0
    %400 = vmatpush1.bf16.msra.mxu0 0
    %401 = vmatprep.subr.bf16.mxu0 0
    %402 = vmatpush1.bf16.msra.mxu0 0
    %403 = vmatprep.subr.bf16.mxu0 0
    %404 = vmatpush1.bf16.msra.mxu0 0
    %405 = vmatprep.subr.bf16.mxu0 0
    %406 = vmatpush1.bf16.msra.mxu0 0
    %407 = vmatprep.subr.bf16.mxu0 0
    %408 = vmatpush1.bf16.msra.mxu0 %v391
    %409 = vmatprep.subr.bf16.mxu0 0
    %410 = vmatpush2.bf16.msra.mxu0 0
    %411 = vmatprep.subr.bf16.mxu0 0
    %412 = vmatpush2.bf16.msra.mxu0 0
    %413 = vmatprep.subr.bf16.mxu0 0
    %414 = vmatpush2.bf16.msra.mxu0 0
    %415 = vmatprep.subr.bf16.mxu0 0
    %416 = vmatpush2.bf16.msra.mxu0 0
    %417 = vmatprep.subr.bf16.mxu0 0
    %418 = vmatpush2.bf16.msra.mxu0 0
    %419 = vmatprep.subr.bf16.mxu0 0
    %420 = vmatpush2.bf16.msra.mxu0 0
    %421 = vmatprep.subr.bf16.mxu0 0
    %422 = vmatpush2.bf16.msra.mxu0 0
    %423 = vmatprep.subr.bf16.mxu0 0
    %424 = vmatpush2.bf16.msra.mxu0 0
    %425 = vmatprep.mubr.bf16.mxu0 0
    %426 = vmatmul.mubr.bf16.gmra.mxu0 %v388
    %v427 = vpop.f32.mrf.mxu0
    %v428 = vadd.f32 0.0, %v427
    %v429 = vpop.f32.mrf.mxu0
    %v430 = vpop.f32.mrf.mxu0
    %v431 = vpop.f32.mrf.mxu0
    %432 = vdwg.mxu0
    %433 = vrot.lane.b32.xlu0 %v194, 112
    %v434 = vpop.permute.xlu0 %433
    %435 = vrot.lane.b32.xlu0 %v194, 80
    %v436 = vpop.permute.xlu0 %435
    %v438 = vsel %vm199, %v434, 0
    %v441 = vsel %vm199, %v436, 0
    %443 = vmatprep.subr.bf16.mxu0 0
    %444 = vmatpush1.bf16.xpose.msra.mxu0 0
    %445 = vmatprep.subr.bf16.mxu0 0
    %446 = vmatpush1.bf16.xpose.msra.mxu0 0
    %447 = vmatprep.subr.bf16.mxu0 0
    %448 = vmatpush1.bf16.xpose.msra.mxu0 0
    %449 = vmatprep.subr.bf16.mxu0 0
    %450 = vmatpush1.bf16.xpose.msra.mxu0 0
    %451 = vmatprep.subr.bf16.mxu0 0
    %452 = vmatpush1.bf16.xpose.msra.mxu0 0
    %453 = vmatprep.subr.bf16.mxu0 0
    %454 = vmatpush1.bf16.xpose.msra.mxu0 0
    %455 = vmatprep.subr.bf16.mxu0 0
    %456 = vmatpush1.bf16.xpose.msra.mxu0 0
    %457 = vmatprep.subr.bf16.mxu0 0
    %458 = vmatpush1.bf16.xpose.msra.mxu0 %v441
    %459 = vmatprep.subr.bf16.mxu0 0
    %460 = vmatpush2.bf16.xpose.msra.mxu0 0
    %461 = vmatprep.subr.bf16.mxu0 0
    %462 = vmatpush2.bf16.xpose.msra.mxu0 0
    %463 = vmatprep.subr.bf16.mxu0 0
    %464 = vmatpush2.bf16.xpose.msra.mxu0 0
    %465 = vmatprep.subr.bf16.mxu0 0
    %466 = vmatpush2.bf16.xpose.msra.mxu0 0
    %467 = vmatprep.subr.bf16.mxu0 0
    %468 = vmatpush2.bf16.xpose.msra.mxu0 0
    %469 = vmatprep.subr.bf16.mxu0 0
    %470 = vmatpush2.bf16.xpose.msra.mxu0 0
    %471 = vmatprep.subr.bf16.mxu0 0
    %472 = vmatpush2.bf16.xpose.msra.mxu0 0
    %473 = vmatprep.subr.bf16.mxu0 0
    %474 = vmatpush2.bf16.xpose.msra.mxu0 0
    %475 = vmatprep.mubr.bf16.mxu0 0
    %476 = vmatmul.mubr.bf16.gmra.mxu0 %v438
    %v477 = vpop.f32.mrf.mxu0
    %v478 = vadd.f32 0.0, %v477
    %v479 = vpop.f32.mrf.mxu0
    %v480 = vpop.f32.mrf.mxu0
    %v481 = vpop.f32.mrf.mxu0
    %482 = vdwg.mxu0
    %483 = vrot.lane.b32.xlu0 %v195, 112
    %v484 = vpop.permute.xlu0 %483
    %485 = vrot.lane.b32.xlu0 %v195, 80
    %v486 = vpop.permute.xlu0 %485
    %v488 = vsel %vm199, %v484, 0
    %v491 = vsel %vm199, %v486, 0
    %493 = vmatprep.subr.bf16.mxu0 0
    %494 = vmatpush1.bf16.xpose.msra.mxu0 0
    %495 = vmatprep.subr.bf16.mxu0 0
    %496 = vmatpush1.bf16.xpose.msra.mxu0 0
    %497 = vmatprep.subr.bf16.mxu0 0
    %498 = vmatpush1.bf16.xpose.msra.mxu0 0
    %499 = vmatprep.subr.bf16.mxu0 0
    %500 = vmatpush1.bf16.xpose.msra.mxu0 0
    %501 = vmatprep.subr.bf16.mxu0 0
    %502 = vmatpush1.bf16.xpose.msra.mxu0 0
    %503 = vmatprep.subr.bf16.mxu0 0
    %504 = vmatpush1.bf16.xpose.msra.mxu0 0
    %505 = vmatprep.subr.bf16.mxu0 0
    %506 = vmatpush1.bf16.xpose.msra.mxu0 0
    %507 = vmatprep.subr.bf16.mxu0 0
    %508 = vmatpush1.bf16.xpose.msra.mxu0 %v491
    %509 = vmatprep.subr.bf16.mxu0 0
    %510 = vmatpush2.bf16.xpose.msra.mxu0 0
    %511 = vmatprep.subr.bf16.mxu0 0
    %512 = vmatpush2.bf16.xpose.msra.mxu0 0
    %513 = vmatprep.subr.bf16.mxu0 0
    %514 = vmatpush2.bf16.xpose.msra.mxu0 0
    %515 = vmatprep.subr.bf16.mxu0 0
    %516 = vmatpush2.bf16.xpose.msra.mxu0 0
    %517 = vmatprep.subr.bf16.mxu0 0
    %518 = vmatpush2.bf16.xpose.msra.mxu0 0
    %519 = vmatprep.subr.bf16.mxu0 0
    %520 = vmatpush2.bf16.xpose.msra.mxu0 0
    %521 = vmatprep.subr.bf16.mxu0 0
    %522 = vmatpush2.bf16.xpose.msra.mxu0 0
    %523 = vmatprep.subr.bf16.mxu0 0
    %524 = vmatpush2.bf16.xpose.msra.mxu0 0
    %525 = vmatprep.mubr.bf16.mxu0 0
    %526 = vmatmul.mubr.bf16.gmra.mxu0 %v488
    %v527 = vpop.f32.mrf.mxu0
    %v528 = vadd.f32 0.0, %v527
    %v529 = vpop.f32.mrf.mxu0
    %v530 = vpop.f32.mrf.mxu0
    %v531 = vpop.f32.mrf.mxu0
    %532 = vdwg.mxu0
    %v533 = vmul.f32 %v478, 0.25
    %v534 = vmul.f32 %v528, 0.25
    %v535 = vadd.f32 %v533, %v302
    %v536 = vadd.f32 %v534, %v306
    %v537 = vsel %vm311, %v535, -inf
    %538 = vmax.xlane.f32.xlu0 %v537
    %v539 = vpop.xlane.xlu0 %538
    %v540 = vsel %vm311, %v536, -inf
    %541 = vmax.xlane.f32.xlu0 %v540
    %v542 = vpop.xlane.xlu0 %541
    %v543 = vsub.f32 %v535, %v539
    %v544 = vsub.f32 %v536, %v542
    %v545 = vmul.f32 %v543, 1.442695
    %v546 = vpow.pop %v545
    %v547 = vmul.f32 %v544, 1.442695
    %v548 = vpow.pop %v547
    %v549 = vsel %vm311, %v546, 0.0
    %550 = vadd.xlane.f32.xlu0 %v549
    %v551 = vpop.xlane.xlu0 %550
    %v552 = vsel %vm311, %v548, 0.0
    %553 = vadd.xlane.f32.xlu0 %v552
    %v554 = vpop.xlane.xlu0 %553
    %v555 = vrcp.pop %v551
    %v556 = vmul.f32 %v546, %v555
    %v557 = vrcp.pop %v554
    %v558 = vmul.f32 %v548, %v557
    %v559 = vpack.c.bf16 %v556, %v556
    %v560 = vpack.c.bf16 %v558, %v558
    %561 = vrot.lane.b32.xlu0 %v194, 48
    %v562 = vpop.permute.xlu0 %561
    %v564 = vsel %vm311, %v559, 0
    %v567 = vsel %vm341, %v562, 0
    %569 = vmatprep.subr.bf16.mxu0 0
    %570 = vmatpush1.bf16.msra.mxu0 0
    %571 = vmatprep.subr.bf16.mxu0 0
    %572 = vmatpush1.bf16.msra.mxu0 0
    %573 = vmatprep.subr.bf16.mxu0 0
    %574 = vmatpush1.bf16.msra.mxu0 0
    %575 = vmatprep.subr.bf16.mxu0 0
    %576 = vmatpush1.bf16.msra.mxu0 0
    %577 = vmatprep.subr.bf16.mxu0 0
    %578 = vmatpush1.bf16.msra.mxu0 0
    %579 = vmatprep.subr.bf16.mxu0 0
    %580 = vmatpush1.bf16.msra.mxu0 0
    %581 = vmatprep.subr.bf16.mxu0 0
    %582 = vmatpush1.bf16.msra.mxu0 0
    %583 = vmatprep.subr.bf16.mxu0 0
    %584 = vmatpush1.bf16.msra.mxu0 %v567
    %585 = vmatprep.subr.bf16.mxu0 0
    %586 = vmatpush2.bf16.msra.mxu0 0
    %587 = vmatprep.subr.bf16.mxu0 0
    %588 = vmatpush2.bf16.msra.mxu0 0
    %589 = vmatprep.subr.bf16.mxu0 0
    %590 = vmatpush2.bf16.msra.mxu0 0
    %591 = vmatprep.subr.bf16.mxu0 0
    %592 = vmatpush2.bf16.msra.mxu0 0
    %593 = vmatprep.subr.bf16.mxu0 0
    %594 = vmatpush2.bf16.msra.mxu0 0
    %595 = vmatprep.subr.bf16.mxu0 0
    %596 = vmatpush2.bf16.msra.mxu0 0
    %597 = vmatprep.subr.bf16.mxu0 0
    %598 = vmatpush2.bf16.msra.mxu0 0
    %599 = vmatprep.subr.bf16.mxu0 0
    %600 = vmatpush2.bf16.msra.mxu0 0
    %601 = vmatprep.mubr.bf16.mxu0 0
    %602 = vmatmul.mubr.bf16.gmra.mxu0 %v564
    %v603 = vpop.f32.mrf.mxu0
    %v604 = vadd.f32 0.0, %v603
    %v605 = vpop.f32.mrf.mxu0
    %v606 = vpop.f32.mrf.mxu0
    %v607 = vpop.f32.mrf.mxu0
    %608 = vdwg.mxu0
    %609 = vrot.lane.b32.xlu0 %v195, 48
    %v610 = vpop.permute.xlu0 %609
    %v612 = vsel %vm311, %v560, 0
    %v615 = vsel %vm341, %v610, 0
    %617 = vmatprep.subr.bf16.mxu0 0
    %618 = vmatpush1.bf16.msra.mxu0 0
    %619 = vmatprep.subr.bf16.mxu0 0
    %620 = vmatpush1.bf16.msra.mxu0 0
    %621 = vmatprep.subr.bf16.mxu0 0
    %622 = vmatpush1.bf16.msra.mxu0 0
    %623 = vmatprep.subr.bf16.mxu0 0
    %624 = vmatpush1.bf16.msra.mxu0 0
    %625 = vmatprep.subr.bf16.mxu0 0
    %626 = vmatpush1.bf16.msra.mxu0 0
    %627 = vmatprep.subr.bf16.mxu0 0
    %628 = vmatpush1.bf16.msra.mxu0 0
    %629 = vmatprep.subr.bf16.mxu0 0
    %630 = vmatpush1.bf16.msra.mxu0 0
    %631 = vmatprep.subr.bf16.mxu0 0
    %632 = vmatpush1.bf16.msra.mxu0 %v615
    %633 = vmatprep.subr.bf16.mxu0 0
    %634 = vmatpush2.bf16.msra.mxu0 0
    %635 = vmatprep.subr.bf16.mxu0 0
    %636 = vmatpush2.bf16.msra.mxu0 0
    %637 = vmatprep.subr.bf16.mxu0 0
    %638 = vmatpush2.bf16.msra.mxu0 0
    %639 = vmatprep.subr.bf16.mxu0 0
    %640 = vmatpush2.bf16.msra.mxu0 0
    %641 = vmatprep.subr.bf16.mxu0 0
    %642 = vmatpush2.bf16.msra.mxu0 0
    %643 = vmatprep.subr.bf16.mxu0 0
    %644 = vmatpush2.bf16.msra.mxu0 0
    %645 = vmatprep.subr.bf16.mxu0 0
    %646 = vmatpush2.bf16.msra.mxu0 0
    %647 = vmatprep.subr.bf16.mxu0 0
    %648 = vmatpush2.bf16.msra.mxu0 0
    %649 = vmatprep.mubr.bf16.mxu0 0
    %650 = vmatmul.mubr.bf16.gmra.mxu0 %v612
    %v651 = vpop.f32.mrf.mxu0
    %v652 = vadd.f32 0.0, %v651
    %v653 = vpop.f32.mrf.mxu0
    %v654 = vpop.f32.mrf.mxu0
    %v655 = vpop.f32.mrf.mxu0
    %656 = vdwg.mxu0
    %659 = vrot.lane.b32.xlu0 %v604, 16
    %v660 = vpop.permute.xlu0 %659
    %661 = vrot.lane.b32.xlu0 %v652, 16
    %v662 = vpop.permute.xlu0 %661
    %v665 = vsel %vm199, %v380, %v660
    %v666 = vsel %vm199, %v428, %v662
    %v667 = vld [vmem:[%s5] sm:$0xf]
    %v668 = vld [vmem:[%s5 + $0x4] sm:$0xf]
    %v669 = vld [vmem:[%s5 + $0x8] sm:$0xf]
    %v670 = vld [vmem:[%s5 + $0xc] sm:$0xf]
    %v671 = vpack.c.bf16 %v666, %v665
    %v672 = vld [vmem:[%s6] sm:$0x1]
    %v674 = vlaneseq
    %v675 = vshrl.u32 %v674, 7
    %v676 = vsub.s32 0, %v675
    %v677 = vrot.slane %v672, %v676
    %v683 = vunpack.c.l.b16 %v667
    %v684 = vunpack.c.l.b16 %v668
    %v685 = vunpack.c.l.b16 %v669
    %v686 = vunpack.c.l.b16 %v670
    %v687 = vpack.c.b16 %v684, %v683
    %v688 = vpack.c.b16 %v686, %v685
    %v692 = vsel %vm80, %v671, 0
    %694 = vmatprep.subr.bf16.mxu0 0
    %695 = vmatpush1.bf16.msra.mxu0 0
    %696 = vmatprep.subr.bf16.mxu0 0
    %697 = vmatpush1.bf16.msra.mxu0 0
    %698 = vmatprep.subr.bf16.mxu0 0
    %699 = vmatpush1.bf16.msra.mxu0 0
    %700 = vmatprep.subr.bf16.mxu0 0
    %701 = vmatpush1.bf16.msra.mxu0 0
    %702 = vmatprep.subr.bf16.mxu0 0
    %703 = vmatpush1.bf16.msra.mxu0 0
    %704 = vmatprep.subr.bf16.mxu0 0
    %705 = vmatpush1.bf16.msra.mxu0 0
    %706 = vmatprep.subr.bf16.mxu0 0
    %707 = vmatpush1.bf16.msra.mxu0 %v688
    %708 = vmatprep.subr.bf16.mxu0 0
    %709 = vmatpush1.bf16.msra.mxu0 %v687
    %710 = vmatprep.subr.bf16.mxu0 0
    %711 = vmatpush2.bf16.msra.mxu0 0
    %712 = vmatprep.subr.bf16.mxu0 0
    %713 = vmatpush2.bf16.msra.mxu0 0
    %714 = vmatprep.subr.bf16.mxu0 0
    %715 = vmatpush2.bf16.msra.mxu0 0
    %716 = vmatprep.subr.bf16.mxu0 0
    %717 = vmatpush2.bf16.msra.mxu0 0
    %718 = vmatprep.subr.bf16.mxu0 0
    %719 = vmatpush2.bf16.msra.mxu0 0
    %720 = vmatprep.subr.bf16.mxu0 0
    %721 = vmatpush2.bf16.msra.mxu0 0
    %722 = vmatprep.subr.bf16.mxu0 0
    %723 = vmatpush2.bf16.msra.mxu0 0
    %724 = vmatprep.subr.bf16.mxu0 0
    %725 = vmatpush2.bf16.msra.mxu0 0
    %726 = vmatprep.mubr.bf16.mxu0 0
    %727 = vmatmul.mubr.bf16.gmra.mxu0 %v692
    %v728 = vpop.f32.mrf.mxu0
    %v729 = vadd.f32 %v677, %v728
    %v730 = vpop.f32.mrf.mxu0
    %v731 = vpop.f32.mrf.mxu0
    %v732 = vadd.f32 %v677, %v731
    %v733 = vpop.f32.mrf.mxu0
    %734 = vdwg.mxu0
    %v735 = vadd.f32 %v729, %v122
    %v736 = vadd.f32 %v732, %v123
    %v737 = vld [vmem:[%s7] sm:$0x1]
    %v738 = vld [vmem:[%s8] sm:$0x1]
    %v739 = vsel %vm80, %v735, 0.0
    %740 = vadd.xlane.f32.xlu0 %v739
    %v741 = vpop.xlane.xlu0 %740
    %v742 = vsel %vm80, %v736, 0.0
    %743 = vadd.xlane.f32.xlu0 %v742
    %v744 = vpop.xlane.xlu0 %743
    %v745 = vmul.f32 %v741, %v87
    %v746 = vmul.f32 %v744, %v87
    %v747 = vsub.f32 %v735, %v745
    %v748 = vsub.f32 %v736, %v746
    %v749 = vmul.f32 %v747, %v747
    %v750 = vmul.f32 %v748, %v748
    %v751 = vsel %vm80, %v749, 0.0
    %752 = vadd.xlane.f32.xlu0 %v751
    %v753 = vpop.xlane.xlu0 %752
    %v754 = vsel %vm80, %v750, 0.0
    %755 = vadd.xlane.f32.xlu0 %v754
    %v756 = vpop.xlane.xlu0 %755
    %v757 = vmul.f32 %v753, %v87
    %v758 = vmul.f32 %v756, %v87
    %v759 = vadd.f32 %v757, 1e-12
    %v760 = vadd.f32 %v758, 1e-12
    %v761 = vrsqrt.pop %v759
    %v762 = vrsqrt.pop %v760
    %v763 = vmul.f32 %v747, %v761
    %v764 = vmul.f32 %v748, %v762
    %v766 = vlaneseq
    %v767 = vshrl.u32 %v766, 7
    %v768 = vsub.s32 0, %v767
    %v769 = vrot.slane %v737, %v768
    %v771 = vmul.f32 %v763, %v769
    %v772 = vmul.f32 %v764, %v769
    %v774 = vlaneseq
    %v775 = vshrl.u32 %v774, 7
    %v776 = vsub.s32 0, %v775
    %v777 = vrot.slane %v738, %v776
    %v779 = vadd.f32 %v771, %v777
    %v780 = vadd.f32 %v772, %v777
    %v781 = vld [vmem:[%s9] sm:$0xf]
    %v782 = vld [vmem:[%s9 + $0x4] sm:$0xf]
    %v783 = vld [vmem:[%s9 + $0x8] sm:$0xf]
    %v784 = vld [vmem:[%s9 + $0xc] sm:$0xf]
    %v785 = vpack.c.bf16 %v780, %v779
    %v786 = vld [vmem:[%s10] sm:$0x1]
    %v788 = vlaneseq
    %v789 = vshrl.u32 %v788, 7
    %v790 = vsub.s32 0, %v789
    %v791 = vrot.slane %v786, %v790
    %v797 = vunpack.c.l.b16 %v781
    %v798 = vunpack.c.l.b16 %v782
    %v799 = vunpack.c.l.b16 %v783
    %v800 = vunpack.c.l.b16 %v784
    %v801 = vpack.c.b16 %v798, %v797
    %v802 = vpack.c.b16 %v800, %v799
    %v806 = vsel %vm80, %v785, 0
    %808 = vmatprep.subr.bf16.mxu0 0
    %809 = vmatpush1.bf16.msra.mxu0 0
    %810 = vmatprep.subr.bf16.mxu0 0
    %811 = vmatpush1.bf16.msra.mxu0 0
    %812 = vmatprep.subr.bf16.mxu0 0
    %813 = vmatpush1.bf16.msra.mxu0 0
    %814 = vmatprep.subr.bf16.mxu0 0
    %815 = vmatpush1.bf16.msra.mxu0 0
    %816 = vmatprep.subr.bf16.mxu0 0
    %817 = vmatpush1.bf16.msra.mxu0 0
    %818 = vmatprep.subr.bf16.mxu0 0
    %819 = vmatpush1.bf16.msra.mxu0 0
    %820 = vmatprep.subr.bf16.mxu0 0
    %821 = vmatpush1.bf16.msra.mxu0 %v802
    %822 = vmatprep.subr.bf16.mxu0 0
    %823 = vmatpush1.bf16.msra.mxu0 %v801
    %824 = vmatprep.subr.bf16.mxu0 0
    %825 = vmatpush2.bf16.msra.mxu0 0
    %826 = vmatprep.subr.bf16.mxu0 0
    %827 = vmatpush2.bf16.msra.mxu0 0
    %828 = vmatprep.subr.bf16.mxu0 0
    %829 = vmatpush2.bf16.msra.mxu0 0
    %830 = vmatprep.subr.bf16.mxu0 0
    %831 = vmatpush2.bf16.msra.mxu0 0
    %832 = vmatprep.subr.bf16.mxu0 0
    %833 = vmatpush2.bf16.msra.mxu0 0
    %834 = vmatprep.subr.bf16.mxu0 0
    %835 = vmatpush2.bf16.msra.mxu0 0
    %836 = vmatprep.subr.bf16.mxu0 0
    %837 = vmatpush2.bf16.msra.mxu0 0
    %838 = vmatprep.subr.bf16.mxu0 0
    %839 = vmatpush2.bf16.msra.mxu0 0
    %840 = vmatprep.mubr.bf16.mxu0 0
    %841 = vmatmul.mubr.bf16.gmra.mxu0 %v806
    %v842 = vpop.f32.mrf.mxu0
    %v843 = vadd.f32 %v791, %v842
    %v844 = vpop.f32.mrf.mxu0
    %v845 = vpop.f32.mrf.mxu0
    %v846 = vadd.f32 %v791, %v845
    %v847 = vpop.f32.mrf.mxu0
    %848 = vdwg.mxu0
    %v849 = vmul.f32 %v843, %v843
    %v850 = vmul.f32 %v846, %v846
    %v851 = vmul.f32 %v843, %v849
    %v852 = vmul.f32 %v846, %v850
    %v853 = vmul.f32 %v851, 0.044715
    %v854 = vmul.f32 %v852, 0.044715
    %v855 = vadd.f32 %v843, %v853
    %v856 = vadd.f32 %v846, %v854
    %v857 = vmul.f32 %v855, 0.7978846
    %v858 = vmul.f32 %v856, 0.7978846
    %v859 = vtanh.pop %v857
    %v860 = vtanh.pop %v858
    %v861 = vadd.f32 %v859, 1.0
    %v862 = vadd.f32 %v860, 1.0
    %v863 = vmul.f32 %v861, 0.5
    %v864 = vmul.f32 %v862, 0.5
    %v865 = vmul.f32 %v843, %v863
    %v866 = vmul.f32 %v846, %v864
    %v867 = vld [vmem:[%s11] sm:$0xf]
    %v868 = vld [vmem:[%s11 + $0x4] sm:$0xf]
    %v869 = vld [vmem:[%s11 + $0x8] sm:$0xf]
    %v870 = vld [vmem:[%s11 + $0xc] sm:$0xf]
    %v871 = vld [vmem:[%s11 + $0x10] sm:$0xf]
    %v872 = vld [vmem:[%s11 + $0x14] sm:$0xf]
    %v873 = vld [vmem:[%s11 + $0x18] sm:$0xf]
    %v874 = vld [vmem:[%s11 + $0x1c] sm:$0xf]
    %v875 = vpack.c.bf16 %v866, %v865
    %v876 = vld [vmem:[%s12] sm:$0x1]
    %v878 = vlaneseq
    %v879 = vshrl.u32 %v878, 7
    %v880 = vsub.s32 0, %v879
    %v881 = vrot.slane %v876, %v880
    %v891 = vunpack.c.l.b16 %v867
    %v892 = vunpack.c.l.b16 %v868
    %v893 = vunpack.c.l.b16 %v869
    %v894 = vunpack.c.l.b16 %v870
    %v895 = vunpack.c.l.b16 %v871
    %v896 = vunpack.c.l.b16 %v872
    %v897 = vunpack.c.l.b16 %v873
    %v898 = vunpack.c.l.b16 %v874
    %v899 = vpack.c.b16 %v892, %v891
    %v900 = vpack.c.b16 %v894, %v893
    %v901 = vpack.c.b16 %v896, %v895
    %v902 = vpack.c.b16 %v898, %v897
    %vm907 = vcmask 523264
    %v909 = vsel %vm907, %v875, 0
    %911 = vmatprep.subr.bf16.mxu0 0
    %912 = vmatpush1.bf16.msra.mxu0 0
    %913 = vmatprep.subr.bf16.mxu0 0
    %914 = vmatpush1.bf16.msra.mxu0 0
    %915 = vmatprep.subr.bf16.mxu0 0
    %916 = vmatpush1.bf16.msra.mxu0 0
    %917 = vmatprep.subr.bf16.mxu0 0
    %918 = vmatpush1.bf16.msra.mxu0 0
    %919 = vmatprep.subr.bf16.mxu0 0
    %920 = vmatpush1.bf16.msra.mxu0 %v902
    %921 = vmatprep.subr.bf16.mxu0 0
    %922 = vmatpush1.bf16.msra.mxu0 %v901
    %923 = vmatprep.subr.bf16.mxu0 0
    %924 = vmatpush1.bf16.msra.mxu0 %v900
    %925 = vmatprep.subr.bf16.mxu0 0
    %926 = vmatpush1.bf16.msra.mxu0 %v899
    %927 = vmatprep.subr.bf16.mxu0 0
    %928 = vmatpush2.bf16.msra.mxu0 0
    %929 = vmatprep.subr.bf16.mxu0 0
    %930 = vmatpush2.bf16.msra.mxu0 0
    %931 = vmatprep.subr.bf16.mxu0 0
    %932 = vmatpush2.bf16.msra.mxu0 0
    %933 = vmatprep.subr.bf16.mxu0 0
    %934 = vmatpush2.bf16.msra.mxu0 0
    %935 = vmatprep.subr.bf16.mxu0 0
    %936 = vmatpush2.bf16.msra.mxu0 0
    %937 = vmatprep.subr.bf16.mxu0 0
    %938 = vmatpush2.bf16.msra.mxu0 0
    %939 = vmatprep.subr.bf16.mxu0 0
    %940 = vmatpush2.bf16.msra.mxu0 0
    %941 = vmatprep.subr.bf16.mxu0 0
    %942 = vmatpush2.bf16.msra.mxu0 0
    %943 = vmatprep.mubr.bf16.mxu0 0
    %944 = vmatmul.mubr.bf16.gmra.mxu0 %v909
    %v945 = vpop.f32.mrf.mxu0
    %v946 = vadd.f32 %v881, %v945
    %v947 = vpop.f32.mrf.mxu0
    %v948 = vpop.f32.mrf.mxu0
    %v949 = vadd.f32 %v881, %v948
    %v950 = vpop.f32.mrf.mxu0
    %951 = vdwg.mxu0
    %v952 = vadd.f32 %v946, %v779
    %v953 = vadd.f32 %v949, %v780
    %v954 = vld [vmem:[%s13] sm:$0x1]
    %v955 = vld [vmem:[%s14] sm:$0x1]
    %v956 = vsel %vm80, %v952, 0.0
    %957 = vadd.xlane.f32.xlu0 %v956
    %v958 = vpop.xlane.xlu0 %957
    %v959 = vsel %vm80, %v953, 0.0
    %960 = vadd.xlane.f32.xlu0 %v959
    %v961 = vpop.xlane.xlu0 %960
    %v962 = vmul.f32 %v958, %v87
    %v963 = vmul.f32 %v961, %v87
    %v964 = vsub.f32 %v952, %v962
    %v965 = vsub.f32 %v953, %v963
    %v966 = vmul.f32 %v964, %v964
    %v967 = vmul.f32 %v965, %v965
    %v968 = vsel %vm80, %v966, 0.0
    %969 = vadd.xlane.f32.xlu0 %v968
    %v970 = vpop.xlane.xlu0 %969
    %v971 = vsel %vm80, %v967, 0.0
    %972 = vadd.xlane.f32.xlu0 %v971
    %v973 = vpop.xlane.xlu0 %972
    %v974 = vmul.f32 %v970, %v87
    %v975 = vmul.f32 %v973, %v87
    %v976 = vadd.f32 %v974, 1e-12
    %v977 = vadd.f32 %v975, 1e-12
    %v978 = vrsqrt.pop %v976
    %v979 = vrsqrt.pop %v977
    %v980 = vmul.f32 %v964, %v978
    %v981 = vmul.f32 %v965, %v979
    %v983 = vlaneseq
    %v984 = vshrl.u32 %v983, 7
    %v985 = vsub.s32 0, %v984
    %v986 = vrot.slane %v954, %v985
    %v988 = vmul.f32 %v980, %v986
    %v989 = vmul.f32 %v981, %v986
    %v991 = vlaneseq
    %v992 = vshrl.u32 %v991, 7
    %v993 = vsub.s32 0, %v992
    %v994 = vrot.slane %v955, %v993
    %v996 = vadd.f32 %v988, %v994
    %v997 = vadd.f32 %v989, %v994
    %s998 = scalar_lea.vmem %s3, 16
    %v999 = vld [vmem:[%s998] sm:$0xf]
    %v1000 = vld [vmem:[%s998 + $0x4] sm:$0xf]
    %v1001 = vld [vmem:[%s998 + $0x8] sm:$0xf]
    %v1002 = vld [vmem:[%s998 + $0xc] sm:$0xf]
    %v1003 = vpack.c.bf16 %v997, %v996
    %s1004 = scalar_lea.vmem %s4, 1
    %v1005 = vld [vmem:[%s1004] sm:$0x1]
    %v1007 = vlaneseq
    %v1008 = vshrl.u32 %v1007, 7
    %v1009 = vsub.s32 0, %v1008
    %v1010 = vrot.slane %v1005, %v1009
    %v1016 = vunpack.c.l.b16 %v999
    %v1017 = vunpack.c.l.b16 %v1000
    %v1018 = vunpack.c.l.b16 %v1001
    %v1019 = vunpack.c.l.b16 %v1002
    %v1020 = vpack.c.b16 %v1017, %v1016
    %v1021 = vpack.c.b16 %v1019, %v1018
    %v1025 = vsel %vm80, %v1003, 0
    %1027 = vmatprep.subr.bf16.mxu0 0
    %1028 = vmatpush1.bf16.msra.mxu0 0
    %1029 = vmatprep.subr.bf16.mxu0 0
    %1030 = vmatpush1.bf16.msra.mxu0 0
    %1031 = vmatprep.subr.bf16.mxu0 0
    %1032 = vmatpush1.bf16.msra.mxu0 0
    %1033 = vmatprep.subr.bf16.mxu0 0
    %1034 = vmatpush1.bf16.msra.mxu0 0
    %1035 = vmatprep.subr.bf16.mxu0 0
    %1036 = vmatpush1.bf16.msra.mxu0 0
    %1037 = vmatprep.subr.bf16.mxu0 0
    %1038 = vmatpush1.bf16.msra.mxu0 0
    %1039 = vmatprep.subr.bf16.mxu0 0
    %1040 = vmatpush1.bf16.msra.mxu0 %v1021
    %1041 = vmatprep.subr.bf16.mxu0 0
    %1042 = vmatpush1.bf16.msra.mxu0 %v1020
    %1043 = vmatprep.subr.bf16.mxu0 0
    %1044 = vmatpush2.bf16.msra.mxu0 0
    %1045 = vmatprep.subr.bf16.mxu0 0
    %1046 = vmatpush2.bf16.msra.mxu0 0
    %1047 = vmatprep.subr.bf16.mxu0 0
    %1048 = vmatpush2.bf16.msra.mxu0 0
    %1049 = vmatprep.subr.bf16.mxu0 0
    %1050 = vmatpush2.bf16.msra.mxu0 0
    %1051 = vmatprep.subr.bf16.mxu0 0
    %1052 = vmatpush2.bf16.msra.mxu0 0
    %1053 = vmatprep.subr.bf16.mxu0 0
    %1054 = vmatpush2.bf16.msra.mxu0 0
    %1055 = vmatprep.subr.bf16.mxu0 0
    %1056 = vmatpush2.bf16.msra.mxu0 0
    %1057 = vmatprep.subr.bf16.mxu0 0
    %1058 = vmatpush2.bf16.msra.mxu0 0
    %1059 = vmatprep.mubr.bf16.mxu0 0
    %1060 = vmatmul.mubr.bf16.gmra.mxu0 %v1025
    %v1061 = vpop.f32.mrf.mxu0
    %v1062 = vadd.f32 %v1010, %v1061
    %v1063 = vpop.f32.mrf.mxu0
    %v1064 = vpop.f32.mrf.mxu0
    %v1065 = vadd.f32 %v1010, %v1064
    %v1066 = vpop.f32.mrf.mxu0
    %1067 = vdwg.mxu0
    %v1068 = vpack.c.bf16 %v1062, %v1062
    %v1069 = vpack.c.bf16 %v1065, %v1065
    %1071 = vrot.lane.b32.xlu0 %v1068, 96
    %v1072 = vpop.permute.xlu0 %1071
    %v1074 = vsel %vm199, %v1068, 0
    %v1077 = vsel %vm199, %v1072, 0
    %1079 = vmatprep.subr.bf16.mxu0 0
    %1080 = vmatpush1.bf16.xpose.msra.mxu0 0
    %1081 = vmatprep.subr.bf16.mxu0 0
    %1082 = vmatpush1.bf16.xpose.msra.mxu0 0
    %1083 = vmatprep.subr.bf16.mxu0 0
    %1084 = vmatpush1.bf16.xpose.msra.mxu0 0
    %1085 = vmatprep.subr.bf16.mxu0 0
    %1086 = vmatpush1.bf16.xpose.msra.mxu0 0
    %1087 = vmatprep.subr.bf16.mxu0 0
    %1088 = vmatpush1.bf16.xpose.msra.mxu0 0
    %1089 = vmatprep.subr.bf16.mxu0 0
    %1090 = vmatpush1.bf16.xpose.msra.mxu0 0
    %1091 = vmatprep.subr.bf16.mxu0 0
    %1092 = vmatpush1.bf16.xpose.msra.mxu0 0
    %1093 = vmatprep.subr.bf16.mxu0 0
    %1094 = vmatpush1.bf16.xpose.msra.mxu0 %v1077
    %1095 = vmatprep.subr.bf16.mxu0 0
    %1096 = vmatpush2.bf16.xpose.msra.mxu0 0
    %1097 = vmatprep.subr.bf16.mxu0 0
    %1098 = vmatpush2.bf16.xpose.msra.mxu0 0
    %1099 = vmatprep.subr.bf16.mxu0 0
    %1100 = vmatpush2.bf16.xpose.msra.mxu0 0
    %1101 = vmatprep.subr.bf16.mxu0 0
    %1102 = vmatpush2.bf16.xpose.msra.mxu0 0
    %1103 = vmatprep.subr.bf16.mxu0 0
    %1104 = vmatpush2.bf16.xpose.msra.mxu0 0
    %1105 = vmatprep.subr.bf16.mxu0 0
    %1106 = vmatpush2.bf16.xpose.msra.mxu0 0
    %1107 = vmatprep.subr.bf16.mxu0 0
    %1108 = vmatpush2.bf16.xpose.msra.mxu0 0
    %1109 = vmatprep.subr.bf16.mxu0 0
    %1110 = vmatpush2.bf16.xpose.msra.mxu0 0
    %1111 = vmatprep.mubr.bf16.mxu0 0
    %1112 = vmatmul.mubr.bf16.gmra.mxu0 %v1074
    %v1113 = vpop.f32.mrf.mxu0
    %v1114 = vadd.f32 0.0, %v1113
    %v1115 = vpop.f32.mrf.mxu0
    %v1116 = vpop.f32.mrf.mxu0
    %v1117 = vpop.f32.mrf.mxu0
    %1118 = vdwg.mxu0
    %1120 = vrot.lane.b32.xlu0 %v1069, 96
    %v1121 = vpop.permute.xlu0 %1120
    %v1123 = vsel %vm199, %v1069, 0
    %v1126 = vsel %vm199, %v1121, 0
    %1128 = vmatprep.subr.bf16.mxu0 0
    %1129 = vmatpush1.bf16.xpose.msra.mxu0 0
    %1130 = vmatprep.subr.bf16.mxu0 0
    %1131 = vmatpush1.bf16.xpose.msra.mxu0 0
    %1132 = vmatprep.subr.bf16.mxu0 0
    %1133 = vmatpush1.bf16.xpose.msra.mxu0 0
    %1134 = vmatprep.subr.bf16.mxu0 0
    %1135 = vmatpush1.bf16.xpose.msra.mxu0 0
    %1136 = vmatprep.subr.bf16.mxu0 0
    %1137 = vmatpush1.bf16.xpose.msra.mxu0 0
    %1138 = vmatprep.subr.bf16.mxu0 0
    %1139 = vmatpush1.bf16.xpose.msra.mxu0 0
    %1140 = vmatprep.subr.bf16.mxu0 0
    %1141 = vmatpush1.bf16.xpose.msra.mxu0 0
    %1142 = vmatprep.subr.bf16.mxu0 0
    %1143 = vmatpush1.bf16.xpose.msra.mxu0 %v1126
    %1144 = vmatprep.subr.bf16.mxu0 0
    %1145 = vmatpush2.bf16.xpose.msra.mxu0 0
    %1146 = vmatprep.subr.bf16.mxu0 0
    %1147 = vmatpush2.bf16.xpose.msra.mxu0 0
    %1148 = vmatprep.subr.bf16.mxu0 0
    %1149 = vmatpush2.bf16.xpose.msra.mxu0 0
    %1150 = vmatprep.subr.bf16.mxu0 0
    %1151 = vmatpush2.bf16.xpose.msra.mxu0 0
    %1152 = vmatprep.subr.bf16.mxu0 0
    %1153 = vmatpush2.bf16.xpose.msra.mxu0 0
    %1154 = vmatprep.subr.bf16.mxu0 0
    %1155 = vmatpush2.bf16.xpose.msra.mxu0 0
    %1156 = vmatprep.subr.bf16.mxu0 0
    %1157 = vmatpush2.bf16.xpose.msra.mxu0 0
    %1158 = vmatprep.subr.bf16.mxu0 0
    %1159 = vmatpush2.bf16.xpose.msra.mxu0 0
    %1160 = vmatprep.mubr.bf16.mxu0 0
    %1161 = vmatmul.mubr.bf16.gmra.mxu0 %v1123
    %v1162 = vpop.f32.mrf.mxu0
    %v1163 = vadd.f32 0.0, %v1162
    %v1164 = vpop.f32.mrf.mxu0
    %v1165 = vpop.f32.mrf.mxu0
    %v1166 = vpop.f32.mrf.mxu0
    %1167 = vdwg.mxu0
    %v1168 = vmul.f32 %v1114, 0.25
    %v1169 = vmul.f32 %v1163, 0.25
    %v1170 = vadd.f32 %v1168, %v302
    %v1171 = vadd.f32 %v1169, %v306
    %v1172 = vsel %vm311, %v1170, -inf
    %1173 = vmax.xlane.f32.xlu0 %v1172
    %v1174 = vpop.xlane.xlu0 %1173
    %v1175 = vsel %vm311, %v1171, -inf
    %1176 = vmax.xlane.f32.xlu0 %v1175
    %v1177 = vpop.xlane.xlu0 %1176
    %v1178 = vsub.f32 %v1170, %v1174
    %v1179 = vsub.f32 %v1171, %v1177
    %v1180 = vmul.f32 %v1178, 1.442695
    %v1181 = vpow.pop %v1180
    %v1182 = vmul.f32 %v1179, 1.442695
    %v1183 = vpow.pop %v1182
    %v1184 = vsel %vm311, %v1181, 0.0
    %1185 = vadd.xlane.f32.xlu0 %v1184
    %v1186 = vpop.xlane.xlu0 %1185
    %v1187 = vsel %vm311, %v1183, 0.0
    %1188 = vadd.xlane.f32.xlu0 %v1187
    %v1189 = vpop.xlane.xlu0 %1188
    %v1190 = vrcp.pop %v1186
    %v1191 = vmul.f32 %v1181, %v1190
    %v1192 = vrcp.pop %v1189
    %v1193 = vmul.f32 %v1183, %v1192
    %v1194 = vpack.c.bf16 %v1191, %v1191
    %v1195 = vpack.c.bf16 %v1193, %v1193
    %1196 = vrot.lane.b32.xlu0 %v1068, 64
    %v1197 = vpop.permute.xlu0 %1196
    %v1199 = vsel %vm311, %v1194, 0
    %v1202 = vsel %vm341, %v1197, 0
    %1204 = vmatprep.subr.bf16.mxu0 0
    %1205 = vmatpush1.bf16.msra.mxu0 0
    %1206 = vmatprep.subr.bf16.mxu0 0
    %1207 = vmatpush1.bf16.msra.mxu0 0
    %1208 = vmatprep.subr.bf16.mxu0 0
    %1209 = vmatpush1.bf16.msra.mxu0 0
    %1210 = vmatprep.subr.bf16.mxu0 0
    %1211 = vmatpush1.bf16.msra.mxu0 0
    %1212 = vmatprep.subr.bf16.mxu0 0
    %1213 = vmatpush1.bf16.msra.mxu0 0
    %1214 = vmatprep.subr.bf16.mxu0 0
    %1215 = vmatpush1.bf16.msra.mxu0 0
    %1216 = vmatprep.subr.bf16.mxu0 0
    %1217 = vmatpush1.bf16.msra.mxu0 0
    %1218 = vmatprep.subr.bf16.mxu0 0
    %1219 = vmatpush1.bf16.msra.mxu0 %v1202
    %1220 = vmatprep.subr.bf16.mxu0 0
    %1221 = vmatpush2.bf16.msra.mxu0 0
    %1222 = vmatprep.subr.bf16.mxu0 0
    %1223 = vmatpush2.bf16.msra.mxu0 0
    %1224 = vmatprep.subr.bf16.mxu0 0
    %1225 = vmatpush2.bf16.msra.mxu0 0
    %1226 = vmatprep.subr.bf16.mxu0 0
    %1227 = vmatpush2.bf16.msra.mxu0 0
    %1228 = vmatprep.subr.bf16.mxu0 0
    %1229 = vmatpush2.bf16.msra.mxu0 0
    %1230 = vmatprep.subr.bf16.mxu0 0
    %1231 = vmatpush2.bf16.msra.mxu0 0
    %1232 = vmatprep.subr.bf16.mxu0 0
    %1233 = vmatpush2.bf16.msra.mxu0 0
    %1234 = vmatprep.subr.bf16.mxu0 0
    %1235 = vmatpush2.bf16.msra.mxu0 0
    %1236 = vmatprep.mubr.bf16.mxu0 0
    %1237 = vmatmul.mubr.bf16.gmra.mxu0 %v1199
    %v1238 = vpop.f32.mrf.mxu0
    %v1239 = vadd.f32 0.0, %v1238
    %v1240 = vpop.f32.mrf.mxu0
    %v1241 = vpop.f32.mrf.mxu0
    %v1242 = vpop.f32.mrf.mxu0
    %1243 = vdwg.mxu0
    %1244 = vrot.lane.b32.xlu0 %v1069, 64
    %v1245 = vpop.permute.xlu0 %1244
    %v1247 = vsel %vm311, %v1195, 0
    %v1250 = vsel %vm341, %v1245, 0
    %1252 = vmatprep.subr.bf16.mxu0 0
    %1253 = vmatpush1.bf16.msra.mxu0 0
    %1254 = vmatprep.subr.bf16.mxu0 0
    %1255 = vmatpush1.bf16.msra.mxu0 0
    %1256 = vmatprep.subr.bf16.mxu0 0
    %1257 = vmatpush1.bf16.msra.mxu0 0
    %1258 = vmatprep.subr.bf16.mxu0 0
    %1259 = vmatpush1.bf16.msra.mxu0 0
    %1260 = vmatprep.subr.bf16.mxu0 0
    %1261 = vmatpush1.bf16.msra.mxu0 0
    %1262 = vmatprep.subr.bf16.mxu0 0
    %1263 = vmatpush1.bf16.msra.mxu0 0
    %1264 = vmatprep.subr.bf16.mxu0 0
    %1265 = vmatpush1.bf16.msra.mxu0 0
    %1266 = vmatprep.subr.bf16.mxu0 0
    %1267 = vmatpush1.bf16.msra.mxu0 %v1250
    %1268 = vmatprep.subr.bf16.mxu0 0
    %1269 = vmatpush2.bf16.msra.mxu0 0
    %1270 = vmatprep.subr.bf16.mxu0 0
    %1271 = vmatpush2.bf16.msra.mxu0 0
    %1272 = vmatprep.subr.bf16.mxu0 0
    %1273 = vmatpush2.bf16.msra.mxu0 0
    %1274 = vmatprep.subr.bf16.mxu0 0
    %1275 = vmatpush2.bf16.msra.mxu0 0
    %1276 = vmatprep.subr.bf16.mxu0 0
    %1277 = vmatpush2.bf16.msra.mxu0 0
    %1278 = vmatprep.subr.bf16.mxu0 0
    %1279 = vmatpush2.bf16.msra.mxu0 0
    %1280 = vmatprep.subr.bf16.mxu0 0
    %1281 = vmatpush2.bf16.msra.mxu0 0
    %1282 = vmatprep.subr.bf16.mxu0 0
    %1283 = vmatpush2.bf16.msra.mxu0 0
    %1284 = vmatprep.mubr.bf16.mxu0 0
    %1285 = vmatmul.mubr.bf16.gmra.mxu0 %v1247
    %v1286 = vpop.f32.mrf.mxu0
    %v1287 = vadd.f32 0.0, %v1286
    %v1288 = vpop.f32.mrf.mxu0
    %v1289 = vpop.f32.mrf.mxu0
    %v1290 = vpop.f32.mrf.mxu0
    %1291 = vdwg.mxu0
    %1292 = vrot.lane.b32.xlu0 %v1068, 112
    %v1293 = vpop.permute.xlu0 %1292
    %1294 = vrot.lane.b32.xlu0 %v1068, 80
    %v1295 = vpop.permute.xlu0 %1294
    %v1297 = vsel %vm199, %v1293, 0
    %v1300 = vsel %vm199, %v1295, 0
    %1302 = vmatprep.subr.bf16.mxu0 0
    %1303 = vmatpush1.bf16.xpose.msra.mxu0 0
    %1304 = vmatprep.subr.bf16.mxu0 0
    %1305 = vmatpush1.bf16.xpose.msra.mxu0 0
    %1306 = vmatprep.subr.bf16.mxu0 0
    %1307 = vmatpush1.bf16.xpose.msra.mxu0 0
    %1308 = vmatprep.subr.bf16.mxu0 0
    %1309 = vmatpush1.bf16.xpose.msra.mxu0 0
    %1310 = vmatprep.subr.bf16.mxu0 0
    %1311 = vmatpush1.bf16.xpose.msra.mxu0 0
    %1312 = vmatprep.subr.bf16.mxu0 0
    %1313 = vmatpush1.bf16.xpose.msra.mxu0 0
    %1314 = vmatprep.subr.bf16.mxu0 0
    %1315 = vmatpush1.bf16.xpose.msra.mxu0 0
    %1316 = vmatprep.subr.bf16.mxu0 0
    %1317 = vmatpush1.bf16.xpose.msra.mxu0 %v1300
    %1318 = vmatprep.subr.bf16.mxu0 0
    %1319 = vmatpush2.bf16.xpose.msra.mxu0 0
    %1320 = vmatprep.subr.bf16.mxu0 0
    %1321 = vmatpush2.bf16.xpose.msra.mxu0 0
    %1322 = vmatprep.subr.bf16.mxu0 0
    %1323 = vmatpush2.bf16.xpose.msra.mxu0 0
    %1324 = vmatprep.subr.bf16.mxu0 0
    %1325 = vmatpush2.bf16.xpose.msra.mxu0 0
    %1326 = vmatprep.subr.bf16.mxu0 0
    %1327 = vmatpush2.bf16.xpose.msra.mxu0 0
    %1328 = vmatprep.subr.bf16.mxu0 0
    %1329 = vmatpush2.bf16.xpose.msra.mxu0 0
    %1330 = vmatprep.subr.bf16.mxu0 0
    %1331 = vmatpush2.bf16.xpose.msra.mxu0 0
    %1332 = vmatprep.subr.bf16.mxu0 0
    %1333 = vmatpush2.bf16.xpose.msra.mxu0 0
    %1334 = vmatprep.mubr.bf16.mxu0 0
    %1335 = vmatmul.mubr.bf16.gmra.mxu0 %v1297
    %v1336 = vpop.f32.mrf.mxu0
    %v1337 = vadd.f32 0.0, %v1336
    %v1338 = vpop.f32.mrf.mxu0
    %v1339 = vpop.f32.mrf.mxu0
    %v1340 = vpop.f32.mrf.mxu0
    %1341 = vdwg.mxu0
    %1342 = vrot.lane.b32.xlu0 %v1069, 112
    %v1343 = vpop.permute.xlu0 %1342
    %1344 = vrot.lane.b32.xlu0 %v1069, 80
    %v1345 = vpop.permute.xlu0 %1344
    %v1347 = vsel %vm199, %v1343, 0
    %v1350 = vsel %vm199, %v1345, 0
    %1352 = vmatprep.subr.bf16.mxu0 0
    %1353 = vmatpush1.bf16.xpose.msra.mxu0 0
    %1354 = vmatprep.subr.bf16.mxu0 0
    %1355 = vmatpush1.bf16.xpose.msra.mxu0 0
    %1356 = vmatprep.subr.bf16.mxu0 0
    %1357 = vmatpush1.bf16.xpose.msra.mxu0 0
    %1358 = vmatprep.subr.bf16.mxu0 0
    %1359 = vmatpush1.bf16.xpose.msra.mxu0 0
    %1360 = vmatprep.subr.bf16.mxu0 0
    %1361 = vmatpush1.bf16.xpose.msra.mxu0 0
    %1362 = vmatprep.subr.bf16.mxu0 0
    %1363 = vmatpush1.bf16.xpose.msra.mxu0 0
    %1364 = vmatprep.subr.bf16.mxu0 0
    %1365 = vmatpush1.bf16.xpose.msra.mxu0 0
    %1366 = vmatprep.subr.bf16.mxu0 0
    %1367 = vmatpush1.bf16.xpose.msra.mxu0 %v1350
    %1368 = vmatprep.subr.bf16.mxu0 0
    %1369 = vmatpush2.bf16.xpose.msra.mxu0 0
    %1370 = vmatprep.subr.bf16.mxu0 0
    %1371 = vmatpush2.bf16.xpose.msra.mxu0 0
    %1372 = vmatprep.subr.bf16.mxu0 0
    %1373 = vmatpush2.bf16.xpose.msra.mxu0 0
    %1374 = vmatprep.subr.bf16.mxu0 0
    %1375 = vmatpush2.bf16.xpose.msra.mxu0 0
    %1376 = vmatprep.subr.bf16.mxu0 0
    %1377 = vmatpush2.bf16.xpose.msra.mxu0 0
    %1378 = vmatprep.subr.bf16.mxu0 0
    %1379 = vmatpush2.bf16.xpose.msra.mxu0 0
    %1380 = vmatprep.subr.bf16.mxu0 0
    %1381 = vmatpush2.bf16.xpose.msra.mxu0 0
    %1382 = vmatprep.subr.bf16.mxu0 0
    %1383 = vmatpush2.bf16.xpose.msra.mxu0 0
    %1384 = vmatprep.mubr.bf16.mxu0 0
    %1385 = vmatmul.mubr.bf16.gmra.mxu0 %v1347
    %v1386 = vpop.f32.mrf.mxu0
    %v1387 = vadd.f32 0.0, %v1386
    %v1388 = vpop.f32.mrf.mxu0
    %v1389 = vpop.f32.mrf.mxu0
    %v1390 = vpop.f32.mrf.mxu0
    %1391 = vdwg.mxu0
    %v1392 = vmul.f32 %v1337, 0.25
    %v1393 = vmul.f32 %v1387, 0.25
    %v1394 = vadd.f32 %v1392, %v302
    %v1395 = vadd.f32 %v1393, %v306
    %v1396 = vsel %vm311, %v1394, -inf
    %1397 = vmax.xlane.f32.xlu0 %v1396
    %v1398 = vpop.xlane.xlu0 %1397
    %v1399 = vsel %vm311, %v1395, -inf
    %1400 = vmax.xlane.f32.xlu0 %v1399
    %v1401 = vpop.xlane.xlu0 %1400
    %v1402 = vsub.f32 %v1394, %v1398
    %v1403 = vsub.f32 %v1395, %v1401
    %v1404 = vmul.f32 %v1402, 1.442695
    %v1405 = vpow.pop %v1404
    %v1406 = vmul.f32 %v1403, 1.442695
    %v1407 = vpow.pop %v1406
    %v1408 = vsel %vm311, %v1405, 0.0
    %1409 = vadd.xlane.f32.xlu0 %v1408
    %v1410 = vpop.xlane.xlu0 %1409
    %v1411 = vsel %vm311, %v1407, 0.0
    %1412 = vadd.xlane.f32.xlu0 %v1411
    %v1413 = vpop.xlane.xlu0 %1412
    %v1414 = vrcp.pop %v1410
    %v1415 = vmul.f32 %v1405, %v1414
    %v1416 = vrcp.pop %v1413
    %v1417 = vmul.f32 %v1407, %v1416
    %v1418 = vpack.c.bf16 %v1415, %v1415
    %v1419 = vpack.c.bf16 %v1417, %v1417
    %1420 = vrot.lane.b32.xlu0 %v1068, 48
    %v1421 = vpop.permute.xlu0 %1420
    %v1423 = vsel %vm311, %v1418, 0
    %v1426 = vsel %vm341, %v1421, 0
    %1428 = vmatprep.subr.bf16.mxu0 0
    %1429 = vmatpush1.bf16.msra.mxu0 0
    %1430 = vmatprep.subr.bf16.mxu0 0
    %1431 = vmatpush1.bf16.msra.mxu0 0
    %1432 = vmatprep.subr.bf16.mxu0 0
    %1433 = vmatpush1.bf16.msra.mxu0 0
    %1434 = vmatprep.subr.bf16.mxu0 0
    %1435 = vmatpush1.bf16.msra.mxu0 0
    %1436 = vmatprep.subr.bf16.mxu0 0
    %1437 = vmatpush1.bf16.msra.mxu0 0
    %1438 = vmatprep.subr.bf16.mxu0 0
    %1439 = vmatpush1.bf16.msra.mxu0 0
    %1440 = vmatprep.subr.bf16.mxu0 0
    %1441 = vmatpush1.bf16.msra.mxu0 0
    %1442 = vmatprep.subr.bf16.mxu0 0
    %1443 = vmatpush1.bf16.msra.mxu0 %v1426
    %1444 = vmatprep.subr.bf16.mxu0 0
    %1445 = vmatpush2.bf16.msra.mxu0 0
    %1446 = vmatprep.subr.bf16.mxu0 0
    %1447 = vmatpush2.bf16.msra.mxu0 0
    %1448 = vmatprep.subr.bf16.mxu0 0
    %1449 = vmatpush2.bf16.msra.mxu0 0
    %1450 = vmatprep.subr.bf16.mxu0 0
    %1451 = vmatpush2.bf16.msra.mxu0 0
    %1452 = vmatprep.subr.bf16.mxu0 0
    %1453 = vmatpush2.bf16.msra.mxu0 0
    %1454 = vmatprep.subr.bf16.mxu0 0
    %1455 = vmatpush2.bf16.msra.mxu0 0
    %1456 = vmatprep.subr.bf16.mxu0 0
    %1457 = vmatpush2.bf16.msra.mxu0 0
    %1458 = vmatprep.subr.bf16.mxu0 0
    %1459 = vmatpush2.bf16.msra.mxu0 0
    %1460 = vmatprep.mubr.bf16.mxu0 0
    %1461 = vmatmul.mubr.bf16.gmra.mxu0 %v1423
    %v1462 = vpop.f32.mrf.mxu0
    %v1463 = vadd.f32 0.0, %v1462
    %v1464 = vpop.f32.mrf.mxu0
    %v1465 = vpop.f32.mrf.mxu0
    %v1466 = vpop.f32.mrf.mxu0
    %1467 = vdwg.mxu0
    %1468 = vrot.lane.b32.xlu0 %v1069, 48
    %v1469 = vpop.permute.xlu0 %1468
    %v1471 = vsel %vm311, %v1419, 0
    %v1474 = vsel %vm341, %v1469, 0
    %1476 = vmatprep.subr.bf16.mxu0 0
    %1477 = vmatpush1.bf16.msra.mxu0 0
    %1478 = vmatprep.subr.bf16.mxu0 0
    %1479 = vmatpush1.bf16.msra.mxu0 0
    %1480 = vmatprep.subr.bf16.mxu0 0
    %1481 = vmatpush1.bf16.msra.mxu0 0
    %1482 = vmatprep.subr.bf16.mxu0 0
    %1483 = vmatpush1.bf16.msra.mxu0 0
    %1484 = vmatprep.subr.bf16.mxu0 0
    %1485 = vmatpush1.bf16.msra.mxu0 0
    %1486 = vmatprep.subr.bf16.mxu0 0
    %1487 = vmatpush1.bf16.msra.mxu0 0
    %1488 = vmatprep.subr.bf16.mxu0 0
    %1489 = vmatpush1.bf16.msra.mxu0 0
    %1490 = vmatprep.subr.bf16.mxu0 0
    %1491 = vmatpush1.bf16.msra.mxu0 %v1474
    %1492 = vmatprep.subr.bf16.mxu0 0
    %1493 = vmatpush2.bf16.msra.mxu0 0
    %1494 = vmatprep.subr.bf16.mxu0 0
    %1495 = vmatpush2.bf16.msra.mxu0 0
    %1496 = vmatprep.subr.bf16.mxu0 0
    %1497 = vmatpush2.bf16.msra.mxu0 0
    %1498 = vmatprep.subr.bf16.mxu0 0
    %1499 = vmatpush2.bf16.msra.mxu0 0
    %1500 = vmatprep.subr.bf16.mxu0 0
    %1501 = vmatpush2.bf16.msra.mxu0 0
    %1502 = vmatprep.subr.bf16.mxu0 0
    %1503 = vmatpush2.bf16.msra.mxu0 0
    %1504 = vmatprep.subr.bf16.mxu0 0
    %1505 = vmatpush2.bf16.msra.mxu0 0
    %1506 = vmatprep.subr.bf16.mxu0 0
    %1507 = vmatpush2.bf16.msra.mxu0 0
    %1508 = vmatprep.mubr.bf16.mxu0 0
    %1509 = vmatmul.mubr.bf16.gmra.mxu0 %v1471
    %v1510 = vpop.f32.mrf.mxu0
    %v1511 = vadd.f32 0.0, %v1510
    %v1512 = vpop.f32.mrf.mxu0
    %v1513 = vpop.f32.mrf.mxu0
    %v1514 = vpop.f32.mrf.mxu0
    %1515 = vdwg.mxu0
    %1518 = vrot.lane.b32.xlu0 %v1463, 16
    %v1519 = vpop.permute.xlu0 %1518
    %1520 = vrot.lane.b32.xlu0 %v1511, 16
    %v1521 = vpop.permute.xlu0 %1520
    %v1524 = vsel %vm199, %v1239, %v1519
    %v1525 = vsel %vm199, %v1287, %v1521
    %s1526 = scalar_lea.vmem %s5, 16
    %v1527 = vld [vmem:[%s1526] sm:$0xf]
    %v1528 = vld [vmem:[%s1526 + $0x4] sm:$0xf]
    %v1529 = vld [vmem:[%s1526 + $0x8] sm:$0xf]
    %v1530 = vld [vmem:[%s1526 + $0xc] sm:$0xf]
    %v1531 = vpack.c.bf16 %v1525, %v1524
    %s1532 = scalar_lea.vmem %s6, 1
    %v1533 = vld [vmem:[%s1532] sm:$0x1]
    %v1535 = vlaneseq
    %v1536 = vshrl.u32 %v1535, 7
    %v1537 = vsub.s32 0, %v1536
    %v1538 = vrot.slane %v1533, %v1537
    %v1544 = vunpack.c.l.b16 %v1527
    %v1545 = vunpack.c.l.b16 %v1528
    %v1546 = vunpack.c.l.b16 %v1529
    %v1547 = vunpack.c.l.b16 %v1530
    %v1548 = vpack.c.b16 %v1545, %v1544
    %v1549 = vpack.c.b16 %v1547, %v1546
    %v1553 = vsel %vm80, %v1531, 0
    %1555 = vmatprep.subr.bf16.mxu0 0
    %1556 = vmatpush1.bf16.msra.mxu0 0
    %1557 = vmatprep.subr.bf16.mxu0 0
    %1558 = vmatpush1.bf16.msra.mxu0 0
    %1559 = vmatprep.subr.bf16.mxu0 0
    %1560 = vmatpush1.bf16.msra.mxu0 0
    %1561 = vmatprep.subr.bf16.mxu0 0
    %1562 = vmatpush1.bf16.msra.mxu0 0
    %1563 = vmatprep.subr.bf16.mxu0 0
    %1564 = vmatpush1.bf16.msra.mxu0 0
    %1565 = vmatprep.subr.bf16.mxu0 0
    %1566 = vmatpush1.bf16.msra.mxu0 0
    %1567 = vmatprep.subr.bf16.mxu0 0
    %1568 = vmatpush1.bf16.msra.mxu0 %v1549
    %1569 = vmatprep.subr.bf16.mxu0 0
    %1570 = vmatpush1.bf16.msra.mxu0 %v1548
    %1571 = vmatprep.subr.bf16.mxu0 0
    %1572 = vmatpush2.bf16.msra.mxu0 0
    %1573 = vmatprep.subr.bf16.mxu0 0
    %1574 = vmatpush2.bf16.msra.mxu0 0
    %1575 = vmatprep.subr.bf16.mxu0 0
    %1576 = vmatpush2.bf16.msra.mxu0 0
    %1577 = vmatprep.subr.bf16.mxu0 0
    %1578 = vmatpush2.bf16.msra.mxu0 0
    %1579 = vmatprep.subr.bf16.mxu0 0
    %1580 = vmatpush2.bf16.msra.mxu0 0
    %1581 = vmatprep.subr.bf16.mxu0 0
    %1582 = vmatpush2.bf16.msra.mxu0 0
    %1583 = vmatprep.subr.bf16.mxu0 0
    %1584 = vmatpush2.bf16.msra.mxu0 0
    %1585 = vmatprep.subr.bf16.mxu0 0
    %1586 = vmatpush2.bf16.msra.mxu0 0
    %1587 = vmatprep.mubr.bf16.mxu0 0
    %1588 = vmatmul.mubr.bf16.gmra.mxu0 %v1553
    %v1589 = vpop.f32.mrf.mxu0
    %v1590 = vadd.f32 %v1538, %v1589
    %v1591 = vpop.f32.mrf.mxu0
    %v1592 = vpop.f32.mrf.mxu0
    %v1593 = vadd.f32 %v1538, %v1592
    %v1594 = vpop.f32.mrf.mxu0
    %1595 = vdwg.mxu0
    %v1596 = vadd.f32 %v1590, %v996
    %v1597 = vadd.f32 %v1593, %v997
    %s1598 = scalar_lea.vmem %s7, 1
    %v1599 = vld [vmem:[%s1598] sm:$0x1]
    %s1600 = scalar_lea.vmem %s8, 1
    %v1601 = vld [vmem:[%s1600] sm:$0x1]
    %v1602 = vsel %vm80, %v1596, 0.0
    %1603 = vadd.xlane.f32.xlu0 %v1602
    %v1604 = vpop.xlane.xlu0 %1603
    %v1605 = vsel %vm80, %v1597, 0.0
    %1606 = vadd.xlane.f32.xlu0 %v1605
    %v1607 = vpop.xlane.xlu0 %1606
    %v1608 = vmul.f32 %v1604, %v87
    %v1609 = vmul.f32 %v1607, %v87
    %v1610 = vsub.f32 %v1596, %v1608
    %v1611 = vsub.f32 %v1597, %v1609
    %v1612 = vmul.f32 %v1610, %v1610
    %v1613 = vmul.f32 %v1611, %v1611
    %v1614 = vsel %vm80, %v1612, 0.0
    %1615 = vadd.xlane.f32.xlu0 %v1614
    %v1616 = vpop.xlane.xlu0 %1615
    %v1617 = vsel %vm80, %v1613, 0.0
    %1618 = vadd.xlane.f32.xlu0 %v1617
    %v1619 = vpop.xlane.xlu0 %1618
    %v1620 = vmul.f32 %v1616, %v87
    %v1621 = vmul.f32 %v1619, %v87
    %v1622 = vadd.f32 %v1620, 1e-12
    %v1623 = vadd.f32 %v1621, 1e-12
    %v1624 = vrsqrt.pop %v1622
    %v1625 = vrsqrt.pop %v1623
    %v1626 = vmul.f32 %v1610, %v1624
    %v1627 = vmul.f32 %v1611, %v1625
    %v1629 = vlaneseq
    %v1630 = vshrl.u32 %v1629, 7
    %v1631 = vsub.s32 0, %v1630
    %v1632 = vrot.slane %v1599, %v1631
    %v1634 = vmul.f32 %v1626, %v1632
    %v1635 = vmul.f32 %v1627, %v1632
    %v1637 = vlaneseq
    %v1638 = vshrl.u32 %v1637, 7
    %v1639 = vsub.s32 0, %v1638
    %v1640 = vrot.slane %v1601, %v1639
    %v1642 = vadd.f32 %v1634, %v1640
    %v1643 = vadd.f32 %v1635, %v1640
    %s1644 = scalar_lea.vmem %s9, 16
    %v1645 = vld [vmem:[%s1644] sm:$0xf]
    %v1646 = vld [vmem:[%s1644 + $0x4] sm:$0xf]
    %v1647 = vld [vmem:[%s1644 + $0x8] sm:$0xf]
    %v1648 = vld [vmem:[%s1644 + $0xc] sm:$0xf]
    %v1649 = vpack.c.bf16 %v1643, %v1642
    %s1650 = scalar_lea.vmem %s10, 1
    %v1651 = vld [vmem:[%s1650] sm:$0x1]
    %v1653 = vlaneseq
    %v1654 = vshrl.u32 %v1653, 7
    %v1655 = vsub.s32 0, %v1654
    %v1656 = vrot.slane %v1651, %v1655
    %v1662 = vunpack.c.l.b16 %v1645
    %v1663 = vunpack.c.l.b16 %v1646
    %v1664 = vunpack.c.l.b16 %v1647
    %v1665 = vunpack.c.l.b16 %v1648
    %v1666 = vpack.c.b16 %v1663, %v1662
    %v1667 = vpack.c.b16 %v1665, %v1664
    %v1671 = vsel %vm80, %v1649, 0
    %1673 = vmatprep.subr.bf16.mxu0 0
    %1674 = vmatpush1.bf16.msra.mxu0 0
    %1675 = vmatprep.subr.bf16.mxu0 0
    %1676 = vmatpush1.bf16.msra.mxu0 0
    %1677 = vmatprep.subr.bf16.mxu0 0
    %1678 = vmatpush1.bf16.msra.mxu0 0
    %1679 = vmatprep.subr.bf16.mxu0 0
    %1680 = vmatpush1.bf16.msra.mxu0 0
    %1681 = vmatprep.subr.bf16.mxu0 0
    %1682 = vmatpush1.bf16.msra.mxu0 0
    %1683 = vmatprep.subr.bf16.mxu0 0
    %1684 = vmatpush1.bf16.msra.mxu0 0
    %1685 = vmatprep.subr.bf16.mxu0 0
    %1686 = vmatpush1.bf16.msra.mxu0 %v1667
    %1687 = vmatprep.subr.bf16.mxu0 0
    %1688 = vmatpush1.bf16.msra.mxu0 %v1666
    %1689 = vmatprep.subr.bf16.mxu0 0
    %1690 = vmatpush2.bf16.msra.mxu0 0
    %1691 = vmatprep.subr.bf16.mxu0 0
    %1692 = vmatpush2.bf16.msra.mxu0 0
    %1693 = vmatprep.subr.bf16.mxu0 0
    %1694 = vmatpush2.bf16.msra.mxu0 0
    %1695 = vmatprep.subr.bf16.mxu0 0
    %1696 = vmatpush2.bf16.msra.mxu0 0
    %1697 = vmatprep.subr.bf16.mxu0 0
    %1698 = vmatpush2.bf16.msra.mxu0 0
    %1699 = vmatprep.subr.bf16.mxu0 0
    %1700 = vmatpush2.bf16.msra.mxu0 0
    %1701 = vmatprep.subr.bf16.mxu0 0
    %1702 = vmatpush2.bf16.msra.mxu0 0
    %1703 = vmatprep.subr.bf16.mxu0 0
    %1704 = vmatpush2.bf16.msra.mxu0 0
    %1705 = vmatprep.mubr.bf16.mxu0 0
    %1706 = vmatmul.mubr.bf16.gmra.mxu0 %v1671
    %v1707 = vpop.f32.mrf.mxu0
    %v1708 = vadd.f32 %v1656, %v1707
    %v1709 = vpop.f32.mrf.mxu0
    %v1710 = vpop.f32.mrf.mxu0
    %v1711 = vadd.f32 %v1656, %v1710
    %v1712 = vpop.f32.mrf.mxu0
    %1713 = vdwg.mxu0
    %v1714 = vmul.f32 %v1708, %v1708
    %v1715 = vmul.f32 %v1711, %v1711
    %v1716 = vmul.f32 %v1708, %v1714
    %v1717 = vmul.f32 %v1711, %v1715
    %v1718 = vmul.f32 %v1716, 0.044715
    %v1719 = vmul.f32 %v1717, 0.044715
    %v1720 = vadd.f32 %v1708, %v1718
    %v1721 = vadd.f32 %v1711, %v1719
    %v1722 = vmul.f32 %v1720, 0.7978846
    %v1723 = vmul.f32 %v1721, 0.7978846
    %v1724 = vtanh.pop %v1722
    %v1725 = vtanh.pop %v1723
    %v1726 = vadd.f32 %v1724, 1.0
    %v1727 = vadd.f32 %v1725, 1.0
    %v1728 = vmul.f32 %v1726, 0.5
    %v1729 = vmul.f32 %v1727, 0.5
    %v1730 = vmul.f32 %v1708, %v1728
    %v1731 = vmul.f32 %v1711, %v1729
    %s1732 = scalar_lea.vmem %s11, 32
    %v1733 = vld [vmem:[%s1732] sm:$0xf]
    %v1734 = vld [vmem:[%s1732 + $0x4] sm:$0xf]
    %v1735 = vld [vmem:[%s1732 + $0x8] sm:$0xf]
    %v1736 = vld [vmem:[%s1732 + $0xc] sm:$0xf]
    %v1737 = vld [vmem:[%s1732 + $0x10] sm:$0xf]
    %v1738 = vld [vmem:[%s1732 + $0x14] sm:$0xf]
    %v1739 = vld [vmem:[%s1732 + $0x18] sm:$0xf]
    %v1740 = vld [vmem:[%s1732 + $0x1c] sm:$0xf]
    %v1741 = vpack.c.bf16 %v1731, %v1730
    %s1742 = scalar_lea.vmem %s12, 1
    %v1743 = vld [vmem:[%s1742] sm:$0x1]
    %v1745 = vlaneseq
    %v1746 = vshrl.u32 %v1745, 7
    %v1747 = vsub.s32 0, %v1746
    %v1748 = vrot.slane %v1743, %v1747
    %v1758 = vunpack.c.l.b16 %v1733
    %v1759 = vunpack.c.l.b16 %v1734
    %v1760 = vunpack.c.l.b16 %v1735
    %v1761 = vunpack.c.l.b16 %v1736
    %v1762 = vunpack.c.l.b16 %v1737
    %v1763 = vunpack.c.l.b16 %v1738
    %v1764 = vunpack.c.l.b16 %v1739
    %v1765 = vunpack.c.l.b16 %v1740
    %v1766 = vpack.c.b16 %v1759, %v1758
    %v1767 = vpack.c.b16 %v1761, %v1760
    %v1768 = vpack.c.b16 %v1763, %v1762
    %v1769 = vpack.c.b16 %v1765, %v1764
    %v1775 = vsel %vm907, %v1741, 0
    %1777 = vmatprep.subr.bf16.mxu0 0
    %1778 = vmatpush1.bf16.msra.mxu0 0
    %1779 = vmatprep.subr.bf16.mxu0 0
    %1780 = vmatpush1.bf16.msra.mxu0 0
    %1781 = vmatprep.subr.bf16.mxu0 0
    %1782 = vmatpush1.bf16.msra.mxu0 0
    %1783 = vmatprep.subr.bf16.mxu0 0
    %1784 = vmatpush1.bf16.msra.mxu0 0
    %1785 = vmatprep.subr.bf16.mxu0 0
    %1786 = vmatpush1.bf16.msra.mxu0 %v1769
    %1787 = vmatprep.subr.bf16.mxu0 0
    %1788 = vmatpush1.bf16.msra.mxu0 %v1768
    %1789 = vmatprep.subr.bf16.mxu0 0
    %1790 = vmatpush1.bf16.msra.mxu0 %v1767
    %1791 = vmatprep.subr.bf16.mxu0 0
    %1792 = vmatpush1.bf16.msra.mxu0 %v1766
    %1793 = vmatprep.subr.bf16.mxu0 0
    %1794 = vmatpush2.bf16.msra.mxu0 0
    %1795 = vmatprep.subr.bf16.mxu0 0
    %1796 = vmatpush2.bf16.msra.mxu0 0
    %1797 = vmatprep.subr.bf16.mxu0 0
    %1798 = vmatpush2.bf16.msra.mxu0 0
    %1799 = vmatprep.subr.bf16.mxu0 0
    %1800 = vmatpush2.bf16.msra.mxu0 0
    %1801 = vmatprep.subr.bf16.mxu0 0
    %1802 = vmatpush2.bf16.msra.mxu0 0
    %1803 = vmatprep.subr.bf16.mxu0 0
    %1804 = vmatpush2.bf16.msra.mxu0 0
    %1805 = vmatprep.subr.bf16.mxu0 0
    %1806 = vmatpush2.bf16.msra.mxu0 0
    %1807 = vmatprep.subr.bf16.mxu0 0
    %1808 = vmatpush2.bf16.msra.mxu0 0
    %1809 = vmatprep.mubr.bf16.mxu0 0
    %1810 = vmatmul.mubr.bf16.gmra.mxu0 %v1775
    %v1811 = vpop.f32.mrf.mxu0
    %v1812 = vadd.f32 %v1748, %v1811
    %v1813 = vpop.f32.mrf.mxu0
    %v1814 = vpop.f32.mrf.mxu0
    %v1815 = vadd.f32 %v1748, %v1814
    %v1816 = vpop.f32.mrf.mxu0
    %1817 = vdwg.mxu0
    %v1818 = vadd.f32 %v1812, %v1642
    %v1819 = vadd.f32 %v1815, %v1643
    %s1820 = scalar_lea.vmem %s13, 1
    %v1821 = vld [vmem:[%s1820] sm:$0x1]
    %s1822 = scalar_lea.vmem %s14, 1
    %v1823 = vld [vmem:[%s1822] sm:$0x1]
    %v1824 = vsel %vm80, %v1818, 0.0
    %1825 = vadd.xlane.f32.xlu0 %v1824
    %v1826 = vpop.xlane.xlu0 %1825
    %v1827 = vsel %vm80, %v1819, 0.0
    %1828 = vadd.xlane.f32.xlu0 %v1827
    %v1829 = vpop.xlane.xlu0 %1828
    %v1830 = vmul.f32 %v1826, %v87
    %v1831 = vmul.f32 %v1829, %v87
    %v1832 = vsub.f32 %v1818, %v1830
    %v1833 = vsub.f32 %v1819, %v1831
    %v1834 = vmul.f32 %v1832, %v1832
    %v1835 = vmul.f32 %v1833, %v1833
    %v1836 = vsel %vm80, %v1834, 0.0
    %1837 = vadd.xlane.f32.xlu0 %v1836
    %v1838 = vpop.xlane.xlu0 %1837
    %v1839 = vsel %vm80, %v1835, 0.0
    %1840 = vadd.xlane.f32.xlu0 %v1839
    %v1841 = vpop.xlane.xlu0 %1840
    %v1842 = vmul.f32 %v1838, %v87
    %v1843 = vmul.f32 %v1841, %v87
    %v1844 = vadd.f32 %v1842, 1e-12
    %v1845 = vadd.f32 %v1843, 1e-12
    %v1846 = vrsqrt.pop %v1844
    %v1847 = vrsqrt.pop %v1845
    %v1848 = vmul.f32 %v1832, %v1846
    %v1849 = vmul.f32 %v1833, %v1847
    %v1851 = vlaneseq
    %v1852 = vshrl.u32 %v1851, 7
    %v1853 = vsub.s32 0, %v1852
    %v1854 = vrot.slane %v1821, %v1853
    %v1856 = vmul.f32 %v1848, %v1854
    %v1857 = vmul.f32 %v1849, %v1854
    %v1859 = vlaneseq
    %v1860 = vshrl.u32 %v1859, 7
    %v1861 = vsub.s32 0, %v1860
    %v1862 = vrot.slane %v1823, %v1861
    %v1864 = vadd.f32 %v1856, %v1862
    %v1865 = vadd.f32 %v1857, %v1862
    %v1866 = vld [vmem:[%s15] sm:$0xf]
    %v1867 = vld [vmem:[%s15 + $0x4] sm:$0xf]
    %v1868 = vld [vmem:[%s15 + $0x8] sm:$0xf]
    %v1869 = vld [vmem:[%s15 + $0xc] sm:$0xf]
    %v1870 = vpack.c.bf16 %v1865, %v1864
    %v1871 = vld [vmem:[%s16] sm:$0x1]
    %v1873 = vlaneseq
    %v1874 = vshrl.u32 %v1873, 7
    %v1875 = vsub.s32 0, %v1874
    %v1876 = vrot.slane %v1871, %v1875
    %v1882 = vunpack.c.l.b16 %v1866
    %v1883 = vunpack.c.l.b16 %v1867
    %v1884 = vunpack.c.l.b16 %v1868
    %v1885 = vunpack.c.l.b16 %v1869
    %v1886 = vpack.c.b16 %v1883, %v1882
    %v1887 = vpack.c.b16 %v1885, %v1884
    %v1891 = vsel %vm80, %v1870, 0
    %1893 = vmatprep.subr.bf16.mxu0 0
    %1894 = vmatpush1.bf16.msra.mxu0 0
    %1895 = vmatprep.subr.bf16.mxu0 0
    %1896 = vmatpush1.bf16.msra.mxu0 0
    %1897 = vmatprep.subr.bf16.mxu0 0
    %1898 = vmatpush1.bf16.msra.mxu0 0
    %1899 = vmatprep.subr.bf16.mxu0 0
    %1900 = vmatpush1.bf16.msra.mxu0 0
    %1901 = vmatprep.subr.bf16.mxu0 0
    %1902 = vmatpush1.bf16.msra.mxu0 0
    %1903 = vmatprep.subr.bf16.mxu0 0
    %1904 = vmatpush1.bf16.msra.mxu0 0
    %1905 = vmatprep.subr.bf16.mxu0 0
    %1906 = vmatpush1.bf16.msra.mxu0 %v1887
    %1907 = vmatprep.subr.bf16.mxu0 0
    %1908 = vmatpush1.bf16.msra.mxu0 %v1886
    %1909 = vmatprep.subr.bf16.mxu0 0
    %1910 = vmatpush2.bf16.msra.mxu0 0
    %1911 = vmatprep.subr.bf16.mxu0 0
    %1912 = vmatpush2.bf16.msra.mxu0 0
    %1913 = vmatprep.subr.bf16.mxu0 0
    %1914 = vmatpush2.bf16.msra.mxu0 0
    %1915 = vmatprep.subr.bf16.mxu0 0
    %1916 = vmatpush2.bf16.msra.mxu0 0
    %1917 = vmatprep.subr.bf16.mxu0 0
    %1918 = vmatpush2.bf16.msra.mxu0 0
    %1919 = vmatprep.subr.bf16.mxu0 0
    %1920 = vmatpush2.bf16.msra.mxu0 0
    %1921 = vmatprep.subr.bf16.mxu0 0
    %1922 = vmatpush2.bf16.msra.mxu0 0
    %1923 = vmatprep.subr.bf16.mxu0 0
    %1924 = vmatpush2.bf16.msra.mxu0 0
    %1925 = vmatprep.mubr.bf16.mxu0 0
    %1926 = vmatmul.mubr.bf16.gmra.mxu0 %v1891
    %v1927 = vpop.f32.mrf.mxu0
    %v1928 = vadd.f32 %v1876, %v1927
    %v1929 = vpop.f32.mrf.mxu0
    %v1930 = vpop.f32.mrf.mxu0
    %v1931 = vadd.f32 %v1876, %v1930
    %v1932 = vpop.f32.mrf.mxu0
    %1933 = vdwg.mxu0
    %v1934 = vld [vmem:[%s17] sm:$0xff]
    %v1935 = vld [vmem:[%s18] sm:$0x1]
    %v1936 = vld [vmem:[%s19] sm:$0x1]
    %v1937 = vld [vmem:[%s22] sm:$0xff]
    %v1938 = vld [vmem:[%s22 + $0x8] sm:$0xff]
    %v1939 = vld [vmem:[%s21] sm:$0xff]
    %v1940 = vld [vmem:[%s21 + $0x8] sm:$0xff]
    %v1941 = vsel %vm311, %v1934, -inf
    %v1942 = vrot.slane %v1941, 4
    %v1943 = vmax.f32 %v1941, %v1942
    %v1944 = vrot.slane %v1943, 2
    %v1945 = vmax.f32 %v1943, %v1944
    %v1946 = vrot.slane %v1945, 1
    %v1947 = vmax.f32 %v1945, %v1946
    %v1948 = vsub.f32 %v1934, %v1947
    %v1949 = vmul.f32 %v1948, 1.442695
    %v1950 = vpow.pop %v1949
    %v1951 = vmul.f32 %v1928, %v1937
    %v1952 = vmul.f32 %v1931, %v1938
    %v1953 = vsel %vm311, %v1951, 0.0
    %1954 = vadd.xlane.f32.xlu0 %v1953
    %v1955 = vpop.xlane.xlu0 %1954
    %v1956 = vsel %vm311, %v1952, 0.0
    %1957 = vadd.xlane.f32.xlu0 %v1956
    %v1958 = vpop.xlane.xlu0 %1957
    %v1959 = vmul.f32 %v1955, %v1939
    %v1960 = vmul.f32 %v1958, %v1940
    %vm1961 = vcmask 7168
    %v1962 = vsel %vm1961, %v1959, 0.0
    %v1963 = vrot.slane %v1962, 4
    %v1964 = vadd.f32 %v1962, %v1963
    %v1965 = vrot.slane %v1964, 2
    %v1966 = vadd.f32 %v1964, %v1965
    %v1967 = vrot.slane %v1966, 1
    %v1968 = vadd.f32 %v1966, %v1967
    %v1969 = vsel %vm1961, %v1960, 0.0
    %v1970 = vrot.slane %v1969, 4
    %v1971 = vadd.f32 %v1969, %v1970
    %v1972 = vrot.slane %v1971, 2
    %v1973 = vadd.f32 %v1971, %v1972
    %v1974 = vrot.slane %v1973, 1
    %v1975 = vadd.f32 %v1973, %v1974
    %v1977 = vlaneseq
    %v1978 = vshrl.u32 %v1977, 7
    %v1979 = vsub.s32 0, %v1978
    %v1980 = vrot.slane %v1935, %v1979
    %v1982 = vmul.f32 %v1937, %v1980
    %v1983 = vmul.f32 %v1938, %v1980
    %v1986 = vrot.slane %v1983, 7
    %vm1987 = vcmask 1041409
    %v1988 = vsel %vm1987, %v1986, %v1982
    %vm1990 = vcmask 58368
    %v1991 = vsel %vm1990, %v1988, 0.0
    %1992 = vadd.xlane.f32.xlu0 %v1991
    %v1993 = vpop.xlane.xlu0 %1992
    %v1996 = vcombine.high %v1937, %v1937
    %v1998 = vunpack.c.l.s4 1966171168
    %v1999 = vunpack.c.0.s8 %v1998
    %v2000 = vlaneseq
    %v2001 = vshrl.u32 %v2000, 7
    %v2002 = vsub.s32 %v1999, %v2001
    %v2003 = vrot.slane %v1937, %v2002
    %v2005 = vunpack.c.l.s4 1966171168
    %v2006 = vunpack.c.0.s8 %v2005
    %v2007 = vlaneseq
    %v2008 = vshrl.u32 %v2007, 7
    %v2009 = vsub.s32 %v2006, %v2008
    %v2010 = vrot.slane %v1996, %v2009
    %v2011 = vcombine.high %v2003, %v2003
    %v2012 = vcombine.high %v2010, %v2010
    %v2014 = vunpack.c.l.s4 1966171168
    %v2015 = vunpack.c.0.s8 %v2014
    %v2016 = vlaneseq
    %v2017 = vshrl.u32 %v2016, 7
    %v2018 = vsub.s32 %v2015, %v2017
    %v2019 = vrot.slane %v2003, %v2018
    %v2021 = vunpack.c.l.s4 1966171168
    %v2022 = vunpack.c.0.s8 %v2021
    %v2023 = vlaneseq
    %v2024 = vshrl.u32 %v2023, 7
    %v2025 = vsub.s32 %v2022, %v2024
    %v2026 = vrot.slane %v2010, %v2025
    %v2028 = vunpack.c.l.s4 1966171168
    %v2029 = vunpack.c.0.s8 %v2028
    %v2030 = vlaneseq
    %v2031 = vshrl.u32 %v2030, 7
    %v2032 = vsub.s32 %v2029, %v2031
    %v2033 = vrot.slane %v2011, %v2032
    %v2035 = vunpack.c.l.s4 1966171168
    %v2036 = vunpack.c.0.s8 %v2035
    %v2037 = vlaneseq
    %v2038 = vshrl.u32 %v2037, 7
    %v2039 = vsub.s32 %v2036, %v2038
    %v2040 = vrot.slane %v2012, %v2039
    %v2041 = vcombine.high %v2019, %v2019
    %v2042 = vcombine.high %v2026, %v2026
    %v2043 = vcombine.high %v2033, %v2033
    %v2044 = vcombine.high %v1938, %v1938
    %v2046 = vunpack.c.l.s4 1966171168
    %v2047 = vunpack.c.0.s8 %v2046
    %v2048 = vlaneseq
    %v2049 = vshrl.u32 %v2048, 7
    %v2050 = vsub.s32 %v2047, %v2049
    %v2051 = vrot.slane %v1938, %v2050
    %v2053 = vunpack.c.l.s4 1966171168
    %v2054 = vunpack.c.0.s8 %v2053
    %v2055 = vlaneseq
    %v2056 = vshrl.u32 %v2055, 7
    %v2057 = vsub.s32 %v2054, %v2056
    %v2058 = vrot.slane %v2044, %v2057
    %v2059 = vcombine.high %v2051, %v2051
    %v2060 = vcombine.high %v2058, %v2058
    %v2062 = vunpack.c.l.s4 1966171168
    %v2063 = vunpack.c.0.s8 %v2062
    %v2064 = vlaneseq
    %v2065 = vshrl.u32 %v2064, 7
    %v2066 = vsub.s32 %v2063, %v2065
    %v2067 = vrot.slane %v2051, %v2066
    %v2069 = vunpack.c.l.s4 1966171168
    %v2070 = vunpack.c.0.s8 %v2069
    %v2071 = vlaneseq
    %v2072 = vshrl.u32 %v2071, 7
    %v2073 = vsub.s32 %v2070, %v2072
    %v2074 = vrot.slane %v2058, %v2073
    %v2076 = vunpack.c.l.s4 1966171168
    %v2077 = vunpack.c.0.s8 %v2076
    %v2078 = vlaneseq
    %v2079 = vshrl.u32 %v2078, 7
    %v2080 = vsub.s32 %v2077, %v2079
    %v2081 = vrot.slane %v2059, %v2080
    %v2083 = vunpack.c.l.s4 1966171168
    %v2084 = vunpack.c.0.s8 %v2083
    %v2085 = vlaneseq
    %v2086 = vshrl.u32 %v2085, 7
    %v2087 = vsub.s32 %v2084, %v2086
    %v2088 = vrot.slane %v2060, %v2087
    %v2089 = vcombine.high %v2067, %v2067
    %v2090 = vcombine.high %v2074, %v2074
    %v2091 = vcombine.high %v2081, %v2081
    %v2092 = vcombine.low %v2019, %v2033
    %v2093 = vcombine.low %v2041, %v2043
    %v2094 = vcombine.low %v2026, %v2040
    %v2095 = vcombine.low %v2042, %v2067
    %v2097 = vunpack.c.l.s4 1966171168
    %v2098 = vunpack.c.0.s8 %v2097
    %v2099 = vlaneseq
    %v2100 = vshrl.u32 %v2099, 7
    %v2101 = vsub.s32 %v2098, %v2100
    %v2102 = vrot.slane %v2092, %v2101
    %v2104 = vunpack.c.l.s4 1966171168
    %v2105 = vunpack.c.0.s8 %v2104
    %v2106 = vlaneseq
    %v2107 = vshrl.u32 %v2106, 7
    %v2108 = vsub.s32 %v2105, %v2107
    %v2109 = vrot.slane %v2093, %v2108
    %v2111 = vunpack.c.l.s4 1966171168
    %v2112 = vunpack.c.0.s8 %v2111
    %v2113 = vlaneseq
    %v2114 = vshrl.u32 %v2113, 7
    %v2115 = vsub.s32 %v2112, %v2114
    %v2116 = vrot.slane %v2094, %v2115
    %v2118 = vunpack.c.l.s4 1966171168
    %v2119 = vunpack.c.0.s8 %v2118
    %v2120 = vlaneseq
    %v2121 = vshrl.u32 %v2120, 7
    %v2122 = vsub.s32 %v2119, %v2121
    %v2123 = vrot.slane %v2095, %v2122
    %v2124 = vcombine.low %v2102, %v2109
    %v2125 = vcombine.low %v2116, %v2123
    %v2127 = vunpack.c.l.s4 1966171168
    %v2128 = vunpack.c.0.s8 %v2127
    %v2129 = vlaneseq
    %v2130 = vshrl.u32 %v2129, 7
    %v2131 = vsub.s32 %v2128, %v2130
    %v2132 = vrot.slane %v2124, %v2131
    %v2134 = vunpack.c.l.s4 1966171168
    %v2135 = vunpack.c.0.s8 %v2134
    %v2136 = vlaneseq
    %v2137 = vshrl.u32 %v2136, 7
    %v2138 = vsub.s32 %v2135, %v2137
    %v2139 = vrot.slane %v2125, %v2138
    %v2140 = vcombine.low %v2132, %v2139
    %v2141 = vcombine.low %v2081, %v2089
    %v2142 = vcombine.low %v2091, %v2074
    %v2143 = vcombine.low %v2088, %v2090
    %v2145 = vunpack.c.l.s4 1966171168
    %v2146 = vunpack.c.0.s8 %v2145
    %v2147 = vlaneseq
    %v2148 = vshrl.u32 %v2147, 7
    %v2149 = vsub.s32 %v2146, %v2148
    %v2150 = vrot.slane %v2141, %v2149
    %v2152 = vunpack.c.l.s4 1966171168
    %v2153 = vunpack.c.0.s8 %v2152
    %v2154 = vlaneseq
    %v2155 = vshrl.u32 %v2154, 7
    %v2156 = vsub.s32 %v2153, %v2155
    %v2157 = vrot.slane %v2142, %v2156
    %v2159 = vunpack.c.l.s4 1966171168
    %v2160 = vunpack.c.0.s8 %v2159
    %v2161 = vlaneseq
    %v2162 = vshrl.u32 %v2161, 7
    %v2163 = vsub.s32 %v2160, %v2162
    %v2164 = vrot.slane %v2143, %v2163
    %v2165 = vcombine.low %v2150, %v2157
    %v2167 = vunpack.c.l.s4 1966171168
    %v2168 = vunpack.c.0.s8 %v2167
    %v2169 = vlaneseq
    %v2170 = vshrl.u32 %v2169, 7
    %v2171 = vsub.s32 %v2168, %v2170
    %v2172 = vrot.slane %v2165, %v2171
    %v2174 = vunpack.c.l.s4 1966171168
    %v2175 = vunpack.c.0.s8 %v2174
    %v2176 = vlaneseq
    %v2177 = vshrl.u32 %v2176, 7
    %v2178 = vsub.s32 %v2175, %v2177
    %v2179 = vrot.slane %v2164, %v2178
    %v2180 = vcombine.low %v2172, %v2179
    %v2181 = vsel %vm311, %v2140, 0
    %v2183 = vsel %vm311, %v2180, 0
    %2185 = vmatprep.subr.mxu0 0.0
    %2186 = vmatpush1.msra.mxu0 0.0
    %2187 = vmatprep.subr.mxu0 0.0
    %2188 = vmatpush1.msra.mxu0 0.0
    %2189 = vmatprep.subr.mxu0 0.0
    %2190 = vmatpush1.msra.mxu0 0.0
    %2191 = vmatprep.subr.mxu0 0.0
    %2192 = vmatpush1.msra.mxu0 0.0
    %2193 = vmatprep.subr.mxu0 0.0
    %2194 = vmatpush1.msra.mxu0 0.0
    %2195 = vmatprep.subr.mxu0 0.0
    %2196 = vmatpush1.msra.mxu0 0.0
    %2197 = vmatprep.subr.mxu0 0.0
    %2198 = vmatpush1.msra.mxu0 0.0
    %2199 = vmatprep.subr.mxu0 0.0
    %2200 = vmatpush1.msra.mxu0 0.0
    %2201 = vmatprep.subr.mxu0 0.0
    %2202 = vmatpush1.msra.mxu0 0.0
    %2203 = vmatprep.subr.mxu0 0.0
    %2204 = vmatpush1.msra.mxu0 0.0
    %2205 = vmatprep.subr.mxu0 0.0
    %2206 = vmatpush1.msra.mxu0 0.0
    %2207 = vmatprep.subr.mxu0 0.0
    %2208 = vmatpush1.msra.mxu0 0.0
    %2209 = vmatprep.subr.mxu0 0.0
    %2210 = vmatpush1.msra.mxu0 0.0
    %2211 = vmatprep.subr.mxu0 0.0
    %2212 = vmatpush1.msra.mxu0 0.0
    %2213 = vmatprep.subr.mxu0 0.0
    %2214 = vmatpush1.msra.mxu0 0.0
    %2215 = vmatprep.subr.mxu0 0.0
    %2216 = vmatpush1.msra.mxu0 %v1934
    %2217 = vmatprep.subr.mxu0 0.0
    %2218 = vmatpush2.msra.mxu0 0.0
    %2219 = vmatprep.subr.mxu0 0.0
    %2220 = vmatpush2.msra.mxu0 0.0
    %2221 = vmatprep.subr.mxu0 0.0
    %2222 = vmatpush2.msra.mxu0 0.0
    %2223 = vmatprep.subr.mxu0 0.0
    %2224 = vmatpush2.msra.mxu0 0.0
    %2225 = vmatprep.subr.mxu0 0.0
    %2226 = vmatpush2.msra.mxu0 0.0
    %2227 = vmatprep.subr.mxu0 0.0
    %2228 = vmatpush2.msra.mxu0 0.0
    %2229 = vmatprep.subr.mxu0 0.0
    %2230 = vmatpush2.msra.mxu0 0.0
    %2231 = vmatprep.subr.mxu0 0.0
    %2232 = vmatpush2.msra.mxu0 0.0
    %2233 = vmatprep.subr.mxu0 0.0
    %2234 = vmatpush2.msra.mxu0 0.0
    %2235 = vmatprep.subr.mxu0 0.0
    %2236 = vmatpush2.msra.mxu0 0.0
    %2237 = vmatprep.subr.mxu0 0.0
    %2238 = vmatpush2.msra.mxu0 0.0
    %2239 = vmatprep.subr.mxu0 0.0
    %2240 = vmatpush2.msra.mxu0 0.0
    %2241 = vmatprep.subr.mxu0 0.0
    %2242 = vmatpush2.msra.mxu0 0.0
    %2243 = vmatprep.subr.mxu0 0.0
    %2244 = vmatpush2.msra.mxu0 0.0
    %2245 = vmatprep.subr.mxu0 0.0
    %2246 = vmatpush2.msra.mxu0 0.0
    %2247 = vmatprep.subr.mxu0 0.0
    %2248 = vmatpush2.msra.mxu0 0.0
    %2249 = vmatprep.mubr.f32.mxu0 0.0
    %2250 = vmatmul.mubr.f32.gmra.mxu0 %v2181
    %v2251 = vpop.f32.mrf.mxu0
    %v2252 = vadd.f32 0.0, %v2251
    %v2253 = vpop.f32.mrf.mxu0
    %2254 = vmatprep.mubr.f32.mxu0 0.0
    %2255 = vmatmul.mubr.f32.gmra.mxu0 %v2183
    %v2256 = vpop.f32.mrf.mxu0
    %v2257 = vadd.f32 0.0, %v2256
    %v2258 = vpop.f32.mrf.mxu0
    %2259 = vdwg.mxu0
    %v2262 = vcombine.high %v2252, %v2252
    %v2264 = vunpack.c.l.s4 1966171168
    %v2265 = vunpack.c.0.s8 %v2264
    %v2266 = vlaneseq
    %v2267 = vshrl.u32 %v2266, 7
    %v2268 = vsub.s32 %v2265, %v2267
    %v2269 = vrot.slane %v2252, %v2268
    %v2271 = vunpack.c.l.s4 1966171168
    %v2272 = vunpack.c.0.s8 %v2271
    %v2273 = vlaneseq
    %v2274 = vshrl.u32 %v2273, 7
    %v2275 = vsub.s32 %v2272, %v2274
    %v2276 = vrot.slane %v2262, %v2275
    %v2277 = vcombine.high %v2269, %v2269
    %v2278 = vcombine.high %v2276, %v2276
    %v2280 = vunpack.c.l.s4 1966171168
    %v2281 = vunpack.c.0.s8 %v2280
    %v2282 = vlaneseq
    %v2283 = vshrl.u32 %v2282, 7
    %v2284 = vsub.s32 %v2281, %v2283
    %v2285 = vrot.slane %v2269, %v2284
    %v2287 = vunpack.c.l.s4 1966171168
    %v2288 = vunpack.c.0.s8 %v2287
    %v2289 = vlaneseq
    %v2290 = vshrl.u32 %v2289, 7
    %v2291 = vsub.s32 %v2288, %v2290
    %v2292 = vrot.slane %v2276, %v2291
    %v2294 = vunpack.c.l.s4 1966171168
    %v2295 = vunpack.c.0.s8 %v2294
    %v2296 = vlaneseq
    %v2297 = vshrl.u32 %v2296, 7
    %v2298 = vsub.s32 %v2295, %v2297
    %v2299 = vrot.slane %v2277, %v2298
    %v2301 = vunpack.c.l.s4 1966171168
    %v2302 = vunpack.c.0.s8 %v2301
    %v2303 = vlaneseq
    %v2304 = vshrl.u32 %v2303, 7
    %v2305 = vsub.s32 %v2302, %v2304
    %v2306 = vrot.slane %v2278, %v2305
    %v2307 = vcombine.high %v2285, %v2285
    %v2308 = vcombine.high %v2292, %v2292
    %v2309 = vcombine.high %v2299, %v2299
    %v2310 = vcombine.high %v2306, %v2306
    %v2311 = vcombine.high %v2257, %v2257
    %v2313 = vunpack.c.l.s4 1966171168
    %v2314 = vunpack.c.0.s8 %v2313
    %v2315 = vlaneseq
    %v2316 = vshrl.u32 %v2315, 7
    %v2317 = vsub.s32 %v2314, %v2316
    %v2318 = vrot.slane %v2257, %v2317
    %v2320 = vunpack.c.l.s4 1966171168
    %v2321 = vunpack.c.0.s8 %v2320
    %v2322 = vlaneseq
    %v2323 = vshrl.u32 %v2322, 7
    %v2324 = vsub.s32 %v2321, %v2323
    %v2325 = vrot.slane %v2311, %v2324
    %v2326 = vcombine.high %v2318, %v2318
    %v2327 = vcombine.high %v2325, %v2325
    %v2329 = vunpack.c.l.s4 1966171168
    %v2330 = vunpack.c.0.s8 %v2329
    %v2331 = vlaneseq
    %v2332 = vshrl.u32 %v2331, 7
    %v2333 = vsub.s32 %v2330, %v2332
    %v2334 = vrot.slane %v2318, %v2333
    %v2336 = vunpack.c.l.s4 1966171168
    %v2337 = vunpack.c.0.s8 %v2336
    %v2338 = vlaneseq
    %v2339 = vshrl.u32 %v2338, 7
    %v2340 = vsub.s32 %v2337, %v2339
    %v2341 = vrot.slane %v2325, %v2340
    %v2343 = vunpack.c.l.s4 1966171168
    %v2344 = vunpack.c.0.s8 %v2343
    %v2345 = vlaneseq
    %v2346 = vshrl.u32 %v2345, 7
    %v2347 = vsub.s32 %v2344, %v2346
    %v2348 = vrot.slane %v2326, %v2347
    %v2350 = vunpack.c.l.s4 1966171168
    %v2351 = vunpack.c.0.s8 %v2350
    %v2352 = vlaneseq
    %v2353 = vshrl.u32 %v2352, 7
    %v2354 = vsub.s32 %v2351, %v2353
    %v2355 = vrot.slane %v2327, %v2354
    %v2356 = vcombine.high %v2334, %v2334
    %v2357 = vcombine.high %v2348, %v2348
    %v2372 = vcombine.high %v2040, %v2040
    %v2373 = vcombine.high %v2088, %v2088
    %v2388 = vmul.f32 %v2285, %v2033
    %v2389 = vmul.f32 %v2299, %v2041
    %v2390 = vmul.f32 %v2307, %v2043
    %v2391 = vmul.f32 %v2309, %v2026
    %v2392 = vmul.f32 %v2292, %v2040
    %v2393 = vmul.f32 %v2306, %v2042
    %v2394 = vmul.f32 %v2308, %v2372
    %v2395 = vmul.f32 %v2310, %v2081
    %v2396 = vmul.f32 %v2334, %v2089
    %v2397 = vmul.f32 %v2348, %v2091
    %v2398 = vmul.f32 %v2356, %v2074
    %v2399 = vmul.f32 %v2357, %v2088
    %v2400 = vmul.f32 %v2341, %v2090
    %v2401 = vmul.f32 %v2355, %v2373
    %v2416 = vcombine.low %v2388, %v2389
    %v2417 = vcombine.low %v2390, %v2391
    %v2418 = vcombine.low %v2392, %v2393
    %v2420 = vunpack.c.l.s4 1966171168
    %v2421 = vunpack.c.0.s8 %v2420
    %v2422 = vlaneseq
    %v2423 = vshrl.u32 %v2422, 7
    %v2424 = vsub.s32 %v2421, %v2423
    %v2425 = vrot.slane %v2416, %v2424
    %v2427 = vunpack.c.l.s4 1966171168
    %v2428 = vunpack.c.0.s8 %v2427
    %v2429 = vlaneseq
    %v2430 = vshrl.u32 %v2429, 7
    %v2431 = vsub.s32 %v2428, %v2430
    %v2432 = vrot.slane %v2417, %v2431
    %v2434 = vunpack.c.l.s4 1966171168
    %v2435 = vunpack.c.0.s8 %v2434
    %v2436 = vlaneseq
    %v2437 = vshrl.u32 %v2436, 7
    %v2438 = vsub.s32 %v2435, %v2437
    %v2439 = vrot.slane %v2418, %v2438
    %v2441 = vunpack.c.l.s4 1966171168
    %v2442 = vunpack.c.0.s8 %v2441
    %v2443 = vlaneseq
    %v2444 = vshrl.u32 %v2443, 7
    %v2445 = vsub.s32 %v2442, %v2444
    %v2446 = vrot.slane %v2394, %v2445
    %v2447 = vcombine.low %v2425, %v2432
    %v2448 = vcombine.low %v2439, %v2446
    %v2450 = vunpack.c.l.s4 1966171168
    %v2451 = vunpack.c.0.s8 %v2450
    %v2452 = vlaneseq
    %v2453 = vshrl.u32 %v2452, 7
    %v2454 = vsub.s32 %v2451, %v2453
    %v2455 = vrot.slane %v2447, %v2454
    %v2457 = vunpack.c.l.s4 1966171168
    %v2458 = vunpack.c.0.s8 %v2457
    %v2459 = vlaneseq
    %v2460 = vshrl.u32 %v2459, 7
    %v2461 = vsub.s32 %v2458, %v2460
    %v2462 = vrot.slane %v2448, %v2461
    %v2463 = vcombine.low %v2455, %v2462
    %v2464 = vcombine.low %v2395, %v2396
    %v2465 = vcombine.low %v2397, %v2398
    %v2466 = vcombine.low %v2399, %v2400
    %v2468 = vunpack.c.l.s4 1966171168
    %v2469 = vunpack.c.0.s8 %v2468
    %v2470 = vlaneseq
    %v2471 = vshrl.u32 %v2470, 7
    %v2472 = vsub.s32 %v2469, %v2471
    %v2473 = vrot.slane %v2464, %v2472
    %v2475 = vunpack.c.l.s4 1966171168
    %v2476 = vunpack.c.0.s8 %v2475
    %v2477 = vlaneseq
    %v2478 = vshrl.u32 %v2477, 7
    %v2479 = vsub.s32 %v2476, %v2478
    %v2480 = vrot.slane %v2465, %v2479
    %v2482 = vunpack.c.l.s4 1966171168
    %v2483 = vunpack.c.0.s8 %v2482
    %v2484 = vlaneseq
    %v2485 = vshrl.u32 %v2484, 7
    %v2486 = vsub.s32 %v2483, %v2485
    %v2487 = vrot.slane %v2466, %v2486
    %v2489 = vunpack.c.l.s4 1966171168
    %v2490 = vunpack.c.0.s8 %v2489
    %v2491 = vlaneseq
    %v2492 = vshrl.u32 %v2491, 7
    %v2493 = vsub.s32 %v2490, %v2492
    %v2494 = vrot.slane %v2401, %v2493
    %v2495 = vcombine.low %v2473, %v2480
    %v2496 = vcombine.low %v2487, %v2494
    %v2498 = vunpack.c.l.s4 1966171168
    %v2499 = vunpack.c.0.s8 %v2498
    %v2500 = vlaneseq
    %v2501 = vshrl.u32 %v2500, 7
    %v2502 = vsub.s32 %v2499, %v2501
    %v2503 = vrot.slane %v2495, %v2502
    %v2505 = vunpack.c.l.s4 1966171168
    %v2506 = vunpack.c.0.s8 %v2505
    %v2507 = vlaneseq
    %v2508 = vshrl.u32 %v2507, 7
    %v2509 = vsub.s32 %v2506, %v2508
    %v2510 = vrot.slane %v2496, %v2509
    %v2511 = vcombine.low %v2503, %v2510
    %vm2514 = vcmask 63488
    %v2515 = vsel %vm2514, %v2463, 0.0
    %2516 = vadd.xlane.f32.xlu0 %v2515
    %v2517 = vpop.xlane.xlu0 %2516
    %v2518 = vsel %vm2514, %v2511, 0.0
    %2519 = vadd.xlane.f32.xlu0 %v2518
    %v2520 = vpop.xlane.xlu0 %2519
    %v2523 = vrot.slane %v1939, 1
    %v2524 = vrot.slane %v1940, 1
    %v2527 = vmul.f32 %v2517, %v2523
    %v2528 = vmul.f32 %v2520, %v2524
    %vm2529 = vcmask 6144
    %v2530 = vsel %vm2529, %v2527, 0.0
    %v2531 = vrot.slane %v2530, 4
    %v2532 = vadd.f32 %v2530, %v2531
    %v2533 = vrot.slane %v2532, 2
    %v2534 = vadd.f32 %v2532, %v2533
    %v2535 = vrot.slane %v2534, 1
    %v2536 = vadd.f32 %v2534, %v2535
    %v2537 = vsel %vm2529, %v2528, 0.0
    %v2538 = vrot.slane %v2537, 4
    %v2539 = vadd.f32 %v2537, %v2538
    %v2540 = vrot.slane %v2539, 2
    %v2541 = vadd.f32 %v2539, %v2540
    %v2542 = vrot.slane %v2541, 1
    %v2543 = vadd.f32 %v2541, %v2542
    %v2544 = vlaneseq
    %v2545 = vshrl.u32 %v2544, 7
    %v2546 = vsel %vm1961, %v1939, 0.0
    %v2547 = vrot.slane %v2546, 4
    %v2548 = vadd.f32 %v2546, %v2547
    %v2549 = vrot.slane %v2548, 2
    %v2550 = vadd.f32 %v2548, %v2549
    %v2551 = vrot.slane %v2550, 1
    %v2552 = vadd.f32 %v2550, %v2551
    %v2553 = vsel %vm1961, %v1940, 0.0
    %v2554 = vrot.slane %v2553, 4
    %v2555 = vadd.f32 %v2553, %v2554
    %v2556 = vrot.slane %v2555, 2
    %v2557 = vadd.f32 %v2555, %v2556
    %v2558 = vrot.slane %v2557, 1
    %v2559 = vadd.f32 %v2557, %v2558
    %v2560 = vcvt.f32.s32.to.zero.pseudo %v2552
    %v2561 = vcvt.f32.s32.to.zero.pseudo %v2559
    %v2562 = vsub.s32 %v2560, 1
    %v2563 = vsub.s32 %v2561, 1
    %vm2564 = vcmp.eq.s32.totalorder %v2545, %v2562
    %vm2565 = vcmp.eq.s32.totalorder %v2545, %v2563
    %v2566 = vsel %vm2564, 1, 0
    %v2567 = vsel %vm2565, 1, 0
    %v2568 = vcvt.s32.f32 %v2566
    %v2569 = vcvt.s32.f32 %v2567
    %2571 = vset.pattern.permute.xlu0 0
    %2572 = vperm.xlu0 %2571, %v2568
    %v2573 = vpop.permute.xlu0 %2572
    %2576 = vset.pattern.permute.xlu0 0
    %2577 = vperm.xlu0 %2576, %v2569
    %v2578 = vpop.permute.xlu0 %2577
    %v2580 = vmul.f32 %v1937, %v2573
    %v2581 = vmul.f32 %v1938, %v2578
    %v2582 = vsel %vm311, %v2580, 0.0
    %v2583 = vrot.slane %v2582, 4
    %v2584 = vadd.f32 %v2582, %v2583
    %v2585 = vrot.slane %v2584, 2
    %v2586 = vadd.f32 %v2584, %v2585
    %v2587 = vrot.slane %v2586, 1
    %v2588 = vadd.f32 %v2586, %v2587
    %v2589 = vsel %vm311, %v2581, 0.0
    %v2590 = vrot.slane %v2589, 4
    %v2591 = vadd.f32 %v2589, %v2590
    %v2592 = vrot.slane %v2591, 2
    %v2593 = vadd.f32 %v2591, %v2592
    %v2594 = vrot.slane %v2593, 1
    %v2595 = vadd.f32 %v2593, %v2594
    %v2597 = vlaneseq
    %v2598 = vshrl.u32 %v2597, 7
    %v2599 = vsub.s32 0, %v2598
    %v2600 = vrot.slane %v1936, %v2599
    %v2602 = vmul.f32 %v2588, %v2600
    %v2603 = vmul.f32 %v2595, %v2600
    %v2606 = vrot.slane %v2603, 7
    %v2607 = vsel %vm1987, %v2606, %v2602
    %v2609 = vsel %vm1990, %v2607, 0.0
    %2610 = vadd.xlane.f32.xlu0 %v2609
    %v2611 = vpop.xlane.xlu0 %2610
    %v2613 = vrot.slane %v1993, 1
    %v2616 = vadd.f32 %v1968, %v1993
    %v2617 = vadd.f32 %v1975, %v2613
    %v2618 = vadd.f32 %v2616, %v2536
    %v2619 = vadd.f32 %v2617, %v2543
    %v2621 = vrot.slane %v2611, 1
    %v2624 = vadd.f32 %v2618, %v2611
    %v2625 = vadd.f32 %v2619, %v2621
    %v2628 = vrot.slane %v1931, 7
    %v2629 = vsel %vm1987, %v2628, %v1928
    %v2631 = vadd.f32 %v1980, %v2629
    %v2632 = vsel %vm1990, %v2631, -inf
    %2633 = vmax.xlane.f32.xlu0 %v2632
    %v2634 = vpop.xlane.xlu0 %2633
    %v2635 = vadd.f32 %v2634, %v1947
    %v2636 = vsub.f32 %v2631, %v2634
    %v2637 = vmul.f32 %v2636, 1.442695
    %v2638 = vpow.pop %v2637
    %v2640 = vsel %vm311, %v2638, 0
    %2642 = vmatprep.subr.mxu0 0.0
    %2643 = vmatpush1.msra.mxu0 0.0
    %2644 = vmatprep.subr.mxu0 0.0
    %2645 = vmatpush1.msra.mxu0 0.0
    %2646 = vmatprep.subr.mxu0 0.0
    %2647 = vmatpush1.msra.mxu0 0.0
    %2648 = vmatprep.subr.mxu0 0.0
    %2649 = vmatpush1.msra.mxu0 0.0
    %2650 = vmatprep.subr.mxu0 0.0
    %2651 = vmatpush1.msra.mxu0 0.0
    %2652 = vmatprep.subr.mxu0 0.0
    %2653 = vmatpush1.msra.mxu0 0.0
    %2654 = vmatprep.subr.mxu0 0.0
    %2655 = vmatpush1.msra.mxu0 0.0
    %2656 = vmatprep.subr.mxu0 0.0
    %2657 = vmatpush1.msra.mxu0 0.0
    %2658 = vmatprep.subr.mxu0 0.0
    %2659 = vmatpush1.msra.mxu0 0.0
    %2660 = vmatprep.subr.mxu0 0.0
    %2661 = vmatpush1.msra.mxu0 0.0
    %2662 = vmatprep.subr.mxu0 0.0
    %2663 = vmatpush1.msra.mxu0 0.0
    %2664 = vmatprep.subr.mxu0 0.0
    %2665 = vmatpush1.msra.mxu0 0.0
    %2666 = vmatprep.subr.mxu0 0.0
    %2667 = vmatpush1.msra.mxu0 0.0
    %2668 = vmatprep.subr.mxu0 0.0
    %2669 = vmatpush1.msra.mxu0 0.0
    %2670 = vmatprep.subr.mxu0 0.0
    %2671 = vmatpush1.msra.mxu0 0.0
    %2672 = vmatprep.subr.mxu0 0.0
    %2673 = vmatpush1.msra.mxu0 %v1950
    %2674 = vmatprep.subr.mxu0 0.0
    %2675 = vmatpush2.msra.mxu0 0.0
    %2676 = vmatprep.subr.mxu0 0.0
    %2677 = vmatpush2.msra.mxu0 0.0
    %2678 = vmatprep.subr.mxu0 0.0
    %2679 = vmatpush2.msra.mxu0 0.0
    %2680 = vmatprep.subr.mxu0 0.0
    %2681 = vmatpush2.msra.mxu0 0.0
    %2682 = vmatprep.subr.mxu0 0.0
    %2683 = vmatpush2.msra.mxu0 0.0
    %2684 = vmatprep.subr.mxu0 0.0
    %2685 = vmatpush2.msra.mxu0 0.0
    %2686 = vmatprep.subr.mxu0 0.0
    %2687 = vmatpush2.msra.mxu0 0.0
    %2688 = vmatprep.subr.mxu0 0.0
    %2689 = vmatpush2.msra.mxu0 0.0
    %2690 = vmatprep.subr.mxu0 0.0
    %2691 = vmatpush2.msra.mxu0 0.0
    %2692 = vmatprep.subr.mxu0 0.0
    %2693 = vmatpush2.msra.mxu0 0.0
    %2694 = vmatprep.subr.mxu0 0.0
    %2695 = vmatpush2.msra.mxu0 0.0
    %2696 = vmatprep.subr.mxu0 0.0
    %2697 = vmatpush2.msra.mxu0 0.0
    %2698 = vmatprep.subr.mxu0 0.0
    %2699 = vmatpush2.msra.mxu0 0.0
    %2700 = vmatprep.subr.mxu0 0.0
    %2701 = vmatpush2.msra.mxu0 0.0
    %2702 = vmatprep.subr.mxu0 0.0
    %2703 = vmatpush2.msra.mxu0 0.0
    %2704 = vmatprep.subr.mxu0 0.0
    %2705 = vmatpush2.msra.mxu0 0.0
    %2706 = vmatprep.mubr.f32.mxu0 0.0
    %2707 = vmatmul.mubr.f32.gmra.mxu0 %v2640
    %v2708 = vpop.f32.mrf.mxu0
    %v2709 = vadd.f32 0.0, %v2708
    %v2710 = vpop.f32.mrf.mxu0
    %2711 = vdwg.mxu0
    %v2712 = vlog2.pop %v2709
    %v2713 = vmul.f32 %v2712, 0.6931472
    %v2714 = vadd.f32 %v2635, %v2713
    %v2715 = vrot.slane %v1928, 1
    %v2716 = vsel %vm1987, %v1931, %v2715
    %v2718 = vadd.f32 %v2714, %v2716
    %vm2719 = vcmp.gt.f32.partialorder %v1939, 0.5
    %vm2720 = vcmp.gt.f32.partialorder %v1940, 0.5
    %v2721 = vsel %vm2719, 1, 0
    %v2722 = vsel %vm2720, 1, 0
    %2723 = vset.pattern.permute.xlu0 0
    %2724 = vperm.xlu0 %2723, %v2721
    %v2725 = vpop.permute.xlu0 %2724
    %2726 = vset.pattern.permute.xlu0 0
    %2727 = vperm.xlu0 %2726, %v2722
    %v2728 = vpop.permute.xlu0 %2727
    %vm2729 = vcmp.eq.s32.totalorder %v2725, 1
    %vm2730 = vcmp.eq.s32.totalorder %v2728, 1
    %v2732 = vrot.slane %v2718, 7
    %v2736 = vrot.slane %v2631, 7
    %v2739 = vsel %vm2729, %v2732, %v2736
    %v2740 = vsel %vm2730, %v2718, %v2631
    %v2743 = vrot.slane %v2740, 7
    %vm2744 = vcmask 1042434
    %v2745 = vsel %vm2744, %v2743, %v2739
    %vm2747 = vcmask 59393
    %v2748 = vsel %vm2747, %v2745, -inf
    %2749 = vmax.xlane.f32.xlu0 %v2748
    %v2750 = vpop.xlane.xlu0 %2749
    %v2751 = vadd.f32 %v2750, %v1947
    %v2753 = vrot.slane %v2750, 1
    %v2756 = vsub.f32 %v2739, %v2750
    %v2757 = vsub.f32 %v2740, %v2753
    %v2758 = vmul.f32 %v2756, 1.442695
    %v2759 = vpow.pop %v2758
    %v2760 = vmul.f32 %v2757, 1.442695
    %v2761 = vpow.pop %v2760
    %v2764 = vrot.slane %v2759, 1
    %v2765 = vsel %vm1987, %v2761, %v2764
    %v2766 = vsel %vm311, %v2765, 0
    %2768 = vmatprep.subr.mxu0 0.0
    %2769 = vmatpush1.msra.mxu0 0.0
    %2770 = vmatprep.subr.mxu0 0.0
    %2771 = vmatpush1.msra.mxu0 0.0
    %2772 = vmatprep.subr.mxu0 0.0
    %2773 = vmatpush1.msra.mxu0 0.0
    %2774 = vmatprep.subr.mxu0 0.0
    %2775 = vmatpush1.msra.mxu0 0.0
    %2776 = vmatprep.subr.mxu0 0.0
    %2777 = vmatpush1.msra.mxu0 0.0
    %2778 = vmatprep.subr.mxu0 0.0
    %2779 = vmatpush1.msra.mxu0 0.0
    %2780 = vmatprep.subr.mxu0 0.0
    %2781 = vmatpush1.msra.mxu0 0.0
    %2782 = vmatprep.subr.mxu0 0.0
    %2783 = vmatpush1.msra.mxu0 0.0
    %2784 = vmatprep.subr.mxu0 0.0
    %2785 = vmatpush1.msra.mxu0 0.0
    %2786 = vmatprep.subr.mxu0 0.0
    %2787 = vmatpush1.msra.mxu0 0.0
    %2788 = vmatprep.subr.mxu0 0.0
    %2789 = vmatpush1.msra.mxu0 0.0
    %2790 = vmatprep.subr.mxu0 0.0
    %2791 = vmatpush1.msra.mxu0 0.0
    %2792 = vmatprep.subr.mxu0 0.0
    %2793 = vmatpush1.msra.mxu0 0.0
    %2794 = vmatprep.subr.mxu0 0.0
    %2795 = vmatpush1.msra.mxu0 0.0
    %2796 = vmatprep.subr.mxu0 0.0
    %2797 = vmatpush1.msra.mxu0 0.0
    %2798 = vmatprep.subr.mxu0 0.0
    %2799 = vmatpush1.msra.mxu0 %v1950
    %2800 = vmatprep.subr.mxu0 0.0
    %2801 = vmatpush2.msra.mxu0 0.0
    %2802 = vmatprep.subr.mxu0 0.0
    %2803 = vmatpush2.msra.mxu0 0.0
    %2804 = vmatprep.subr.mxu0 0.0
    %2805 = vmatpush2.msra.mxu0 0.0
    %2806 = vmatprep.subr.mxu0 0.0
    %2807 = vmatpush2.msra.mxu0 0.0
    %2808 = vmatprep.subr.mxu0 0.0
    %2809 = vmatpush2.msra.mxu0 0.0
    %2810 = vmatprep.subr.mxu0 0.0
    %2811 = vmatpush2.msra.mxu0 0.0
    %2812 = vmatprep.subr.mxu0 0.0
    %2813 = vmatpush2.msra.mxu0 0.0
    %2814 = vmatprep.subr.mxu0 0.0
    %2815 = vmatpush2.msra.mxu0 0.0
    %2816 = vmatprep.subr.mxu0 0.0
    %2817 = vmatpush2.msra.mxu0 0.0
    %2818 = vmatprep.subr.mxu0 0.0
    %2819 = vmatpush2.msra.mxu0 0.0
    %2820 = vmatprep.subr.mxu0 0.0
    %2821 = vmatpush2.msra.mxu0 0.0
    %2822 = vmatprep.subr.mxu0 0.0
    %2823 = vmatpush2.msra.mxu0 0.0
    %2824 = vmatprep.subr.mxu0 0.0
    %2825 = vmatpush2.msra.mxu0 0.0
    %2826 = vmatprep.subr.mxu0 0.0
    %2827 = vmatpush2.msra.mxu0 0.0
    %2828 = vmatprep.subr.mxu0 0.0
    %2829 = vmatpush2.msra.mxu0 0.0
    %2830 = vmatprep.subr.mxu0 0.0
    %2831 = vmatpush2.msra.mxu0 0.0
    %2832 = vmatprep.mubr.f32.mxu0 0.0
    %2833 = vmatmul.mubr.f32.gmra.mxu0 %v2766
    %v2834 = vpop.f32.mrf.mxu0
    %v2835 = vadd.f32 0.0, %v2834
    %v2836 = vpop.f32.mrf.mxu0
    %2837 = vdwg.mxu0
    %v2838 = vlog2.pop %v2835
    %v2839 = vmul.f32 %v2838, 0.6931472
    %v2841 = vrot.slane %v2839, 7
    %v2843 = vadd.f32 %v2751, %v2841
    %v2844 = vsel %vm2744, %v1931, %v2715
    %v2846 = vadd.f32 %v2843, %v2844
    %v2848 = vrot.slane %v2846, 7
    %v2851 = vrot.slane %v2739, 7
    %v2854 = vsel %vm2729, %v2848, %v2851
    %v2855 = vsel %vm2730, %v2846, %v2743
    %v2858 = vrot.slane %v2855, 7
    %vm2859 = vcmask 1043459
    %v2860 = vsel %vm2859, %v2858, %v2854
    %vm2862 = vcmask 60418
    %v2863 = vsel %vm2862, %v2860, -inf
    %2864 = vmax.xlane.f32.xlu0 %v2863
    %v2865 = vpop.xlane.xlu0 %2864
    %v2866 = vadd.f32 %v2865, %v1947
    %v2868 = vrot.slane %v2865, 1
    %v2871 = vsub.f32 %v2854, %v2865
    %v2872 = vsub.f32 %v2855, %v2868
    %v2873 = vmul.f32 %v2871, 1.442695
    %v2874 = vpow.pop %v2873
    %v2875 = vmul.f32 %v2872, 1.442695
    %v2876 = vpow.pop %v2875
    %v2879 = vrot.slane %v2874, 2
    %v2880 = vrot.slane %v2876, 1
    %v2881 = vsel %vm1987, %v2880, %v2879
    %v2882 = vsel %vm311, %v2881, 0
    %2884 = vmatprep.subr.mxu0 0.0
    %2885 = vmatpush1.msra.mxu0 0.0
    %2886 = vmatprep.subr.mxu0 0.0
    %2887 = vmatpush1.msra.mxu0 0.0
    %2888 = vmatprep.subr.mxu0 0.0
    %2889 = vmatpush1.msra.mxu0 0.0
    %2890 = vmatprep.subr.mxu0 0.0
    %2891 = vmatpush1.msra.mxu0 0.0
    %2892 = vmatprep.subr.mxu0 0.0
    %2893 = vmatpush1.msra.mxu0 0.0
    %2894 = vmatprep.subr.mxu0 0.0
    %2895 = vmatpush1.msra.mxu0 0.0
    %2896 = vmatprep.subr.mxu0 0.0
    %2897 = vmatpush1.msra.mxu0 0.0
    %2898 = vmatprep.subr.mxu0 0.0
    %2899 = vmatpush1.msra.mxu0 0.0
    %2900 = vmatprep.subr.mxu0 0.0
    %2901 = vmatpush1.msra.mxu0 0.0
    %2902 = vmatprep.subr.mxu0 0.0
    %2903 = vmatpush1.msra.mxu0 0.0
    %2904 = vmatprep.subr.mxu0 0.0
    %2905 = vmatpush1.msra.mxu0 0.0
    %2906 = vmatprep.subr.mxu0 0.0
    %2907 = vmatpush1.msra.mxu0 0.0
    %2908 = vmatprep.subr.mxu0 0.0
    %2909 = vmatpush1.msra.mxu0 0.0
    %2910 = vmatprep.subr.mxu0 0.0
    %2911 = vmatpush1.msra.mxu0 0.0
    %2912 = vmatprep.subr.mxu0 0.0
    %2913 = vmatpush1.msra.mxu0 0.0
    %2914 = vmatprep.subr.mxu0 0.0
    %2915 = vmatpush1.msra.mxu0 %v1950
    %2916 = vmatprep.subr.mxu0 0.0
    %2917 = vmatpush2.msra.mxu0 0.0
    %2918 = vmatprep.subr.mxu0 0.0
    %2919 = vmatpush2.msra.mxu0 0.0
    %2920 = vmatprep.subr.mxu0 0.0
    %2921 = vmatpush2.msra.mxu0 0.0
    %2922 = vmatprep.subr.mxu0 0.0
    %2923 = vmatpush2.msra.mxu0 0.0
    %2924 = vmatprep.subr.mxu0 0.0
    %2925 = vmatpush2.msra.mxu0 0.0
    %2926 = vmatprep.subr.mxu0 0.0
    %2927 = vmatpush2.msra.mxu0 0.0
    %2928 = vmatprep.subr.mxu0 0.0
    %2929 = vmatpush2.msra.mxu0 0.0
    %2930 = vmatprep.subr.mxu0 0.0
    %2931 = vmatpush2.msra.mxu0 0.0
    %2932 = vmatprep.subr.mxu0 0.0
    %2933 = vmatpush2.msra.mxu0 0.0
    %2934 = vmatprep.subr.mxu0 0.0
    %2935 = vmatpush2.msra.mxu0 0.0
    %2936 = vmatprep.subr.mxu0 0.0
    %2937 = vmatpush2.msra.mxu0 0.0
    %2938 = vmatprep.subr.mxu0 0.0
    %2939 = vmatpush2.msra.mxu0 0.0
    %2940 = vmatprep.subr.mxu0 0.0
    %2941 = vmatpush2.msra.mxu0 0.0
    %2942 = vmatprep.subr.mxu0 0.0
    %2943 = vmatpush2.msra.mxu0 0.0
    %2944 = vmatprep.subr.mxu0 0.0
    %2945 = vmatpush2.msra.mxu0 0.0
    %2946 = vmatprep.subr.mxu0 0.0
    %2947 = vmatpush2.msra.mxu0 0.0
    %2948 = vmatprep.mubr.f32.mxu0 0.0
    %2949 = vmatmul.mubr.f32.gmra.mxu0 %v2882
    %v2950 = vpop.f32.mrf.mxu0
    %v2951 = vadd.f32 0.0, %v2950
    %v2952 = vpop.f32.mrf.mxu0
    %2953 = vdwg.mxu0
    %v2954 = vlog2.pop %v2951
    %v2955 = vmul.f32 %v2954, 0.6931472
    %v2957 = vrot.slane %v2955, 6
    %v2959 = vadd.f32 %v2866, %v2957
    %v2960 = vsel %vm2859, %v1931, %v2715
    %v2962 = vadd.f32 %v2959, %v2960
    %v2964 = vrot.slane %v2962, 7
    %v2967 = vrot.slane %v2854, 7
    %v2970 = vsel %vm2729, %v2964, %v2967
    %v2971 = vsel %vm2730, %v2962, %v2858
    %v2974 = vrot.slane %v2971, 7
    %vm2975 = vcmask 1044484
    %v2976 = vsel %vm2975, %v2974, %v2970
    %vm2978 = vcmask 61443
    %v2979 = vsel %vm2978, %v2976, -inf
    %2980 = vmax.xlane.f32.xlu0 %v2979
    %v2981 = vpop.xlane.xlu0 %2980
    %v2982 = vadd.f32 %v2981, %v1947
    %v2984 = vrot.slane %v2981, 1
    %v2987 = vsub.f32 %v2970, %v2981
    %v2988 = vsub.f32 %v2971, %v2984
    %v2989 = vmul.f32 %v2987, 1.442695
    %v2990 = vpow.pop %v2989
    %v2991 = vmul.f32 %v2988, 1.442695
    %v2992 = vpow.pop %v2991
    %v2995 = vrot.slane %v2990, 3
    %v2996 = vrot.slane %v2992, 2
    %v2997 = vsel %vm1987, %v2996, %v2995
    %v2998 = vsel %vm311, %v2997, 0
    %3000 = vmatprep.subr.mxu0 0.0
    %3001 = vmatpush1.msra.mxu0 0.0
    %3002 = vmatprep.subr.mxu0 0.0
    %3003 = vmatpush1.msra.mxu0 0.0
    %3004 = vmatprep.subr.mxu0 0.0
    %3005 = vmatpush1.msra.mxu0 0.0
    %3006 = vmatprep.subr.mxu0 0.0
    %3007 = vmatpush1.msra.mxu0 0.0
    %3008 = vmatprep.subr.mxu0 0.0
    %3009 = vmatpush1.msra.mxu0 0.0
    %3010 = vmatprep.subr.mxu0 0.0
    %3011 = vmatpush1.msra.mxu0 0.0
    %3012 = vmatprep.subr.mxu0 0.0
    %3013 = vmatpush1.msra.mxu0 0.0
    %3014 = vmatprep.subr.mxu0 0.0
    %3015 = vmatpush1.msra.mxu0 0.0
    %3016 = vmatprep.subr.mxu0 0.0
    %3017 = vmatpush1.msra.mxu0 0.0
    %3018 = vmatprep.subr.mxu0 0.0
    %3019 = vmatpush1.msra.mxu0 0.0
    %3020 = vmatprep.subr.mxu0 0.0
    %3021 = vmatpush1.msra.mxu0 0.0
    %3022 = vmatprep.subr.mxu0 0.0
    %3023 = vmatpush1.msra.mxu0 0.0
    %3024 = vmatprep.subr.mxu0 0.0
    %3025 = vmatpush1.msra.mxu0 0.0
    %3026 = vmatprep.subr.mxu0 0.0
    %3027 = vmatpush1.msra.mxu0 0.0
    %3028 = vmatprep.subr.mxu0 0.0
    %3029 = vmatpush1.msra.mxu0 0.0
    %3030 = vmatprep.subr.mxu0 0.0
    %3031 = vmatpush1.msra.mxu0 %v1950
    %3032 = vmatprep.subr.mxu0 0.0
    %3033 = vmatpush2.msra.mxu0 0.0
    %3034 = vmatprep.subr.mxu0 0.0
    %3035 = vmatpush2.msra.mxu0 0.0
    %3036 = vmatprep.subr.mxu0 0.0
    %3037 = vmatpush2.msra.mxu0 0.0
    %3038 = vmatprep.subr.mxu0 0.0
    %3039 = vmatpush2.msra.mxu0 0.0
    %3040 = vmatprep.subr.mxu0 0.0
    %3041 = vmatpush2.msra.mxu0 0.0
    %3042 = vmatprep.subr.mxu0 0.0
    %3043 = vmatpush2.msra.mxu0 0.0
    %3044 = vmatprep.subr.mxu0 0.0
    %3045 = vmatpush2.msra.mxu0 0.0
    %3046 = vmatprep.subr.mxu0 0.0
    %3047 = vmatpush2.msra.mxu0 0.0
    %3048 = vmatprep.subr.mxu0 0.0
    %3049 = vmatpush2.msra.mxu0 0.0
    %3050 = vmatprep.subr.mxu0 0.0
    %3051 = vmatpush2.msra.mxu0 0.0
    %3052 = vmatprep.subr.mxu0 0.0
    %3053 = vmatpush2.msra.mxu0 0.0
    %3054 = vmatprep.subr.mxu0 0.0
    %3055 = vmatpush2.msra.mxu0 0.0
    %3056 = vmatprep.subr.mxu0 0.0
    %3057 = vmatpush2.msra.mxu0 0.0
    %3058 = vmatprep.subr.mxu0 0.0
    %3059 = vmatpush2.msra.mxu0 0.0
    %3060 = vmatprep.subr.mxu0 0.0
    %3061 = vmatpush2.msra.mxu0 0.0
    %3062 = vmatprep.subr.mxu0 0.0
    %3063 = vmatpush2.msra.mxu0 0.0
    %3064 = vmatprep.mubr.f32.mxu0 0.0
    %3065 = vmatmul.mubr.f32.gmra.mxu0 %v2998
    %v3066 = vpop.f32.mrf.mxu0
    %v3067 = vadd.f32 0.0, %v3066
    %v3068 = vpop.f32.mrf.mxu0
    %3069 = vdwg.mxu0
    %v3070 = vlog2.pop %v3067
    %v3071 = vmul.f32 %v3070, 0.6931472
    %v3073 = vrot.slane %v3071, 5
    %v3075 = vadd.f32 %v2982, %v3073
    %v3076 = vsel %vm2975, %v1931, %v2715
    %v3078 = vadd.f32 %v3075, %v3076
    %v3080 = vrot.slane %v3078, 7
    %v3083 = vrot.slane %v2970, 7
    %v3086 = vsel %vm2729, %v3080, %v3083
    %v3087 = vsel %vm2730, %v3078, %v2974
    %v3090 = vrot.slane %v3087, 7
    %vm3091 = vcmask 1045509
    %v3092 = vsel %vm3091, %v3090, %v3086
    %vm3094 = vcmask 62468
    %v3095 = vsel %vm3094, %v3092, -inf
    %3096 = vmax.xlane.f32.xlu0 %v3095
    %v3097 = vpop.xlane.xlu0 %3096
    %v3098 = vadd.f32 %v3097, %v1947
    %v3100 = vrot.slane %v3097, 1
    %v3103 = vsub.f32 %v3086, %v3097
    %v3104 = vsub.f32 %v3087, %v3100
    %v3105 = vmul.f32 %v3103, 1.442695
    %v3106 = vpow.pop %v3105
    %v3107 = vmul.f32 %v3104, 1.442695
    %v3108 = vpow.pop %v3107
    %v3111 = vrot.slane %v3106, 4
    %v3112 = vrot.slane %v3108, 3
    %v3113 = vsel %vm1987, %v3112, %v3111
    %v3114 = vsel %vm311, %v3113, 0
    %3116 = vmatprep.subr.mxu0 0.0
    %3117 = vmatpush1.msra.mxu0 0.0
    %3118 = vmatprep.subr.mxu0 0.0
    %3119 = vmatpush1.msra.mxu0 0.0
    %3120 = vmatprep.subr.mxu0 0.0
    %3121 = vmatpush1.msra.mxu0 0.0
    %3122 = vmatprep.subr.mxu0 0.0
    %3123 = vmatpush1.msra.mxu0 0.0
    %3124 = vmatprep.subr.mxu0 0.0
    %3125 = vmatpush1.msra.mxu0 0.0
    %3126 = vmatprep.subr.mxu0 0.0
    %3127 = vmatpush1.msra.mxu0 0.0
    %3128 = vmatprep.subr.mxu0 0.0
    %3129 = vmatpush1.msra.mxu0 0.0
    %3130 = vmatprep.subr.mxu0 0.0
    %3131 = vmatpush1.msra.mxu0 0.0
    %3132 = vmatprep.subr.mxu0 0.0
    %3133 = vmatpush1.msra.mxu0 0.0
    %3134 = vmatprep.subr.mxu0 0.0
    %3135 = vmatpush1.msra.mxu0 0.0
    %3136 = vmatprep.subr.mxu0 0.0
    %3137 = vmatpush1.msra.mxu0 0.0
    %3138 = vmatprep.subr.mxu0 0.0
    %3139 = vmatpush1.msra.mxu0 0.0
    %3140 = vmatprep.subr.mxu0 0.0
    %3141 = vmatpush1.msra.mxu0 0.0
    %3142 = vmatprep.subr.mxu0 0.0
    %3143 = vmatpush1.msra.mxu0 0.0
    %3144 = vmatprep.subr.mxu0 0.0
    %3145 = vmatpush1.msra.mxu0 0.0
    %3146 = vmatprep.subr.mxu0 0.0
    %3147 = vmatpush1.msra.mxu0 %v1950
    %3148 = vmatprep.subr.mxu0 0.0
    %3149 = vmatpush2.msra.mxu0 0.0
    %3150 = vmatprep.subr.mxu0 0.0
    %3151 = vmatpush2.msra.mxu0 0.0
    %3152 = vmatprep.subr.mxu0 0.0
    %3153 = vmatpush2.msra.mxu0 0.0
    %3154 = vmatprep.subr.mxu0 0.0
    %3155 = vmatpush2.msra.mxu0 0.0
    %3156 = vmatprep.subr.mxu0 0.0
    %3157 = vmatpush2.msra.mxu0 0.0
    %3158 = vmatprep.subr.mxu0 0.0
    %3159 = vmatpush2.msra.mxu0 0.0
    %3160 = vmatprep.subr.mxu0 0.0
    %3161 = vmatpush2.msra.mxu0 0.0
    %3162 = vmatprep.subr.mxu0 0.0
    %3163 = vmatpush2.msra.mxu0 0.0
    %3164 = vmatprep.subr.mxu0 0.0
    %3165 = vmatpush2.msra.mxu0 0.0
    %3166 = vmatprep.subr.mxu0 0.0
    %3167 = vmatpush2.msra.mxu0 0.0
    %3168 = vmatprep.subr.mxu0 0.0
    %3169 = vmatpush2.msra.mxu0 0.0
    %3170 = vmatprep.subr.mxu0 0.0
    %3171 = vmatpush2.msra.mxu0 0.0
    %3172 = vmatprep.subr.mxu0 0.0
    %3173 = vmatpush2.msra.mxu0 0.0
    %3174 = vmatprep.subr.mxu0 0.0
    %3175 = vmatpush2.msra.mxu0 0.0
    %3176 = vmatprep.subr.mxu0 0.0
    %3177 = vmatpush2.msra.mxu0 0.0
    %3178 = vmatprep.subr.mxu0 0.0
    %3179 = vmatpush2.msra.mxu0 0.0
    %3180 = vmatprep.mubr.f32.mxu0 0.0
    %3181 = vmatmul.mubr.f32.gmra.mxu0 %v3114
    %v3182 = vpop.f32.mrf.mxu0
    %v3183 = vadd.f32 0.0, %v3182
    %v3184 = vpop.f32.mrf.mxu0
    %3185 = vdwg.mxu0
    %v3186 = vlog2.pop %v3183
    %v3187 = vmul.f32 %v3186, 0.6931472
    %v3189 = vrot.slane %v3187, 4
    %v3191 = vadd.f32 %v3098, %v3189
    %v3192 = vsel %vm3091, %v1931, %v2715
    %v3194 = vadd.f32 %v3191, %v3192
    %v3196 = vrot.slane %v3194, 7
    %v3199 = vrot.slane %v3086, 7
    %v3202 = vsel %vm2729, %v3196, %v3199
    %v3203 = vsel %vm2730, %v3194, %v3090
    %v3206 = vrot.slane %v3203, 7
    %vm3207 = vcmask 1046534
    %v3208 = vsel %vm3207, %v3206, %v3202
    %vm3210 = vcmask 63493
    %v3211 = vsel %vm3210, %v3208, -inf
    %3212 = vmax.xlane.f32.xlu0 %v3211
    %v3213 = vpop.xlane.xlu0 %3212
    %v3214 = vadd.f32 %v3213, %v1947
    %v3216 = vrot.slane %v3213, 1
    %v3219 = vsub.f32 %v3202, %v3213
    %v3220 = vsub.f32 %v3203, %v3216
    %v3221 = vmul.f32 %v3219, 1.442695
    %v3222 = vpow.pop %v3221
    %v3223 = vmul.f32 %v3220, 1.442695
    %v3224 = vpow.pop %v3223
    %v3227 = vrot.slane %v3222, 5
    %v3228 = vrot.slane %v3224, 4
    %v3229 = vsel %vm1987, %v3228, %v3227
    %v3230 = vsel %vm311, %v3229, 0
    %3232 = vmatprep.subr.mxu0 0.0
    %3233 = vmatpush1.msra.mxu0 0.0
    %3234 = vmatprep.subr.mxu0 0.0
    %3235 = vmatpush1.msra.mxu0 0.0
    %3236 = vmatprep.subr.mxu0 0.0
    %3237 = vmatpush1.msra.mxu0 0.0
    %3238 = vmatprep.subr.mxu0 0.0
    %3239 = vmatpush1.msra.mxu0 0.0
    %3240 = vmatprep.subr.mxu0 0.0
    %3241 = vmatpush1.msra.mxu0 0.0
    %3242 = vmatprep.subr.mxu0 0.0
    %3243 = vmatpush1.msra.mxu0 0.0
    %3244 = vmatprep.subr.mxu0 0.0
    %3245 = vmatpush1.msra.mxu0 0.0
    %3246 = vmatprep.subr.mxu0 0.0
    %3247 = vmatpush1.msra.mxu0 0.0
    %3248 = vmatprep.subr.mxu0 0.0
    %3249 = vmatpush1.msra.mxu0 0.0
    %3250 = vmatprep.subr.mxu0 0.0
    %3251 = vmatpush1.msra.mxu0 0.0
    %3252 = vmatprep.subr.mxu0 0.0
    %3253 = vmatpush1.msra.mxu0 0.0
    %3254 = vmatprep.subr.mxu0 0.0
    %3255 = vmatpush1.msra.mxu0 0.0
    %3256 = vmatprep.subr.mxu0 0.0
    %3257 = vmatpush1.msra.mxu0 0.0
    %3258 = vmatprep.subr.mxu0 0.0
    %3259 = vmatpush1.msra.mxu0 0.0
    %3260 = vmatprep.subr.mxu0 0.0
    %3261 = vmatpush1.msra.mxu0 0.0
    %3262 = vmatprep.subr.mxu0 0.0
    %3263 = vmatpush1.msra.mxu0 %v1950
    %3264 = vmatprep.subr.mxu0 0.0
    %3265 = vmatpush2.msra.mxu0 0.0
    %3266 = vmatprep.subr.mxu0 0.0
    %3267 = vmatpush2.msra.mxu0 0.0
    %3268 = vmatprep.subr.mxu0 0.0
    %3269 = vmatpush2.msra.mxu0 0.0
    %3270 = vmatprep.subr.mxu0 0.0
    %3271 = vmatpush2.msra.mxu0 0.0
    %3272 = vmatprep.subr.mxu0 0.0
    %3273 = vmatpush2.msra.mxu0 0.0
    %3274 = vmatprep.subr.mxu0 0.0
    %3275 = vmatpush2.msra.mxu0 0.0
    %3276 = vmatprep.subr.mxu0 0.0
    %3277 = vmatpush2.msra.mxu0 0.0
    %3278 = vmatprep.subr.mxu0 0.0
    %3279 = vmatpush2.msra.mxu0 0.0
    %3280 = vmatprep.subr.mxu0 0.0
    %3281 = vmatpush2.msra.mxu0 0.0
    %3282 = vmatprep.subr.mxu0 0.0
    %3283 = vmatpush2.msra.mxu0 0.0
    %3284 = vmatprep.subr.mxu0 0.0
    %3285 = vmatpush2.msra.mxu0 0.0
    %3286 = vmatprep.subr.mxu0 0.0
    %3287 = vmatpush2.msra.mxu0 0.0
    %3288 = vmatprep.subr.mxu0 0.0
    %3289 = vmatpush2.msra.mxu0 0.0
    %3290 = vmatprep.subr.mxu0 0.0
    %3291 = vmatpush2.msra.mxu0 0.0
    %3292 = vmatprep.subr.mxu0 0.0
    %3293 = vmatpush2.msra.mxu0 0.0
    %3294 = vmatprep.subr.mxu0 0.0
    %3295 = vmatpush2.msra.mxu0 0.0
    %3296 = vmatprep.mubr.f32.mxu0 0.0
    %3297 = vmatmul.mubr.f32.gmra.mxu0 %v3230
    %v3298 = vpop.f32.mrf.mxu0
    %v3299 = vadd.f32 0.0, %v3298
    %v3300 = vpop.f32.mrf.mxu0
    %3301 = vdwg.mxu0
    %v3302 = vlog2.pop %v3299
    %v3303 = vmul.f32 %v3302, 0.6931472
    %v3305 = vrot.slane %v3303, 3
    %v3307 = vadd.f32 %v3214, %v3305
    %v3308 = vsel %vm3207, %v1931, %v2715
    %v3310 = vadd.f32 %v3307, %v3308
    %v3312 = vrot.slane %v3310, 7
    %v3315 = vrot.slane %v3202, 7
    %v3318 = vsel %vm2729, %v3312, %v3315
    %v3319 = vsel %vm2730, %v3310, %v3206
    %v3322 = vrot.slane %v3319, 7
    %vm3323 = vcmask 1047559
    %v3324 = vsel %vm3323, %v3322, %v3318
    %vm3326 = vcmask 64518
    %v3327 = vsel %vm3326, %v3324, -inf
    %3328 = vmax.xlane.f32.xlu0 %v3327
    %v3329 = vpop.xlane.xlu0 %3328
    %v3330 = vadd.f32 %v3329, %v1947
    %v3332 = vrot.slane %v3329, 1
    %v3335 = vsub.f32 %v3318, %v3329
    %v3336 = vsub.f32 %v3319, %v3332
    %v3337 = vmul.f32 %v3335, 1.442695
    %v3338 = vpow.pop %v3337
    %v3339 = vmul.f32 %v3336, 1.442695
    %v3340 = vpow.pop %v3339
    %v3343 = vrot.slane %v3338, 6
    %v3344 = vrot.slane %v3340, 5
    %v3345 = vsel %vm1987, %v3344, %v3343
    %v3346 = vsel %vm311, %v3345, 0
    %3348 = vmatprep.subr.mxu0 0.0
    %3349 = vmatpush1.msra.mxu0 0.0
    %3350 = vmatprep.subr.mxu0 0.0
    %3351 = vmatpush1.msra.mxu0 0.0
    %3352 = vmatprep.subr.mxu0 0.0
    %3353 = vmatpush1.msra.mxu0 0.0
    %3354 = vmatprep.subr.mxu0 0.0
    %3355 = vmatpush1.msra.mxu0 0.0
    %3356 = vmatprep.subr.mxu0 0.0
    %3357 = vmatpush1.msra.mxu0 0.0
    %3358 = vmatprep.subr.mxu0 0.0
    %3359 = vmatpush1.msra.mxu0 0.0
    %3360 = vmatprep.subr.mxu0 0.0
    %3361 = vmatpush1.msra.mxu0 0.0
    %3362 = vmatprep.subr.mxu0 0.0
    %3363 = vmatpush1.msra.mxu0 0.0
    %3364 = vmatprep.subr.mxu0 0.0
    %3365 = vmatpush1.msra.mxu0 0.0
    %3366 = vmatprep.subr.mxu0 0.0
    %3367 = vmatpush1.msra.mxu0 0.0
    %3368 = vmatprep.subr.mxu0 0.0
    %3369 = vmatpush1.msra.mxu0 0.0
    %3370 = vmatprep.subr.mxu0 0.0
    %3371 = vmatpush1.msra.mxu0 0.0
    %3372 = vmatprep.subr.mxu0 0.0
    %3373 = vmatpush1.msra.mxu0 0.0
    %3374 = vmatprep.subr.mxu0 0.0
    %3375 = vmatpush1.msra.mxu0 0.0
    %3376 = vmatprep.subr.mxu0 0.0
    %3377 = vmatpush1.msra.mxu0 0.0
    %3378 = vmatprep.subr.mxu0 0.0
    %3379 = vmatpush1.msra.mxu0 %v1950
    %3380 = vmatprep.subr.mxu0 0.0
    %3381 = vmatpush2.msra.mxu0 0.0
    %3382 = vmatprep.subr.mxu0 0.0
    %3383 = vmatpush2.msra.mxu0 0.0
    %3384 = vmatprep.subr.mxu0 0.0
    %3385 = vmatpush2.msra.mxu0 0.0
    %3386 = vmatprep.subr.mxu0 0.0
    %3387 = vmatpush2.msra.mxu0 0.0
    %3388 = vmatprep.subr.mxu0 0.0
    %3389 = vmatpush2.msra.mxu0 0.0
    %3390 = vmatprep.subr.mxu0 0.0
    %3391 = vmatpush2.msra.mxu0 0.0
    %3392 = vmatprep.subr.mxu0 0.0
    %3393 = vmatpush2.msra.mxu0 0.0
    %3394 = vmatprep.subr.mxu0 0.0
    %3395 = vmatpush2.msra.mxu0 0.0
    %3396 = vmatprep.subr.mxu0 0.0
    %3397 = vmatpush2.msra.mxu0 0.0
    %3398 = vmatprep.subr.mxu0 0.0
    %3399 = vmatpush2.msra.mxu0 0.0
    %3400 = vmatprep.subr.mxu0 0.0
    %3401 = vmatpush2.msra.mxu0 0.0
    %3402 = vmatprep.subr.mxu0 0.0
    %3403 = vmatpush2.msra.mxu0 0.0
    %3404 = vmatprep.subr.mxu0 0.0
    %3405 = vmatpush2.msra.mxu0 0.0
    %3406 = vmatprep.subr.mxu0 0.0
    %3407 = vmatpush2.msra.mxu0 0.0
    %3408 = vmatprep.subr.mxu0 0.0
    %3409 = vmatpush2.msra.mxu0 0.0
    %3410 = vmatprep.subr.mxu0 0.0
    %3411 = vmatpush2.msra.mxu0 0.0
    %3412 = vmatprep.mubr.f32.mxu0 0.0
    %3413 = vmatmul.mubr.f32.gmra.mxu0 %v3346
    %v3414 = vpop.f32.mrf.mxu0
    %v3415 = vadd.f32 0.0, %v3414
    %v3416 = vpop.f32.mrf.mxu0
    %3417 = vdwg.mxu0
    %v3418 = vlog2.pop %v3415
    %v3419 = vmul.f32 %v3418, 0.6931472
    %v3421 = vrot.slane %v3419, 2
    %v3423 = vadd.f32 %v3330, %v3421
    %v3424 = vsel %vm3323, %v1931, %v2715
    %v3426 = vadd.f32 %v3423, %v3424
    %v3428 = vrot.slane %v3426, 7
    %v3431 = vrot.slane %v3318, 7
    %v3434 = vsel %vm2729, %v3428, %v3431
    %v3435 = vsel %vm2730, %v3426, %v3322
    %v3436 = vadd.f32 %v3434, %v2600
    %v3437 = vadd.f32 %v3435, %v2600
    %v3440 = vrot.slane %v3437, 7
    %vm3443 = vcmask 64519
    %v3444 = vsel %vm3443, %v3436, -inf
    %3445 = vmax.xlane.f32.xlu0 %v3444
    %v3446 = vpop.xlane.xlu0 %3445
    %vm3447 = vcmask 57344
    %v3448 = vsel %vm3447, %v3440, -inf
    %3449 = vmax.xlane.f32.xlu0 %v3448
    %v3450 = vpop.xlane.xlu0 %3449
    %v3453 = vrot.slane %v3450, 1
    %v3456 = vsub.f32 %v3436, %v3446
    %v3457 = vsub.f32 %v3437, %v3453
    %v3458 = vmul.f32 %v3456, 1.442695
    %v3459 = vpow.pop %v3458
    %v3460 = vmul.f32 %v3457, 1.442695
    %v3461 = vpow.pop %v3460
    %v3464 = vrot.slane %v3461, 7
    %v3467 = vsel %vm3443, %v3459, 0.0
    %3468 = vadd.xlane.f32.xlu0 %v3467
    %v3469 = vpop.xlane.xlu0 %3468
    %v3470 = vsel %vm3447, %v3464, 0.0
    %3471 = vadd.xlane.f32.xlu0 %v3470
    %v3472 = vpop.xlane.xlu0 %3471
    %v3473 = vlog2.pop %v3469
    %v3474 = vmul.f32 %v3473, 0.6931472
    %v3475 = vlog2.pop %v3472
    %v3476 = vmul.f32 %v3475, 0.6931472
    %v3477 = vadd.f32 %v3446, %v3474
    %v3478 = vadd.f32 %v3450, %v3476
    %v3481 = vrot.slane %v2624, 1
    %v3484 = vsub.f32 %v3477, %v3481
    %v3485 = vsub.f32 %v3478, %v2625
    %vm3488 = vcmask 1040384
    %v3489 = vrot.slane %v3484, 7
    %v3490 = vrot.slane %v3485, 7
    %v3491 = vsel %vm3488, %v3489, %v3490
    %vm3493 = vcmask 1024
    %v3494 = vsel %vm3493, %v3491, 0.0
    %v3495 = vrot.slane %v3494, 4
    %v3496 = vadd.f32 %v3494, %v3495
    %v3497 = vrot.slane %v3496, 2
    %v3498 = vadd.f32 %v3496, %v3497
    %v3499 = vrot.slane %v3498, 1
    %v3500 = vadd.f32 %v3498, %v3499
    %vm3501 = vcmask 0
    %3502 = vst.msk [vmem:[#allocation2] sm:$0x1] %vm3501, %v3500
    // Predicated region
    $region94: #{bert_crf_forward.1} parent=1 // pred_check
      _
    $region95: #{bert_crf_forward.1} parent=1 // pred_check_branch
      %3504 = sbr.rel (0) target = $region97
    $region96: #{bert_crf_forward.1} parent=1 // pred_region
      %s3506 = ssub.s32 16, 16
      %3507 = vsyncadd [#allocation3], %s3506
      %s3509 = sshll.u32 [#allocation2], 4
      %s3510 = int_to_ptr.vmem [resolvable:$true] %s3509
      %3512 = dma.vmem_to_hbm [thread:$0]  %s3510, 16, %s23, [#allocation3]
    $region97: #{bert_crf_forward.1} parent=1 // pred_fallthru
      _
    // Predicated region
    $region98: #{bert_crf_forward.1} parent=1 // pred_check
      _
    $region99: #{bert_crf_forward.1} parent=1 // pred_check_branch
      %3514 = sbr.rel (0) target = $region101
    $region100: #{bert_crf_forward.1} parent=1 // pred_region
      %3515 = dma.done [#allocation3], 16
    $region101: #{bert_crf_forward.1} parent=1 // pred_fallthru
      _
    %3516 = vsyncpa [#allocation3], 1

</llo_original>
